<compile_context>
chip_gen: v7x
topology: tpu7x:2x2x1
jax: 0.10.0
libtpu: 0.0.40
codegen_flags: <defaults>
</compile_context>

<pallas_src>
import functools

import jax
import jax.numpy as jnp
from jax.experimental import pallas as pl
from jax.experimental.pallas import tpu as pltpu

_EPS = 1e-5


# ----------------------------------------------------------------------------
# Kernel 1: per-channel batch statistics (mean, biased var) -- tiled reduction.
# ----------------------------------------------------------------------------
def _stats_kernel(x_ref, mean_ref, var_ref, sum_ref, sq_ref, *, M):
    i = pl.program_id(0)

    @pl.when(i == 0)
    def _init():
        sum_ref[...] = jnp.zeros_like(sum_ref)
        sq_ref[...] = jnp.zeros_like(sq_ref)

    x = x_ref[...].astype(jnp.float32)                       # (TM, C)
    sum_ref[...] += jnp.sum(x, axis=0, keepdims=True)
    sq_ref[...] += jnp.sum(x * x, axis=0, keepdims=True)

    @pl.when(i == pl.num_programs(0) - 1)
    def _finalize():
        inv_m = jnp.float32(1.0 / M)
        mean = sum_ref[...] * inv_m
        var = jnp.maximum(sq_ref[...] * inv_m - mean * mean, 0.0)
        mean_ref[...] = mean
        var_ref[...] = var


def _pick_row_tile(m, c, itemsize, budget=4 * 1024 * 1024):
    # Largest row tile (multiple of 8) that divides M and fits the VMEM budget.
    for cand in (2048, 1024, 512, 256, 128, 64, 32, 16, 8):
        if m % cand == 0 and cand * c * itemsize <= budget:
            return cand
    return m


def channel_stats(x_nhwc):
    """Per-channel batch mean and *biased* variance over (N, H, W)."""
    N, H, W, C = x_nhwc.shape
    M = N * H * W
    x2 = x_nhwc.reshape(M, C)
    TM = _pick_row_tile(M, C, jnp.dtype(x_nhwc.dtype).itemsize)
    mean, var = pl.pallas_call(
        functools.partial(_stats_kernel, M=M),
        grid=(M // TM,),
        in_specs=[pl.BlockSpec((TM, C), lambda i: (i, 0))],
        out_specs=(pl.BlockSpec((1, C), lambda i: (0, 0)),
                   pl.BlockSpec((1, C), lambda i: (0, 0))),
        out_shape=(jax.ShapeDtypeStruct((1, C), jnp.float32),
                   jax.ShapeDtypeStruct((1, C), jnp.float32)),
        scratch_shapes=[pltpu.VMEM((1, C), jnp.float32),
                        pltpu.VMEM((1, C), jnp.float32)],
        compiler_params=pltpu.CompilerParams(
            dimension_semantics=("arbitrary",)),
    )(x2)
    return mean, var                                          # each (1, C) f32


# ----------------------------------------------------------------------------
# Kernel 2: fused BN(scale,shift) -> ReLU -> zero-pad -> im2col -> single MXU
# matmul (+bias, +optional residual).  Grid = (N, Cout_tiles).
# ----------------------------------------------------------------------------
def _fused_kernel(x_ref, scale_ref, shift_ref, w_ref, b_ref, *rest,
                  KH, KW, pad, H, W, has_res):
    if has_res:
        res_ref, out_ref, act_ref, col_ref = rest
    else:
        out_ref, act_ref, col_ref = rest
        res_ref = None

    C = x_ref.shape[-1]
    co = pl.program_id(1)

    # BN + ReLU + padding + im2col computed once per image (co == 0); the Cout
    # tile steps (co > 0) reuse the persistent VMEM scratch.
    @pl.when(co == 0)
    def _prepare():
        # Zero the padded activation buffer; the border provides the conv's
        # zero padding (applied AFTER BN+ReLU, as in PyTorch).
        act_ref[...] = jnp.zeros_like(act_ref)
        x = x_ref[0].astype(jnp.float32)                      # (H, W, C)
        scale = scale_ref[...].reshape(1, 1, C)               # hoisted once
        shift = shift_ref[...].reshape(1, 1, C)
        act_ref[pad:pad + H, pad:pad + W, :] = jnp.maximum(
            x * scale + shift, 0.0)                           # f32 BN + ReLU
        act = act_ref[...]                                    # (Hp, Wp, C)
        # im2col: build the (H*W, KH*KW*C) bf16 matrix for one big matmul.
        for kh in range(KH):                                  # static unroll
            for kw in range(KW):
                k0 = (kh * KW + kw) * C
                col_ref[:, k0:k0 + C] = (
                    act[kh:kh + H, kw:kw + W, :]
                    .reshape(H * W, C).astype(col_ref.dtype))

    # One matmul: (H*W, KH*KW*C) @ (KH*KW*C, TCO), bf16 in, f32 accumulate.
    acc = jnp.dot(col_ref[...], w_ref[...],
                  preferred_element_type=jnp.float32)
    acc = acc + b_ref[...].astype(jnp.float32)
    if has_res:
        acc = acc + res_ref[0].astype(jnp.float32)
    out_ref[...] = acc[None].astype(out_ref.dtype)            # (1, H*W, TCO)


def _pick_cout_tile(cout):
    for t in (256, 128):
        if cout % t == 0:
            return t
    return cout          # small channel counts: single full tile


def bn_relu_conv(x_nhwc, scale, shift, w_hwio, bias, residual_nhwc, padding):
    """Fused  BN(scale,shift) -> ReLU -> Conv2d(+bias)  [-> +residual]."""
    N, H, W, C = x_nhwc.shape
    KH, KW, Cin, Cout = w_hwio.shape
    assert Cin == C
    assert H + 2 * padding - KH + 1 == H and W + 2 * padding - KW + 1 == W, \
        "ResBlock2d preserves spatial resolution"
    Hp, Wp = H + 2 * padding, W + 2 * padding

    TCO = _pick_cout_tile(Cout)
    n_co = Cout // TCO
    has_res = residual_nhwc is not None
    itemsize = jnp.dtype(x_nhwc.dtype).itemsize

    # Weights reshaped once, matching the im2col column order (kh, kw, cin).
    w2d = w_hwio.reshape(KH * KW * Cin, Cout).astype(jnp.bfloat16)
    bias2d = bias.reshape(1, Cout).astype(jnp.float32)

    inputs = [x_nhwc, scale.astype(jnp.float32), shift.astype(jnp.float32),
              w2d, bias2d]
    in_specs = [
        pl.BlockSpec((1, H, W, C), lambda n, co: (n, 0, 0, 0)),
        pl.BlockSpec((1, C), lambda n, co: (0, 0)),
        pl.BlockSpec((1, C), lambda n, co: (0, 0)),
        pl.BlockSpec((KH * KW * C, TCO), lambda n, co: (0, co)),
        pl.BlockSpec((1, TCO), lambda n, co: (0, co)),
    ]
    if has_res:
        inputs.append(residual_nhwc.reshape(N, H * W, Cout))
        in_specs.append(pl.BlockSpec((1, H * W, TCO), lambda n, co: (n, 0, co)))

    # Rough per-call VMEM need (double-buffered blocks + scratch), clamped so the
    # explicit limit is safe on every chip (v5e/v6e 128 MiB, v7x 64 MiB physical).
    est = (2 * H * W * C * itemsize                      # x double-buffer
           + 2 * KH * KW * C * TCO * 2                   # bf16 weight tiles
           + 2 * H * W * TCO * itemsize                  # output double-buffer
           + (2 * H * W * TCO * itemsize if has_res else 0)
           + Hp * Wp * C * 4                             # padded act scratch (f32)
           + H * W * KH * KW * C * 2)                    # im2col scratch (bf16)
    vmem_limit = int(min(48 * 1024 * 1024, max(32 * 1024 * 1024, 2 * est)))

    kernel = functools.partial(_fused_kernel, KH=KH, KW=KW, pad=padding,
                               H=H, W=W, has_res=has_res)
    out_flat = pl.pallas_call(
        kernel,
        grid=(N, n_co),
        in_specs=in_specs,
        out_specs=pl.BlockSpec((1, H * W, TCO), lambda n, co: (n, 0, co)),
        out_shape=jax.ShapeDtypeStruct((N, H * W, Cout), x_nhwc.dtype),
        scratch_shapes=[
            pltpu.VMEM((Hp, Wp, C), jnp.float32),           # padded BN+ReLU act
            pltpu.VMEM((H * W, KH * KW * C), jnp.bfloat16), # im2col matrix
        ],
        compiler_params=pltpu.CompilerParams(
            dimension_semantics=("parallel", "arbitrary"),
            vmem_limit_bytes=vmem_limit),
    )(*inputs)
    return out_flat.reshape(N, H, W, Cout)


# ----------------------------------------------------------------------------
# Full ResBlock2d forward (NCHW in / NCHW out, like the PyTorch module).
# ----------------------------------------------------------------------------
def resblock2d_forward(x_nchw, params, padding):
    x = jnp.transpose(x_nchw, (0, 2, 3, 1))                   # -> NHWC

    # --- norm1 + relu + conv1 (no residual input: no zero-tensor HBM traffic) ---
    mean1, var1 = channel_stats(x)
    scale1 = params["g1"][None, :] / jnp.sqrt(var1 + _EPS)
    shift1 = params["b1"][None, :] - mean1 * scale1
    y1 = bn_relu_conv(x, scale1, shift1, params["w1"], params["cb1"],
                      None, padding)

    # --- norm2 + relu + conv2 + residual ---
    mean2, var2 = channel_stats(y1)
    scale2 = params["g2"][None, :] / jnp.sqrt(var2 + _EPS)
    shift2 = params["b2"][None, :] - mean2 * scale2
    y2 = bn_relu_conv(y1, scale2, shift2, params["w2"], params["cb2"],
                      x, padding)

    return jnp.transpose(y2, (0, 3, 1, 2))                    # -> NCHW


# ----------------------------------------------------------------------------
# Pure-JAX (f32) reference for verification.
# ----------------------------------------------------------------------------
def reference_forward(x_nchw, params, padding):
    x = jnp.transpose(x_nchw, (0, 2, 3, 1)).astype(jnp.float32)

    def bn(v, g, b):
        m = v.mean(axis=(0, 1, 2))
        var = v.var(axis=(0, 1, 2))                           # biased (training BN)
        return (v - m) / jnp.sqrt(var + _EPS) * g + b

    def conv(v, w, b):
        out = jax.lax.conv_general_dilated(
            v, w, window_strides=(1, 1),
            padding=[(padding, padding), (padding, padding)],
            dimension_numbers=("NHWC", "HWIO", "NHWC"))
        return out + b

    o = conv(jax.nn.relu(bn(x, params["g1"], params["b1"])), params["w1"], params["cb1"])
    o = conv(jax.nn.relu(bn(o, params["g2"], params["b2"])), params["w2"], params["cb2"])
    o = o + x
    return jnp.transpose(o, (0, 3, 1, 2))


if __name__ == "__main__":
    key = jax.random.PRNGKey(0)
    N, C, H, W = 2, 4, 16, 16
    ksize, padding = 3, 1

    keys = jax.random.split(key, 9)
    x = jax.random.normal(keys[0], (N, C, H, W), jnp.float32)
    params = dict(
        # conv weights stored HWIO (KH, KW, Cin, Cout); deterministic synthetic init
        w1=0.2 * jax.random.normal(keys[1], (ksize, ksize, C, C), jnp.float32),
        cb1=0.1 * jax.random.normal(keys[2], (C,), jnp.float32),
        w2=0.2 * jax.random.normal(keys[3], (ksize, ksize, C, C), jnp.float32),
        cb2=0.1 * jax.random.normal(keys[4], (C,), jnp.float32),
        g1=1.0 + 0.1 * jax.random.normal(keys[5], (C,), jnp.float32),
        b1=0.1 * jax.random.normal(keys[6], (C,), jnp.float32),
        g2=1.0 + 0.1 * jax.random.normal(keys[7], (C,), jnp.float32),
        b2=0.1 * jax.random.normal(keys[8], (C,), jnp.float32),
    )

    fwd = jax.jit(functools.partial(resblock2d_forward, padding=padding))
    out = jax.block_until_ready(fwd(x, params))

    ref = reference_forward(x, params, padding)
    assert out.shape == x.shape, (out.shape, x.shape)
    max_err = float(jnp.max(jnp.abs(out - ref)))
    # Tolerance accounts for bf16 matmul operands (f32 accumulation) vs f32 reference.
    assert jnp.allclose(out, ref, atol=5e-2, rtol=5e-2), f"max_err={max_err}"

    print("KERNEL_OK")
</pallas_src>

<mosaic_0001>
module attributes {stable_mosaic.version = 11 : i64} {
  func.func @_stats_kernel(%arg0: i32, %arg1: memref<512x4xf32, #tpu.memory_space<vmem>>, %arg2: memref<1x4xf32, #tpu.memory_space<vmem>>, %arg3: memref<1x4xf32, #tpu.memory_space<vmem>>, %arg4: memref<1x4xf32, #tpu.memory_space<vmem>>, %arg5: memref<1x4xf32, #tpu.memory_space<vmem>>) attributes {dimension_semantics = [#tpu.dimension_semantics<arbitrary>], iteration_bounds = array<i64: 1>, scalar_prefetch = 0 : i64, scratch_operands = 2 : i64, tpu.core_type = #tpu.core_type<tc>, window_params = [{transform_indices = @transform_0, window_bounds = array<i64: 512, 4>}, {pipeline_mode = #tpu.pipeline_mode<synchronous>, transform_indices = @transform_1, window_bounds = array<i64: 1, 4>}, {pipeline_mode = #tpu.pipeline_mode<synchronous>, transform_indices = @transform_2, window_bounds = array<i64: 1, 4>}]} {
    %c0_i32 = arith.constant 0 : i32
    %0 = arith.cmpi eq, %arg0, %c0_i32 : i32
    %1 = arith.extui %0 : i1 to i32
    %c0_i32_0 = arith.constant 0 : i32
    %2 = arith.cmpi ne, %1, %c0_i32_0 : i32
    scf.if %2 {
      %cst_13 = arith.constant 0.000000e+00 : f32
      %18 = vector.broadcast %cst_13 : f32 to vector<1x4xf32>
      %c0_14 = arith.constant 0 : index
      %c0_15 = arith.constant 0 : index
      %19 = vector.load %arg4[%c0_14, %c0_15] : memref<1x4xf32, #tpu.memory_space<vmem>>, vector<1x4xf32>
      tpu.vector_store %arg4[%c0_14, %c0_15], %18 {strides = array<i32>} : memref<1x4xf32, #tpu.memory_space<vmem>>, vector<1x4xf32>,
      %cst_16 = arith.constant 0.000000e+00 : f32
      %20 = vector.broadcast %cst_16 : f32 to vector<1x4xf32>
      %c0_17 = arith.constant 0 : index
      %c0_18 = arith.constant 0 : index
      %21 = vector.load %arg5[%c0_17, %c0_18] : memref<1x4xf32, #tpu.memory_space<vmem>>, vector<1x4xf32>
      tpu.vector_store %arg5[%c0_17, %c0_18], %20 {strides = array<i32>} : memref<1x4xf32, #tpu.memory_space<vmem>>, vector<1x4xf32>,
    } else {
    }
    %c0 = arith.constant 0 : index
    %c0_1 = arith.constant 0 : index
    %3 = vector.load %arg1[%c0, %c0_1] : memref<512x4xf32, #tpu.memory_space<vmem>>, vector<512x4xf32>
    %c0_2 = arith.constant 0 : index
    %c0_3 = arith.constant 0 : index
    %4 = vector.load %arg4[%c0_2, %c0_3] : memref<1x4xf32, #tpu.memory_space<vmem>>, vector<1x4xf32>
    %cst = arith.constant dense<0.000000e+00> : vector<4xf32>
    %5 = vector.multi_reduction <add>, %3, %cst [0] : vector<512x4xf32> to vector<4xf32>
    %6 = vector.shape_cast %5 : vector<4xf32> to vector<1x4xf32>
    %7 = arith.addf %4, %6 : vector<1x4xf32>
    %c0_4 = arith.constant 0 : index
    %c0_5 = arith.constant 0 : index
    %8 = vector.load %arg4[%c0_4, %c0_5] : memref<1x4xf32, #tpu.memory_space<vmem>>, vector<1x4xf32>
    tpu.vector_store %arg4[%c0_4, %c0_5], %7 {strides = array<i32>} : memref<1x4xf32, #tpu.memory_space<vmem>>, vector<1x4xf32>,
    %c0_6 = arith.constant 0 : index
    %c0_7 = arith.constant 0 : index
    %9 = vector.load %arg5[%c0_6, %c0_7] : memref<1x4xf32, #tpu.memory_space<vmem>>, vector<1x4xf32>
    %10 = arith.mulf %3, %3 : vector<512x4xf32>
    %cst_8 = arith.constant dense<0.000000e+00> : vector<4xf32>
    %11 = vector.multi_reduction <add>, %10, %cst_8 [0] : vector<512x4xf32> to vector<4xf32>
    %12 = vector.shape_cast %11 : vector<4xf32> to vector<1x4xf32>
    %13 = arith.addf %9, %12 : vector<1x4xf32>
    %c0_9 = arith.constant 0 : index
    %c0_10 = arith.constant 0 : index
    %14 = vector.load %arg5[%c0_9, %c0_10] : memref<1x4xf32, #tpu.memory_space<vmem>>, vector<1x4xf32>
    tpu.vector_store %arg5[%c0_9, %c0_10], %13 {strides = array<i32>} : memref<1x4xf32, #tpu.memory_space<vmem>>, vector<1x4xf32>,
    %c0_i32_11 = arith.constant 0 : i32
    %15 = arith.cmpi eq, %arg0, %c0_i32_11 : i32
    %16 = arith.extui %15 : i1 to i32
    %c0_i32_12 = arith.constant 0 : i32
    %17 = arith.cmpi ne, %16, %c0_i32_12 : i32
    scf.if %17 {
      %c0_13 = arith.constant 0 : index
      %c0_14 = arith.constant 0 : index
      %18 = vector.load %arg4[%c0_13, %c0_14] : memref<1x4xf32, #tpu.memory_space<vmem>>, vector<1x4xf32>
      %cst_15 = arith.constant 0.001953125 : f32
      %19 = vector.broadcast %cst_15 : f32 to vector<1x4xf32>
      %20 = arith.mulf %18, %19 : vector<1x4xf32>
      %c0_16 = arith.constant 0 : index
      %c0_17 = arith.constant 0 : index
      %21 = vector.load %arg5[%c0_16, %c0_17] : memref<1x4xf32, #tpu.memory_space<vmem>>, vector<1x4xf32>
      %cst_18 = arith.constant 0.001953125 : f32
      %22 = vector.broadcast %cst_18 : f32 to vector<1x4xf32>
      %23 = arith.mulf %21, %22 : vector<1x4xf32>
      %24 = arith.mulf %20, %20 : vector<1x4xf32>
      %25 = arith.subf %23, %24 : vector<1x4xf32>
      %cst_19 = arith.constant 0.000000e+00 : f32
      %26 = vector.broadcast %cst_19 : f32 to vector<1x4xf32>
      %27 = arith.maximumf %25, %26 : vector<1x4xf32>
      %c0_20 = arith.constant 0 : index
      %c0_21 = arith.constant 0 : index
      %28 = vector.load %arg2[%c0_20, %c0_21] : memref<1x4xf32, #tpu.memory_space<vmem>>, vector<1x4xf32>
      tpu.vector_store %arg2[%c0_20, %c0_21], %20 {strides = array<i32>} : memref<1x4xf32, #tpu.memory_space<vmem>>, vector<1x4xf32>,
      %c0_22 = arith.constant 0 : index
      %c0_23 = arith.constant 0 : index
      %29 = vector.load %arg3[%c0_22, %c0_23] : memref<1x4xf32, #tpu.memory_space<vmem>>, vector<1x4xf32>
      tpu.vector_store %arg3[%c0_22, %c0_23], %27 {strides = array<i32>} : memref<1x4xf32, #tpu.memory_space<vmem>>, vector<1x4xf32>,
    } else {
    }
    return
  }
  func.func @transform_0(%arg0: i32) -> (i32, i32) {
    %c0_i32 = arith.constant 0 : i32
    %c0_i32_0 = arith.constant 0 : i32
    return %arg0, %c0_i32 : i32, i32
  }
  func.func @transform_1(%arg0: i32) -> (i32, i32) {
    %c0_i32 = arith.constant 0 : i32
    %c0_i32_0 = arith.constant 0 : i32
    %c0_i32_1 = arith.constant 0 : i32
    return %c0_i32, %c0_i32_0 : i32, i32
  }
  func.func @transform_2(%arg0: i32) -> (i32, i32) {
    %c0_i32 = arith.constant 0 : i32
    %c0_i32_0 = arith.constant 0 : i32
    %c0_i32_1 = arith.constant 0 : i32
    return %c0_i32, %c0_i32_0 : i32, i32
  }
}

module attributes {stable_mosaic.version = 11 : i64} {
  func.func @_fused_kernel(%arg0: i32, %arg1: i32, %arg2: memref<1x16x16x4xf32, #tpu.memory_space<vmem>>, %arg3: memref<1x4xf32, #tpu.memory_space<vmem>>, %arg4: memref<1x4xf32, #tpu.memory_space<vmem>>, %arg5: memref<36x4xbf16, #tpu.memory_space<vmem>>, %arg6: memref<1x4xf32, #tpu.memory_space<vmem>>, %arg7: memref<1x256x4xf32, #tpu.memory_space<vmem>>, %arg8: memref<1x256x4xf32, #tpu.memory_space<vmem>>, %arg9: memref<18x18x4xf32, #tpu.memory_space<vmem>>, %arg10: memref<256x36xbf16, #tpu.memory_space<vmem>>) attributes {dimension_semantics = [#tpu.dimension_semantics<parallel>, #tpu.dimension_semantics<arbitrary>], iteration_bounds = array<i64: 2, 1>, scalar_prefetch = 0 : i64, scratch_operands = 2 : i64, tpu.core_type = #tpu.core_type<tc>, window_params = [{transform_indices = @transform_0, window_bounds = array<i64: 1, 16, 16, 4>}, {pipeline_mode = #tpu.pipeline_mode<synchronous>, transform_indices = @transform_1, window_bounds = array<i64: 1, 4>}, {pipeline_mode = #tpu.pipeline_mode<synchronous>, transform_indices = @transform_2, window_bounds = array<i64: 1, 4>}, {transform_indices = @transform_3, window_bounds = array<i64: 36, 4>}, {transform_indices = @transform_4, window_bounds = array<i64: 1, 4>}, {transform_indices = @transform_5, window_bounds = array<i64: 1, 256, 4>}, {transform_indices = @transform_6, window_bounds = array<i64: 1, 256, 4>}]} {
    %c0_i32 = arith.constant 0 : i32
    %0 = arith.cmpi eq, %arg1, %c0_i32 : i32
    %1 = arith.extui %0 : i1 to i32
    %c0_i32_0 = arith.constant 0 : i32
    %2 = arith.cmpi ne, %1, %c0_i32_0 : i32
    scf.if %2 {
      %cst_12 = arith.constant 0.000000e+00 : f32
      %14 = vector.broadcast %cst_12 : f32 to vector<18x18x4xf32>
      %c0_13 = arith.constant 0 : index
      %c0_14 = arith.constant 0 : index
      %c0_15 = arith.constant 0 : index
      %15 = vector.load %arg9[%c0_13, %c0_14, %c0_15] : memref<18x18x4xf32, #tpu.memory_space<vmem>>, vector<18x18x4xf32>
      tpu.vector_store %arg9[%c0_13, %c0_14, %c0_15], %14 {strides = array<i32>} : memref<18x18x4xf32, #tpu.memory_space<vmem>>, vector<18x18x4xf32>,
      %c0_16 = arith.constant 0 : index
      %c0_17 = arith.constant 0 : index
      %c0_18 = arith.constant 0 : index
      %c0_19 = arith.constant 0 : index
      %16 = vector.load %arg2[%c0_16, %c0_17, %c0_18, %c0_19] : memref<1x16x16x4xf32, #tpu.memory_space<vmem>>, vector<1x16x16x4xf32>
      %17 = vector.shape_cast %16 : vector<1x16x16x4xf32> to vector<16x16x4xf32>
      %c0_20 = arith.constant 0 : index
      %c0_21 = arith.constant 0 : index
      %18 = vector.load %arg3[%c0_20, %c0_21] : memref<1x4xf32, #tpu.memory_space<vmem>>, vector<1x4xf32>
      %19 = vector.shape_cast %18 : vector<1x4xf32> to vector<1x1x4xf32>
      %c0_22 = arith.constant 0 : index
      %c0_23 = arith.constant 0 : index
      %20 = vector.load %arg4[%c0_22, %c0_23] : memref<1x4xf32, #tpu.memory_space<vmem>>, vector<1x4xf32>
      %21 = vector.shape_cast %20 : vector<1x4xf32> to vector<1x1x4xf32>
      %22 = vector.broadcast %19 : vector<1x1x4xf32> to vector<16x16x4xf32>
      %23 = arith.mulf %17, %22 : vector<16x16x4xf32>
      %24 = vector.broadcast %21 : vector<1x1x4xf32> to vector<16x16x4xf32>
      %25 = arith.addf %23, %24 : vector<16x16x4xf32>
      %cst_24 = arith.constant 0.000000e+00 : f32
      %26 = vector.broadcast %cst_24 : f32 to vector<16x16x4xf32>
      %27 = arith.maximumf %25, %26 : vector<16x16x4xf32>
      %c1 = arith.constant 1 : index
      %c1_25 = arith.constant 1 : index
      %c0_26 = arith.constant 0 : index
      %28 = vector.load %arg9[%c1, %c1_25, %c0_26] : memref<18x18x4xf32, #tpu.memory_space<vmem>>, vector<16x16x4xf32>
      tpu.vector_store %arg9[%c1, %c1_25, %c0_26], %27 {strides = array<i32>} : memref<18x18x4xf32, #tpu.memory_space<vmem>>, vector<16x16x4xf32>,
      %c0_27 = arith.constant 0 : index
      %c0_28 = arith.constant 0 : index
      %c0_29 = arith.constant 0 : index
      %29 = vector.load %arg9[%c0_27, %c0_28, %c0_29] : memref<18x18x4xf32, #tpu.memory_space<vmem>>, vector<18x18x4xf32>
      %30 = vector.extract_strided_slice %29 {offsets = [0, 0, 0], sizes = [16, 16, 4], strides = [1, 1, 1]} : vector<18x18x4xf32> to vector<16x16x4xf32>
      %31 = vector.shape_cast %30 : vector<16x16x4xf32> to vector<256x4xf32>
      %32 = arith.truncf %31 : vector<256x4xf32> to vector<256x4xbf16>
      %c0_30 = arith.constant 0 : index
      %c0_31 = arith.constant 0 : index
      %33 = vector.load %arg10[%c0_30, %c0_31] : memref<256x36xbf16, #tpu.memory_space<vmem>>, vector<256x4xbf16>
      tpu.vector_store %arg10[%c0_30, %c0_31], %32 {strides = array<i32>} : memref<256x36xbf16, #tpu.memory_space<vmem>>, vector<256x4xbf16>,
      %34 = vector.extract_strided_slice %29 {offsets = [0, 1, 0], sizes = [16, 16, 4], strides = [1, 1, 1]} : vector<18x18x4xf32> to vector<16x16x4xf32>
      %35 = vector.shape_cast %34 : vector<16x16x4xf32> to vector<256x4xf32>
      %36 = arith.truncf %35 : vector<256x4xf32> to vector<256x4xbf16>
      %c0_32 = arith.constant 0 : index
      %c4 = arith.constant 4 : index
      %37 = vector.load %arg10[%c0_32, %c4] : memref<256x36xbf16, #tpu.memory_space<vmem>>, vector<256x4xbf16>
      tpu.vector_store %arg10[%c0_32, %c4], %36 {strides = array<i32>} : memref<256x36xbf16, #tpu.memory_space<vmem>>, vector<256x4xbf16>,
      %38 = vector.extract_strided_slice %29 {offsets = [0, 2, 0], sizes = [16, 16, 4], strides = [1, 1, 1]} : vector<18x18x4xf32> to vector<16x16x4xf32>
      %39 = vector.shape_cast %38 : vector<16x16x4xf32> to vector<256x4xf32>
      %40 = arith.truncf %39 : vector<256x4xf32> to vector<256x4xbf16>
      %c0_33 = arith.constant 0 : index
      %c8 = arith.constant 8 : index
      %41 = vector.load %arg10[%c0_33, %c8] : memref<256x36xbf16, #tpu.memory_space<vmem>>, vector<256x4xbf16>
      tpu.vector_store %arg10[%c0_33, %c8], %40 {strides = array<i32>} : memref<256x36xbf16, #tpu.memory_space<vmem>>, vector<256x4xbf16>,
      %42 = vector.extract_strided_slice %29 {offsets = [1, 0, 0], sizes = [16, 16, 4], strides = [1, 1, 1]} : vector<18x18x4xf32> to vector<16x16x4xf32>
      %43 = vector.shape_cast %42 : vector<16x16x4xf32> to vector<256x4xf32>
      %44 = arith.truncf %43 : vector<256x4xf32> to vector<256x4xbf16>
      %c0_34 = arith.constant 0 : index
      %c12 = arith.constant 12 : index
      %45 = vector.load %arg10[%c0_34, %c12] : memref<256x36xbf16, #tpu.memory_space<vmem>>, vector<256x4xbf16>
      tpu.vector_store %arg10[%c0_34, %c12], %44 {strides = array<i32>} : memref<256x36xbf16, #tpu.memory_space<vmem>>, vector<256x4xbf16>,
      %46 = vector.extract_strided_slice %29 {offsets = [1, 1, 0], sizes = [16, 16, 4], strides = [1, 1, 1]} : vector<18x18x4xf32> to vector<16x16x4xf32>
      %47 = vector.shape_cast %46 : vector<16x16x4xf32> to vector<256x4xf32>
      %48 = arith.truncf %47 : vector<256x4xf32> to vector<256x4xbf16>
      %c0_35 = arith.constant 0 : index
      %c16 = arith.constant 16 : index
      %49 = vector.load %arg10[%c0_35, %c16] : memref<256x36xbf16, #tpu.memory_space<vmem>>, vector<256x4xbf16>
      tpu.vector_store %arg10[%c0_35, %c16], %48 {strides = array<i32>} : memref<256x36xbf16, #tpu.memory_space<vmem>>, vector<256x4xbf16>,
      %50 = vector.extract_strided_slice %29 {offsets = [1, 2, 0], sizes = [16, 16, 4], strides = [1, 1, 1]} : vector<18x18x4xf32> to vector<16x16x4xf32>
      %51 = vector.shape_cast %50 : vector<16x16x4xf32> to vector<256x4xf32>
      %52 = arith.truncf %51 : vector<256x4xf32> to vector<256x4xbf16>
      %c0_36 = arith.constant 0 : index
      %c20 = arith.constant 20 : index
      %53 = vector.load %arg10[%c0_36, %c20] : memref<256x36xbf16, #tpu.memory_space<vmem>>, vector<256x4xbf16>
      tpu.vector_store %arg10[%c0_36, %c20], %52 {strides = array<i32>} : memref<256x36xbf16, #tpu.memory_space<vmem>>, vector<256x4xbf16>,
      %54 = vector.extract_strided_slice %29 {offsets = [2, 0, 0], sizes = [16, 16, 4], strides = [1, 1, 1]} : vector<18x18x4xf32> to vector<16x16x4xf32>
      %55 = vector.shape_cast %54 : vector<16x16x4xf32> to vector<256x4xf32>
      %56 = arith.truncf %55 : vector<256x4xf32> to vector<256x4xbf16>
      %c0_37 = arith.constant 0 : index
      %c24 = arith.constant 24 : index
      %57 = vector.load %arg10[%c0_37, %c24] : memref<256x36xbf16, #tpu.memory_space<vmem>>, vector<256x4xbf16>
      tpu.vector_store %arg10[%c0_37, %c24], %56 {strides = array<i32>} : memref<256x36xbf16, #tpu.memory_space<vmem>>, vector<256x4xbf16>,
      %58 = vector.extract_strided_slice %29 {offsets = [2, 1, 0], sizes = [16, 16, 4], strides = [1, 1, 1]} : vector<18x18x4xf32> to vector<16x16x4xf32>
      %59 = vector.shape_cast %58 : vector<16x16x4xf32> to vector<256x4xf32>
      %60 = arith.truncf %59 : vector<256x4xf32> to vector<256x4xbf16>
      %c0_38 = arith.constant 0 : index
      %c28 = arith.constant 28 : index
      %61 = vector.load %arg10[%c0_38, %c28] : memref<256x36xbf16, #tpu.memory_space<vmem>>, vector<256x4xbf16>
      tpu.vector_store %arg10[%c0_38, %c28], %60 {strides = array<i32>} : memref<256x36xbf16, #tpu.memory_space<vmem>>, vector<256x4xbf16>,
      %62 = vector.extract_strided_slice %29 {offsets = [2, 2, 0], sizes = [16, 16, 4], strides = [1, 1, 1]} : vector<18x18x4xf32> to vector<16x16x4xf32>
      %63 = vector.shape_cast %62 : vector<16x16x4xf32> to vector<256x4xf32>
      %64 = arith.truncf %63 : vector<256x4xf32> to vector<256x4xbf16>
      %c0_39 = arith.constant 0 : index
      %c32 = arith.constant 32 : index
      %65 = vector.load %arg10[%c0_39, %c32] : memref<256x36xbf16, #tpu.memory_space<vmem>>, vector<256x4xbf16>
      tpu.vector_store %arg10[%c0_39, %c32], %64 {strides = array<i32>} : memref<256x36xbf16, #tpu.memory_space<vmem>>, vector<256x4xbf16>,
    } else {
    }
    %c0 = arith.constant 0 : index
    %c0_1 = arith.constant 0 : index
    %3 = vector.load %arg10[%c0, %c0_1] : memref<256x36xbf16, #tpu.memory_space<vmem>>, vector<256x36xbf16>
    %c0_2 = arith.constant 0 : index
    %c0_3 = arith.constant 0 : index
    %4 = vector.load %arg5[%c0_2, %c0_3] : memref<36x4xbf16, #tpu.memory_space<vmem>>, vector<36x4xbf16>
    %cst = arith.constant dense<0.000000e+00> : vector<256x4xf32>
    %5 = tpu.matmul %3, %4, %cst {dimension_numbers = #tpu.dot_dimension_numbers<[1], [0], [0], [1], [0, 0, 1, 1], [], []>} : vector<256x36xbf16>, vector<36x4xbf16>, vector<256x4xf32> -> vector<256x4xf32>
    %c0_4 = arith.constant 0 : index
    %c0_5 = arith.constant 0 : index
    %6 = vector.load %arg6[%c0_4, %c0_5] : memref<1x4xf32, #tpu.memory_space<vmem>>, vector<1x4xf32>
    %7 = vector.broadcast %6 : vector<1x4xf32> to vector<256x4xf32>
    %8 = arith.addf %5, %7 : vector<256x4xf32>
    %c0_6 = arith.constant 0 : index
    %c0_7 = arith.constant 0 : index
    %c0_8 = arith.constant 0 : index
    %9 = vector.load %arg7[%c0_6, %c0_7, %c0_8] : memref<1x256x4xf32, #tpu.memory_space<vmem>>, vector<1x256x4xf32>
    %10 = vector.shape_cast %9 : vector<1x256x4xf32> to vector<256x4xf32>
    %11 = arith.addf %8, %10 : vector<256x4xf32>
    %12 = vector.shape_cast %11 : vector<256x4xf32> to vector<1x256x4xf32>
    %c0_9 = arith.constant 0 : index
    %c0_10 = arith.constant 0 : index
    %c0_11 = arith.constant 0 : index
    %13 = vector.load %arg8[%c0_9, %c0_10, %c0_11] : memref<1x256x4xf32, #tpu.memory_space<vmem>>, vector<1x256x4xf32>
    tpu.vector_store %arg8[%c0_9, %c0_10, %c0_11], %12 {strides = array<i32>} : memref<1x256x4xf32, #tpu.memory_space<vmem>>, vector<1x256x4xf32>,
    return
  }
  func.func @transform_0(%arg0: i32, %arg1: i32) -> (i32, i32, i32, i32) {
    %c0_i32 = arith.constant 0 : i32
    %c0_i32_0 = arith.constant 0 : i32
    %c0_i32_1 = arith.constant 0 : i32
    %c0_i32_2 = arith.constant 0 : i32
    return %arg0, %c0_i32, %c0_i32_0, %c0_i32_1 : i32, i32, i32, i32
  }
  func.func @transform_1(%arg0: i32, %arg1: i32) -> (i32, i32) {
    %c0_i32 = arith.constant 0 : i32
    %c0_i32_0 = arith.constant 0 : i32
    %c0_i32_1 = arith.constant 0 : i32
    return %c0_i32, %c0_i32_0 : i32, i32
  }
  func.func @transform_2(%arg0: i32, %arg1: i32) -> (i32, i32) {
    %c0_i32 = arith.constant 0 : i32
    %c0_i32_0 = arith.constant 0 : i32
    %c0_i32_1 = arith.constant 0 : i32
    return %c0_i32, %c0_i32_0 : i32, i32
  }
  func.func @transform_3(%arg0: i32, %arg1: i32) -> (i32, i32) {
    %c0_i32 = arith.constant 0 : i32
    %c0_i32_0 = arith.constant 0 : i32
    return %c0_i32, %arg1 : i32, i32
  }
  func.func @transform_4(%arg0: i32, %arg1: i32) -> (i32, i32) {
    %c0_i32 = arith.constant 0 : i32
    %c0_i32_0 = arith.constant 0 : i32
    return %c0_i32, %arg1 : i32, i32
  }
  func.func @transform_5(%arg0: i32, %arg1: i32) -> (i32, i32, i32) {
    %c0_i32 = arith.constant 0 : i32
    %c0_i32_0 = arith.constant 0 : i32
    return %arg0, %c0_i32, %arg1 : i32, i32, i32
  }
  func.func @transform_6(%arg0: i32, %arg1: i32) -> (i32, i32, i32) {
    %c0_i32 = arith.constant 0 : i32
    %c0_i32_0 = arith.constant 0 : i32
    return %arg0, %c0_i32, %arg1 : i32, i32, i32
  }
}

module attributes {stable_mosaic.version = 11 : i64} {
  func.func @_fused_kernel(%arg0: i32, %arg1: i32, %arg2: memref<1x16x16x4xf32, #tpu.memory_space<vmem>>, %arg3: memref<1x4xf32, #tpu.memory_space<vmem>>, %arg4: memref<1x4xf32, #tpu.memory_space<vmem>>, %arg5: memref<36x4xbf16, #tpu.memory_space<vmem>>, %arg6: memref<1x4xf32, #tpu.memory_space<vmem>>, %arg7: memref<1x256x4xf32, #tpu.memory_space<vmem>>, %arg8: memref<18x18x4xf32, #tpu.memory_space<vmem>>, %arg9: memref<256x36xbf16, #tpu.memory_space<vmem>>) attributes {dimension_semantics = [#tpu.dimension_semantics<parallel>, #tpu.dimension_semantics<arbitrary>], iteration_bounds = array<i64: 2, 1>, scalar_prefetch = 0 : i64, scratch_operands = 2 : i64, tpu.core_type = #tpu.core_type<tc>, window_params = [{transform_indices = @transform_0, window_bounds = array<i64: 1, 16, 16, 4>}, {pipeline_mode = #tpu.pipeline_mode<synchronous>, transform_indices = @transform_1, window_bounds = array<i64: 1, 4>}, {pipeline_mode = #tpu.pipeline_mode<synchronous>, transform_indices = @transform_2, window_bounds = array<i64: 1, 4>}, {transform_indices = @transform_3, window_bounds = array<i64: 36, 4>}, {transform_indices = @transform_4, window_bounds = array<i64: 1, 4>}, {transform_indices = @transform_5, window_bounds = array<i64: 1, 256, 4>}]} {
    %c0_i32 = arith.constant 0 : i32
    %0 = arith.cmpi eq, %arg1, %c0_i32 : i32
    %1 = arith.extui %0 : i1 to i32
    %c0_i32_0 = arith.constant 0 : i32
    %2 = arith.cmpi ne, %1, %c0_i32_0 : i32
    scf.if %2 {
      %cst_9 = arith.constant 0.000000e+00 : f32
      %11 = vector.broadcast %cst_9 : f32 to vector<18x18x4xf32>
      %c0_10 = arith.constant 0 : index
      %c0_11 = arith.constant 0 : index
      %c0_12 = arith.constant 0 : index
      %12 = vector.load %arg8[%c0_10, %c0_11, %c0_12] : memref<18x18x4xf32, #tpu.memory_space<vmem>>, vector<18x18x4xf32>
      tpu.vector_store %arg8[%c0_10, %c0_11, %c0_12], %11 {strides = array<i32>} : memref<18x18x4xf32, #tpu.memory_space<vmem>>, vector<18x18x4xf32>,
      %c0_13 = arith.constant 0 : index
      %c0_14 = arith.constant 0 : index
      %c0_15 = arith.constant 0 : index
      %c0_16 = arith.constant 0 : index
      %13 = vector.load %arg2[%c0_13, %c0_14, %c0_15, %c0_16] : memref<1x16x16x4xf32, #tpu.memory_space<vmem>>, vector<1x16x16x4xf32>
      %14 = vector.shape_cast %13 : vector<1x16x16x4xf32> to vector<16x16x4xf32>
      %c0_17 = arith.constant 0 : index
      %c0_18 = arith.constant 0 : index
      %15 = vector.load %arg3[%c0_17, %c0_18] : memref<1x4xf32, #tpu.memory_space<vmem>>, vector<1x4xf32>
      %16 = vector.shape_cast %15 : vector<1x4xf32> to vector<1x1x4xf32>
      %c0_19 = arith.constant 0 : index
      %c0_20 = arith.constant 0 : index
      %17 = vector.load %arg4[%c0_19, %c0_20] : memref<1x4xf32, #tpu.memory_space<vmem>>, vector<1x4xf32>
      %18 = vector.shape_cast %17 : vector<1x4xf32> to vector<1x1x4xf32>
      %19 = vector.broadcast %16 : vector<1x1x4xf32> to vector<16x16x4xf32>
      %20 = arith.mulf %14, %19 : vector<16x16x4xf32>
      %21 = vector.broadcast %18 : vector<1x1x4xf32> to vector<16x16x4xf32>
      %22 = arith.addf %20, %21 : vector<16x16x4xf32>
      %cst_21 = arith.constant 0.000000e+00 : f32
      %23 = vector.broadcast %cst_21 : f32 to vector<16x16x4xf32>
      %24 = arith.maximumf %22, %23 : vector<16x16x4xf32>
      %c1 = arith.constant 1 : index
      %c1_22 = arith.constant 1 : index
      %c0_23 = arith.constant 0 : index
      %25 = vector.load %arg8[%c1, %c1_22, %c0_23] : memref<18x18x4xf32, #tpu.memory_space<vmem>>, vector<16x16x4xf32>
      tpu.vector_store %arg8[%c1, %c1_22, %c0_23], %24 {strides = array<i32>} : memref<18x18x4xf32, #tpu.memory_space<vmem>>, vector<16x16x4xf32>,
      %c0_24 = arith.constant 0 : index
      %c0_25 = arith.constant 0 : index
      %c0_26 = arith.constant 0 : index
      %26 = vector.load %arg8[%c0_24, %c0_25, %c0_26] : memref<18x18x4xf32, #tpu.memory_space<vmem>>, vector<18x18x4xf32>
      %27 = vector.extract_strided_slice %26 {offsets = [0, 0, 0], sizes = [16, 16, 4], strides = [1, 1, 1]} : vector<18x18x4xf32> to vector<16x16x4xf32>
      %28 = vector.shape_cast %27 : vector<16x16x4xf32> to vector<256x4xf32>
      %29 = arith.truncf %28 : vector<256x4xf32> to vector<256x4xbf16>
      %c0_27 = arith.constant 0 : index
      %c0_28 = arith.constant 0 : index
      %30 = vector.load %arg9[%c0_27, %c0_28] : memref<256x36xbf16, #tpu.memory_space<vmem>>, vector<256x4xbf16>
      tpu.vector_store %arg9[%c0_27, %c0_28], %29 {strides = array<i32>} : memref<256x36xbf16, #tpu.memory_space<vmem>>, vector<256x4xbf16>,
      %31 = vector.extract_strided_slice %26 {offsets = [0, 1, 0], sizes = [16, 16, 4], strides = [1, 1, 1]} : vector<18x18x4xf32> to vector<16x16x4xf32>
      %32 = vector.shape_cast %31 : vector<16x16x4xf32> to vector<256x4xf32>
      %33 = arith.truncf %32 : vector<256x4xf32> to vector<256x4xbf16>
      %c0_29 = arith.constant 0 : index
      %c4 = arith.constant 4 : index
      %34 = vector.load %arg9[%c0_29, %c4] : memref<256x36xbf16, #tpu.memory_space<vmem>>, vector<256x4xbf16>
      tpu.vector_store %arg9[%c0_29, %c4], %33 {strides = array<i32>} : memref<256x36xbf16, #tpu.memory_space<vmem>>, vector<256x4xbf16>,
      %35 = vector.extract_strided_slice %26 {offsets = [0, 2, 0], sizes = [16, 16, 4], strides = [1, 1, 1]} : vector<18x18x4xf32> to vector<16x16x4xf32>
      %36 = vector.shape_cast %35 : vector<16x16x4xf32> to vector<256x4xf32>
      %37 = arith.truncf %36 : vector<256x4xf32> to vector<256x4xbf16>
      %c0_30 = arith.constant 0 : index
      %c8 = arith.constant 8 : index
      %38 = vector.load %arg9[%c0_30, %c8] : memref<256x36xbf16, #tpu.memory_space<vmem>>, vector<256x4xbf16>
      tpu.vector_store %arg9[%c0_30, %c8], %37 {strides = array<i32>} : memref<256x36xbf16, #tpu.memory_space<vmem>>, vector<256x4xbf16>,
      %39 = vector.extract_strided_slice %26 {offsets = [1, 0, 0], sizes = [16, 16, 4], strides = [1, 1, 1]} : vector<18x18x4xf32> to vector<16x16x4xf32>
      %40 = vector.shape_cast %39 : vector<16x16x4xf32> to vector<256x4xf32>
      %41 = arith.truncf %40 : vector<256x4xf32> to vector<256x4xbf16>
      %c0_31 = arith.constant 0 : index
      %c12 = arith.constant 12 : index
      %42 = vector.load %arg9[%c0_31, %c12] : memref<256x36xbf16, #tpu.memory_space<vmem>>, vector<256x4xbf16>
      tpu.vector_store %arg9[%c0_31, %c12], %41 {strides = array<i32>} : memref<256x36xbf16, #tpu.memory_space<vmem>>, vector<256x4xbf16>,
      %43 = vector.extract_strided_slice %26 {offsets = [1, 1, 0], sizes = [16, 16, 4], strides = [1, 1, 1]} : vector<18x18x4xf32> to vector<16x16x4xf32>
      %44 = vector.shape_cast %43 : vector<16x16x4xf32> to vector<256x4xf32>
      %45 = arith.truncf %44 : vector<256x4xf32> to vector<256x4xbf16>
      %c0_32 = arith.constant 0 : index
      %c16 = arith.constant 16 : index
      %46 = vector.load %arg9[%c0_32, %c16] : memref<256x36xbf16, #tpu.memory_space<vmem>>, vector<256x4xbf16>
      tpu.vector_store %arg9[%c0_32, %c16], %45 {strides = array<i32>} : memref<256x36xbf16, #tpu.memory_space<vmem>>, vector<256x4xbf16>,
      %47 = vector.extract_strided_slice %26 {offsets = [1, 2, 0], sizes = [16, 16, 4], strides = [1, 1, 1]} : vector<18x18x4xf32> to vector<16x16x4xf32>
      %48 = vector.shape_cast %47 : vector<16x16x4xf32> to vector<256x4xf32>
      %49 = arith.truncf %48 : vector<256x4xf32> to vector<256x4xbf16>
      %c0_33 = arith.constant 0 : index
      %c20 = arith.constant 20 : index
      %50 = vector.load %arg9[%c0_33, %c20] : memref<256x36xbf16, #tpu.memory_space<vmem>>, vector<256x4xbf16>
      tpu.vector_store %arg9[%c0_33, %c20], %49 {strides = array<i32>} : memref<256x36xbf16, #tpu.memory_space<vmem>>, vector<256x4xbf16>,
      %51 = vector.extract_strided_slice %26 {offsets = [2, 0, 0], sizes = [16, 16, 4], strides = [1, 1, 1]} : vector<18x18x4xf32> to vector<16x16x4xf32>
      %52 = vector.shape_cast %51 : vector<16x16x4xf32> to vector<256x4xf32>
      %53 = arith.truncf %52 : vector<256x4xf32> to vector<256x4xbf16>
      %c0_34 = arith.constant 0 : index
      %c24 = arith.constant 24 : index
      %54 = vector.load %arg9[%c0_34, %c24] : memref<256x36xbf16, #tpu.memory_space<vmem>>, vector<256x4xbf16>
      tpu.vector_store %arg9[%c0_34, %c24], %53 {strides = array<i32>} : memref<256x36xbf16, #tpu.memory_space<vmem>>, vector<256x4xbf16>,
      %55 = vector.extract_strided_slice %26 {offsets = [2, 1, 0], sizes = [16, 16, 4], strides = [1, 1, 1]} : vector<18x18x4xf32> to vector<16x16x4xf32>
      %56 = vector.shape_cast %55 : vector<16x16x4xf32> to vector<256x4xf32>
      %57 = arith.truncf %56 : vector<256x4xf32> to vector<256x4xbf16>
      %c0_35 = arith.constant 0 : index
      %c28 = arith.constant 28 : index
      %58 = vector.load %arg9[%c0_35, %c28] : memref<256x36xbf16, #tpu.memory_space<vmem>>, vector<256x4xbf16>
      tpu.vector_store %arg9[%c0_35, %c28], %57 {strides = array<i32>} : memref<256x36xbf16, #tpu.memory_space<vmem>>, vector<256x4xbf16>,
      %59 = vector.extract_strided_slice %26 {offsets = [2, 2, 0], sizes = [16, 16, 4], strides = [1, 1, 1]} : vector<18x18x4xf32> to vector<16x16x4xf32>
      %60 = vector.shape_cast %59 : vector<16x16x4xf32> to vector<256x4xf32>
      %61 = arith.truncf %60 : vector<256x4xf32> to vector<256x4xbf16>
      %c0_36 = arith.constant 0 : index
      %c32 = arith.constant 32 : index
      %62 = vector.load %arg9[%c0_36, %c32] : memref<256x36xbf16, #tpu.memory_space<vmem>>, vector<256x4xbf16>
      tpu.vector_store %arg9[%c0_36, %c32], %61 {strides = array<i32>} : memref<256x36xbf16, #tpu.memory_space<vmem>>, vector<256x4xbf16>,
    } else {
    }
    %c0 = arith.constant 0 : index
    %c0_1 = arith.constant 0 : index
    %3 = vector.load %arg9[%c0, %c0_1] : memref<256x36xbf16, #tpu.memory_space<vmem>>, vector<256x36xbf16>
    %c0_2 = arith.constant 0 : index
    %c0_3 = arith.constant 0 : index
    %4 = vector.load %arg5[%c0_2, %c0_3] : memref<36x4xbf16, #tpu.memory_space<vmem>>, vector<36x4xbf16>
    %cst = arith.constant dense<0.000000e+00> : vector<256x4xf32>
    %5 = tpu.matmul %3, %4, %cst {dimension_numbers = #tpu.dot_dimension_numbers<[1], [0], [0], [1], [0, 0, 1, 1], [], []>} : vector<256x36xbf16>, vector<36x4xbf16>, vector<256x4xf32> -> vector<256x4xf32>
    %c0_4 = arith.constant 0 : index
    %c0_5 = arith.constant 0 : index
    %6 = vector.load %arg6[%c0_4, %c0_5] : memref<1x4xf32, #tpu.memory_space<vmem>>, vector<1x4xf32>
    %7 = vector.broadcast %6 : vector<1x4xf32> to vector<256x4xf32>
    %8 = arith.addf %5, %7 : vector<256x4xf32>
    %9 = vector.shape_cast %8 : vector<256x4xf32> to vector<1x256x4xf32>
    %c0_6 = arith.constant 0 : index
    %c0_7 = arith.constant 0 : index
    %c0_8 = arith.constant 0 : index
    %10 = vector.load %arg7[%c0_6, %c0_7, %c0_8] : memref<1x256x4xf32, #tpu.memory_space<vmem>>, vector<1x256x4xf32>
    tpu.vector_store %arg7[%c0_6, %c0_7, %c0_8], %9 {strides = array<i32>} : memref<1x256x4xf32, #tpu.memory_space<vmem>>, vector<1x256x4xf32>,
    return
  }
  func.func @transform_0(%arg0: i32, %arg1: i32) -> (i32, i32, i32, i32) {
    %c0_i32 = arith.constant 0 : i32
    %c0_i32_0 = arith.constant 0 : i32
    %c0_i32_1 = arith.constant 0 : i32
    %c0_i32_2 = arith.constant 0 : i32
    return %arg0, %c0_i32, %c0_i32_0, %c0_i32_1 : i32, i32, i32, i32
  }
  func.func @transform_1(%arg0: i32, %arg1: i32) -> (i32, i32) {
    %c0_i32 = arith.constant 0 : i32
    %c0_i32_0 = arith.constant 0 : i32
    %c0_i32_1 = arith.constant 0 : i32
    return %c0_i32, %c0_i32_0 : i32, i32
  }
  func.func @transform_2(%arg0: i32, %arg1: i32) -> (i32, i32) {
    %c0_i32 = arith.constant 0 : i32
    %c0_i32_0 = arith.constant 0 : i32
    %c0_i32_1 = arith.constant 0 : i32
    return %c0_i32, %c0_i32_0 : i32, i32
  }
  func.func @transform_3(%arg0: i32, %arg1: i32) -> (i32, i32) {
    %c0_i32 = arith.constant 0 : i32
    %c0_i32_0 = arith.constant 0 : i32
    return %c0_i32, %arg1 : i32, i32
  }
  func.func @transform_4(%arg0: i32, %arg1: i32) -> (i32, i32) {
    %c0_i32 = arith.constant 0 : i32
    %c0_i32_0 = arith.constant 0 : i32
    return %c0_i32, %arg1 : i32, i32
  }
  func.func @transform_5(%arg0: i32, %arg1: i32) -> (i32, i32, i32) {
    %c0_i32 = arith.constant 0 : i32
    %c0_i32_0 = arith.constant 0 : i32
    return %arg0, %c0_i32, %arg1 : i32, i32, i32
  }
}

</mosaic_0001>

<llo_original>
// kernel: resblock2d_forward.4
$region0: #{resblock2d_forward.4}
  #allocation0 [shape = 'u32[]', space=smem, size = 0x4, offset = 0x4, fixed_abs, tag = 'smem constant byte address 0x4 - core index']
  #allocation1 [shape = 'u32[144,128]{1,0:T(1,128)}', space=vmem, size = 0x12000, scoped, tag = 'internal scratch']
  #allocation2 [shape = 'f32[1,4]{1,0:T(1,128)}', space=vmem, size = 0x200, scoped, tag = 'scratch operand']
  #allocation3 [shape = 'f32[1,4]{1,0:T(1,128)}', space=vmem, size = 0x200, scoped, tag = 'scratch operand']
  %s0 = inlined_call_operand.vmem [shape: f32[512,4], index: 0, kind: input, shape index: {}]
  %s1 = inlined_call_operand.vmem [shape: f32[1,4], index: 1, kind: output, shape index: {0}]
  %s2 = inlined_call_operand.vmem [shape: f32[1,4], index: 2, kind: output, shape index: {1}]
  %3 = xla_tuple %s1, %s2
  %s4 = sld [smem:[#allocation0]]
  $region30: #{resblock2d_forward.4} parent=0
    _
  %s6 = ssub.s32 1, %s4
  %s7 = scalar_select 0, %s6, %s4
  // Predicated region
  $region2: #{resblock2d_forward.4} parent=0 // pred_check
    _
  $region3: #{resblock2d_forward.4} parent=0 // pred_check_branch
    %9 = sbr.rel (0) target = $region5
  $region4: #{resblock2d_forward.4} parent=0 // pred_region
    _
  $region5: #{resblock2d_forward.4} parent=0 // pred_fallthru
    _
  %p10 = scmp.eq.s32.totalorder 0, 0
  // Predicated region
  $region6: #{resblock2d_forward.4} parent=0 // pred_check
    %p11 = pneg %p10
  $region7: #{resblock2d_forward.4} parent=0 // pred_check_branch
    %13 = sbr.rel (%p11) target = $region9
  $region8: #{resblock2d_forward.4} parent=0 // pred_region
    %vm14 = vcmask 24576
    %15 = vst.msk [vmem:[#allocation2] sm:$0x1] %vm14, 0.0
    %16 = vst.msk [vmem:[#allocation3] sm:$0x1] %vm14, 0.0
  $region9: #{resblock2d_forward.4} parent=0 // pred_fallthru
    _
  %v17 = vld [vmem:[%s0] sm:$0xff]
  %v18 = vld [vmem:[%s0 + $0x8] sm:$0xff]
  %v19 = vld [vmem:[%s0 + $0x10] sm:$0xff]
  %v20 = vld [vmem:[%s0 + $0x18] sm:$0xff]
  %v21 = vld [vmem:[%s0 + $0x20] sm:$0xff]
  %v22 = vld [vmem:[%s0 + $0x28] sm:$0xff]
  %v23 = vld [vmem:[%s0 + $0x30] sm:$0xff]
  %v24 = vld [vmem:[%s0 + $0x38] sm:$0xff]
  %v25 = vld [vmem:[%s0 + $0x40] sm:$0xff]
  %v26 = vld [vmem:[%s0 + $0x48] sm:$0xff]
  %v27 = vld [vmem:[%s0 + $0x50] sm:$0xff]
  %v28 = vld [vmem:[%s0 + $0x58] sm:$0xff]
  %v29 = vld [vmem:[%s0 + $0x60] sm:$0xff]
  %v30 = vld [vmem:[%s0 + $0x68] sm:$0xff]
  %v31 = vld [vmem:[%s0 + $0x70] sm:$0xff]
  %v32 = vld [vmem:[%s0 + $0x78] sm:$0xff]
  %v33 = vld [vmem:[%s0 + $0x80] sm:$0xff]
  %v34 = vld [vmem:[%s0 + $0x88] sm:$0xff]
  %v35 = vld [vmem:[%s0 + $0x90] sm:$0xff]
  %v36 = vld [vmem:[%s0 + $0x98] sm:$0xff]
  %v37 = vld [vmem:[%s0 + $0xa0] sm:$0xff]
  %v38 = vld [vmem:[%s0 + $0xa8] sm:$0xff]
  %v39 = vld [vmem:[%s0 + $0xb0] sm:$0xff]
  %v40 = vld [vmem:[%s0 + $0xb8] sm:$0xff]
  %v41 = vld [vmem:[%s0 + $0xc0] sm:$0xff]
  %v42 = vld [vmem:[%s0 + $0xc8] sm:$0xff]
  %v43 = vld [vmem:[%s0 + $0xd0] sm:$0xff]
  %v44 = vld [vmem:[%s0 + $0xd8] sm:$0xff]
  %v45 = vld [vmem:[%s0 + $0xe0] sm:$0xff]
  %v46 = vld [vmem:[%s0 + $0xe8] sm:$0xff]
  %v47 = vld [vmem:[%s0 + $0xf0] sm:$0xff]
  %v48 = vld [vmem:[%s0 + $0xf8] sm:$0xff]
  %v49 = vld [vmem:[%s0 + $0x100] sm:$0xff]
  %v50 = vld [vmem:[%s0 + $0x108] sm:$0xff]
  %v51 = vld [vmem:[%s0 + $0x110] sm:$0xff]
  %v52 = vld [vmem:[%s0 + $0x118] sm:$0xff]
  %v53 = vld [vmem:[%s0 + $0x120] sm:$0xff]
  %v54 = vld [vmem:[%s0 + $0x128] sm:$0xff]
  %v55 = vld [vmem:[%s0 + $0x130] sm:$0xff]
  %v56 = vld [vmem:[%s0 + $0x138] sm:$0xff]
  %v57 = vld [vmem:[%s0 + $0x140] sm:$0xff]
  %v58 = vld [vmem:[%s0 + $0x148] sm:$0xff]
  %v59 = vld [vmem:[%s0 + $0x150] sm:$0xff]
  %v60 = vld [vmem:[%s0 + $0x158] sm:$0xff]
  %v61 = vld [vmem:[%s0 + $0x160] sm:$0xff]
  %v62 = vld [vmem:[%s0 + $0x168] sm:$0xff]
  %v63 = vld [vmem:[%s0 + $0x170] sm:$0xff]
  %v64 = vld [vmem:[%s0 + $0x178] sm:$0xff]
  %v65 = vld [vmem:[%s0 + $0x180] sm:$0xff]
  %v66 = vld [vmem:[%s0 + $0x188] sm:$0xff]
  %v67 = vld [vmem:[%s0 + $0x190] sm:$0xff]
  %v68 = vld [vmem:[%s0 + $0x198] sm:$0xff]
  %v69 = vld [vmem:[%s0 + $0x1a0] sm:$0xff]
  %v70 = vld [vmem:[%s0 + $0x1a8] sm:$0xff]
  %v71 = vld [vmem:[%s0 + $0x1b0] sm:$0xff]
  %v72 = vld [vmem:[%s0 + $0x1b8] sm:$0xff]
  %v73 = vld [vmem:[%s0 + $0x1c0] sm:$0xff]
  %v74 = vld [vmem:[%s0 + $0x1c8] sm:$0xff]
  %v75 = vld [vmem:[%s0 + $0x1d0] sm:$0xff]
  %v76 = vld [vmem:[%s0 + $0x1d8] sm:$0xff]
  %v77 = vld [vmem:[%s0 + $0x1e0] sm:$0xff]
  %v78 = vld [vmem:[%s0 + $0x1e8] sm:$0xff]
  %v79 = vld [vmem:[%s0 + $0x1f0] sm:$0xff]
  %v80 = vld [vmem:[%s0 + $0x1f8] sm:$0xff]
  %v81 = vld [vmem:[#allocation2] sm:$0x1]
  %vm82 = vcmask 31744
  %v83 = vsel %vm82, %v17, 0.0
  %v84 = vsel %vm82, %v18, 0.0
  %v85 = vadd.f32 %v83, %v84
  %v86 = vsel %vm82, %v19, 0.0
  %v87 = vadd.f32 %v85, %v86
  %v88 = vsel %vm82, %v20, 0.0
  %v89 = vadd.f32 %v87, %v88
  %v90 = vsel %vm82, %v21, 0.0
  %v91 = vadd.f32 %v89, %v90
  %v92 = vsel %vm82, %v22, 0.0
  %v93 = vadd.f32 %v91, %v92
  %v94 = vsel %vm82, %v23, 0.0
  %v95 = vadd.f32 %v93, %v94
  %v96 = vsel %vm82, %v24, 0.0
  %v97 = vadd.f32 %v95, %v96
  %v98 = vsel %vm82, %v25, 0.0
  %v99 = vadd.f32 %v97, %v98
  %v100 = vsel %vm82, %v26, 0.0
  %v101 = vadd.f32 %v99, %v100
  %v102 = vsel %vm82, %v27, 0.0
  %v103 = vadd.f32 %v101, %v102
  %v104 = vsel %vm82, %v28, 0.0
  %v105 = vadd.f32 %v103, %v104
  %v106 = vsel %vm82, %v29, 0.0
  %v107 = vadd.f32 %v105, %v106
  %v108 = vsel %vm82, %v30, 0.0
  %v109 = vadd.f32 %v107, %v108
  %v110 = vsel %vm82, %v31, 0.0
  %v111 = vadd.f32 %v109, %v110
  %v112 = vsel %vm82, %v32, 0.0
  %v113 = vadd.f32 %v111, %v112
  %v114 = vsel %vm82, %v33, 0.0
  %v115 = vadd.f32 %v113, %v114
  %v116 = vsel %vm82, %v34, 0.0
  %v117 = vadd.f32 %v115, %v116
  %v118 = vsel %vm82, %v35, 0.0
  %v119 = vadd.f32 %v117, %v118
  %v120 = vsel %vm82, %v36, 0.0
  %v121 = vadd.f32 %v119, %v120
  %v122 = vsel %vm82, %v37, 0.0
  %v123 = vadd.f32 %v121, %v122
  %v124 = vsel %vm82, %v38, 0.0
  %v125 = vadd.f32 %v123, %v124
  %v126 = vsel %vm82, %v39, 0.0
  %v127 = vadd.f32 %v125, %v126
  %v128 = vsel %vm82, %v40, 0.0
  %v129 = vadd.f32 %v127, %v128
  %v130 = vsel %vm82, %v41, 0.0
  %v131 = vadd.f32 %v129, %v130
  %v132 = vsel %vm82, %v42, 0.0
  %v133 = vadd.f32 %v131, %v132
  %v134 = vsel %vm82, %v43, 0.0
  %v135 = vadd.f32 %v133, %v134
  %v136 = vsel %vm82, %v44, 0.0
  %v137 = vadd.f32 %v135, %v136
  %v138 = vsel %vm82, %v45, 0.0
  %v139 = vadd.f32 %v137, %v138
  %v140 = vsel %vm82, %v46, 0.0
  %v141 = vadd.f32 %v139, %v140
  %v142 = vsel %vm82, %v47, 0.0
  %v143 = vadd.f32 %v141, %v142
  %v144 = vsel %vm82, %v48, 0.0
  %v145 = vadd.f32 %v143, %v144
  %v146 = vsel %vm82, %v49, 0.0
  %v147 = vadd.f32 %v145, %v146
  %v148 = vsel %vm82, %v50, 0.0
  %v149 = vadd.f32 %v147, %v148
  %v150 = vsel %vm82, %v51, 0.0
  %v151 = vadd.f32 %v149, %v150
  %v152 = vsel %vm82, %v52, 0.0
  %v153 = vadd.f32 %v151, %v152
  %v154 = vsel %vm82, %v53, 0.0
  %v155 = vadd.f32 %v153, %v154
  %v156 = vsel %vm82, %v54, 0.0
  %v157 = vadd.f32 %v155, %v156
  %v158 = vsel %vm82, %v55, 0.0
  %v159 = vadd.f32 %v157, %v158
  %v160 = vsel %vm82, %v56, 0.0
  %v161 = vadd.f32 %v159, %v160
  %v162 = vsel %vm82, %v57, 0.0
  %v163 = vadd.f32 %v161, %v162
  %v164 = vsel %vm82, %v58, 0.0
  %v165 = vadd.f32 %v163, %v164
  %v166 = vsel %vm82, %v59, 0.0
  %v167 = vadd.f32 %v165, %v166
  %v168 = vsel %vm82, %v60, 0.0
  %v169 = vadd.f32 %v167, %v168
  %v170 = vsel %vm82, %v61, 0.0
  %v171 = vadd.f32 %v169, %v170
  %v172 = vsel %vm82, %v62, 0.0
  %v173 = vadd.f32 %v171, %v172
  %v174 = vsel %vm82, %v63, 0.0
  %v175 = vadd.f32 %v173, %v174
  %v176 = vsel %vm82, %v64, 0.0
  %v177 = vadd.f32 %v175, %v176
  %v178 = vsel %vm82, %v65, 0.0
  %v179 = vadd.f32 %v177, %v178
  %v180 = vsel %vm82, %v66, 0.0
  %v181 = vadd.f32 %v179, %v180
  %v182 = vsel %vm82, %v67, 0.0
  %v183 = vadd.f32 %v181, %v182
  %v184 = vsel %vm82, %v68, 0.0
  %v185 = vadd.f32 %v183, %v184
  %v186 = vsel %vm82, %v69, 0.0
  %v187 = vadd.f32 %v185, %v186
  %v188 = vsel %vm82, %v70, 0.0
  %v189 = vadd.f32 %v187, %v188
  %v190 = vsel %vm82, %v71, 0.0
  %v191 = vadd.f32 %v189, %v190
  %v192 = vsel %vm82, %v72, 0.0
  %v193 = vadd.f32 %v191, %v192
  %v194 = vsel %vm82, %v73, 0.0
  %v195 = vadd.f32 %v193, %v194
  %v196 = vsel %vm82, %v74, 0.0
  %v197 = vadd.f32 %v195, %v196
  %v198 = vsel %vm82, %v75, 0.0
  %v199 = vadd.f32 %v197, %v198
  %v200 = vsel %vm82, %v76, 0.0
  %v201 = vadd.f32 %v199, %v200
  %v202 = vsel %vm82, %v77, 0.0
  %v203 = vadd.f32 %v201, %v202
  %v204 = vsel %vm82, %v78, 0.0
  %v205 = vadd.f32 %v203, %v204
  %v206 = vsel %vm82, %v79, 0.0
  %v207 = vadd.f32 %v205, %v206
  %v208 = vsel %vm82, %v80, 0.0
  %v209 = vadd.f32 %v207, %v208
  %v210 = vrot.slane %v209, 4
  %v211 = vadd.f32 %v209, %v210
  %v212 = vrot.slane %v211, 2
  %v213 = vadd.f32 %v211, %v212
  %v214 = vrot.slane %v213, 1
  %v215 = vadd.f32 %v213, %v214
  %v216 = vadd.f32 %v81, %v215
  %vm217 = vcmask 24576
  %218 = vst.msk [vmem:[#allocation2] sm:$0x1] %vm217, %v216
  %v219 = vld [vmem:[#allocation3] sm:$0x1]
  %v220 = vmul.f32 %v17, %v17
  %v221 = vmul.f32 %v18, %v18
  %v222 = vmul.f32 %v19, %v19
  %v223 = vmul.f32 %v20, %v20
  %v224 = vmul.f32 %v21, %v21
  %v225 = vmul.f32 %v22, %v22
  %v226 = vmul.f32 %v23, %v23
  %v227 = vmul.f32 %v24, %v24
  %v228 = vmul.f32 %v25, %v25
  %v229 = vmul.f32 %v26, %v26
  %v230 = vmul.f32 %v27, %v27
  %v231 = vmul.f32 %v28, %v28
  %v232 = vmul.f32 %v29, %v29
  %v233 = vmul.f32 %v30, %v30
  %v234 = vmul.f32 %v31, %v31
  %v235 = vmul.f32 %v32, %v32
  %v236 = vmul.f32 %v33, %v33
  %v237 = vmul.f32 %v34, %v34
  %v238 = vmul.f32 %v35, %v35
  %v239 = vmul.f32 %v36, %v36
  %v240 = vmul.f32 %v37, %v37
  %v241 = vmul.f32 %v38, %v38
  %v242 = vmul.f32 %v39, %v39
  %v243 = vmul.f32 %v40, %v40
  %v244 = vmul.f32 %v41, %v41
  %v245 = vmul.f32 %v42, %v42
  %v246 = vmul.f32 %v43, %v43
  %v247 = vmul.f32 %v44, %v44
  %v248 = vmul.f32 %v45, %v45
  %v249 = vmul.f32 %v46, %v46
  %v250 = vmul.f32 %v47, %v47
  %v251 = vmul.f32 %v48, %v48
  %v252 = vmul.f32 %v49, %v49
  %v253 = vmul.f32 %v50, %v50
  %v254 = vmul.f32 %v51, %v51
  %v255 = vmul.f32 %v52, %v52
  %v256 = vmul.f32 %v53, %v53
  %v257 = vmul.f32 %v54, %v54
  %v258 = vmul.f32 %v55, %v55
  %v259 = vmul.f32 %v56, %v56
  %v260 = vmul.f32 %v57, %v57
  %v261 = vmul.f32 %v58, %v58
  %v262 = vmul.f32 %v59, %v59
  %v263 = vmul.f32 %v60, %v60
  %v264 = vmul.f32 %v61, %v61
  %v265 = vmul.f32 %v62, %v62
  %v266 = vmul.f32 %v63, %v63
  %v267 = vmul.f32 %v64, %v64
  %v268 = vmul.f32 %v65, %v65
  %v269 = vmul.f32 %v66, %v66
  %v270 = vmul.f32 %v67, %v67
  %v271 = vmul.f32 %v68, %v68
  %v272 = vmul.f32 %v69, %v69
  %v273 = vmul.f32 %v70, %v70
  %v274 = vmul.f32 %v71, %v71
  %v275 = vmul.f32 %v72, %v72
  %v276 = vmul.f32 %v73, %v73
  %v277 = vmul.f32 %v74, %v74
  %v278 = vmul.f32 %v75, %v75
  %v279 = vmul.f32 %v76, %v76
  %v280 = vmul.f32 %v77, %v77
  %v281 = vmul.f32 %v78, %v78
  %v282 = vmul.f32 %v79, %v79
  %v283 = vmul.f32 %v80, %v80
  %v284 = vsel %vm82, %v220, 0.0
  %v285 = vsel %vm82, %v221, 0.0
  %v286 = vadd.f32 %v284, %v285
  %v287 = vsel %vm82, %v222, 0.0
  %v288 = vadd.f32 %v286, %v287
  %v289 = vsel %vm82, %v223, 0.0
  %v290 = vadd.f32 %v288, %v289
  %v291 = vsel %vm82, %v224, 0.0
  %v292 = vadd.f32 %v290, %v291
  %v293 = vsel %vm82, %v225, 0.0
  %v294 = vadd.f32 %v292, %v293
  %v295 = vsel %vm82, %v226, 0.0
  %v296 = vadd.f32 %v294, %v295
  %v297 = vsel %vm82, %v227, 0.0
  %v298 = vadd.f32 %v296, %v297
  %v299 = vsel %vm82, %v228, 0.0
  %v300 = vadd.f32 %v298, %v299
  %v301 = vsel %vm82, %v229, 0.0
  %v302 = vadd.f32 %v300, %v301
  %v303 = vsel %vm82, %v230, 0.0
  %v304 = vadd.f32 %v302, %v303
  %v305 = vsel %vm82, %v231, 0.0
  %v306 = vadd.f32 %v304, %v305
  %v307 = vsel %vm82, %v232, 0.0
  %v308 = vadd.f32 %v306, %v307
  %v309 = vsel %vm82, %v233, 0.0
  %v310 = vadd.f32 %v308, %v309
  %v311 = vsel %vm82, %v234, 0.0
  %v312 = vadd.f32 %v310, %v311
  %v313 = vsel %vm82, %v235, 0.0
  %v314 = vadd.f32 %v312, %v313
  %v315 = vsel %vm82, %v236, 0.0
  %v316 = vadd.f32 %v314, %v315
  %v317 = vsel %vm82, %v237, 0.0
  %v318 = vadd.f32 %v316, %v317
  %v319 = vsel %vm82, %v238, 0.0
  %v320 = vadd.f32 %v318, %v319
  %v321 = vsel %vm82, %v239, 0.0
  %v322 = vadd.f32 %v320, %v321
  %v323 = vsel %vm82, %v240, 0.0
  %v324 = vadd.f32 %v322, %v323
  %v325 = vsel %vm82, %v241, 0.0
  %v326 = vadd.f32 %v324, %v325
  %v327 = vsel %vm82, %v242, 0.0
  %v328 = vadd.f32 %v326, %v327
  %v329 = vsel %vm82, %v243, 0.0
  %v330 = vadd.f32 %v328, %v329
  %v331 = vsel %vm82, %v244, 0.0
  %v332 = vadd.f32 %v330, %v331
  %v333 = vsel %vm82, %v245, 0.0
  %v334 = vadd.f32 %v332, %v333
  %v335 = vsel %vm82, %v246, 0.0
  %v336 = vadd.f32 %v334, %v335
  %v337 = vsel %vm82, %v247, 0.0
  %v338 = vadd.f32 %v336, %v337
  %v339 = vsel %vm82, %v248, 0.0
  %v340 = vadd.f32 %v338, %v339
  %v341 = vsel %vm82, %v249, 0.0
  %v342 = vadd.f32 %v340, %v341
  %v343 = vsel %vm82, %v250, 0.0
  %v344 = vadd.f32 %v342, %v343
  %v345 = vsel %vm82, %v251, 0.0
  %v346 = vadd.f32 %v344, %v345
  %v347 = vsel %vm82, %v252, 0.0
  %v348 = vadd.f32 %v346, %v347
  %v349 = vsel %vm82, %v253, 0.0
  %v350 = vadd.f32 %v348, %v349
  %v351 = vsel %vm82, %v254, 0.0
  %v352 = vadd.f32 %v350, %v351
  %v353 = vsel %vm82, %v255, 0.0
  %v354 = vadd.f32 %v352, %v353
  %v355 = vsel %vm82, %v256, 0.0
  %v356 = vadd.f32 %v354, %v355
  %v357 = vsel %vm82, %v257, 0.0
  %v358 = vadd.f32 %v356, %v357
  %v359 = vsel %vm82, %v258, 0.0
  %v360 = vadd.f32 %v358, %v359
  %v361 = vsel %vm82, %v259, 0.0
  %v362 = vadd.f32 %v360, %v361
  %v363 = vsel %vm82, %v260, 0.0
  %v364 = vadd.f32 %v362, %v363
  %v365 = vsel %vm82, %v261, 0.0
  %v366 = vadd.f32 %v364, %v365
  %v367 = vsel %vm82, %v262, 0.0
  %v368 = vadd.f32 %v366, %v367
  %v369 = vsel %vm82, %v263, 0.0
  %v370 = vadd.f32 %v368, %v369
  %v371 = vsel %vm82, %v264, 0.0
  %v372 = vadd.f32 %v370, %v371
  %v373 = vsel %vm82, %v265, 0.0
  %v374 = vadd.f32 %v372, %v373
  %v375 = vsel %vm82, %v266, 0.0
  %v376 = vadd.f32 %v374, %v375
  %v377 = vsel %vm82, %v267, 0.0
  %v378 = vadd.f32 %v376, %v377
  %v379 = vsel %vm82, %v268, 0.0
  %v380 = vadd.f32 %v378, %v379
  %v381 = vsel %vm82, %v269, 0.0
  %v382 = vadd.f32 %v380, %v381
  %v383 = vsel %vm82, %v270, 0.0
  %v384 = vadd.f32 %v382, %v383
  %v385 = vsel %vm82, %v271, 0.0
  %v386 = vadd.f32 %v384, %v385
  %v387 = vsel %vm82, %v272, 0.0
  %v388 = vadd.f32 %v386, %v387
  %v389 = vsel %vm82, %v273, 0.0
  %v390 = vadd.f32 %v388, %v389
  %v391 = vsel %vm82, %v274, 0.0
  %v392 = vadd.f32 %v390, %v391
  %v393 = vsel %vm82, %v275, 0.0
  %v394 = vadd.f32 %v392, %v393
  %v395 = vsel %vm82, %v276, 0.0
  %v396 = vadd.f32 %v394, %v395
  %v397 = vsel %vm82, %v277, 0.0
  %v398 = vadd.f32 %v396, %v397
  %v399 = vsel %vm82, %v278, 0.0
  %v400 = vadd.f32 %v398, %v399
  %v401 = vsel %vm82, %v279, 0.0
  %v402 = vadd.f32 %v400, %v401
  %v403 = vsel %vm82, %v280, 0.0
  %v404 = vadd.f32 %v402, %v403
  %v405 = vsel %vm82, %v281, 0.0
  %v406 = vadd.f32 %v404, %v405
  %v407 = vsel %vm82, %v282, 0.0
  %v408 = vadd.f32 %v406, %v407
  %v409 = vsel %vm82, %v283, 0.0
  %v410 = vadd.f32 %v408, %v409
  %v411 = vrot.slane %v410, 4
  %v412 = vadd.f32 %v410, %v411
  %v413 = vrot.slane %v412, 2
  %v414 = vadd.f32 %v412, %v413
  %v415 = vrot.slane %v414, 1
  %v416 = vadd.f32 %v414, %v415
  %v417 = vadd.f32 %v219, %v416
  %418 = vst.msk [vmem:[#allocation3] sm:$0x1] %vm217, %v417
  // Predicated region
  $region10: #{resblock2d_forward.4} parent=0 // pred_check
    %p419 = pneg %p10
  $region11: #{resblock2d_forward.4} parent=0 // pred_check_branch
    %421 = sbr.rel (%p419) target = $region13
  $region12: #{resblock2d_forward.4} parent=0 // pred_region
    %v422 = vld [vmem:[#allocation2] sm:$0x1]
    %v423 = vmul.f32 %v422, 0.001953125
    %v424 = vld [vmem:[#allocation3] sm:$0x1]
    %v425 = vmul.f32 %v424, 0.001953125
    %v426 = vmul.f32 %v423, %v423
    %v427 = vsub.f32 %v425, %v426
    %v428 = vmax.f32 %v427, 0.0
    %429 = vst.msk [vmem:[%s1] sm:$0x1] %vm217, %v423
    %430 = vst.msk [vmem:[%s2] sm:$0x1] %vm217, %v428
  $region13: #{resblock2d_forward.4} parent=0 // pred_fallthru
    _
  // Predicated region
  $region14: #{resblock2d_forward.4} parent=0 // pred_check
    _
  $region15: #{resblock2d_forward.4} parent=0 // pred_check_branch
    %432 = sbr.rel (0) target = $region17
  $region16: #{resblock2d_forward.4} parent=0 // pred_region
    _
  $region17: #{resblock2d_forward.4} parent=0 // pred_fallthru
    _
  // Predicated region
  $region18: #{resblock2d_forward.4} parent=0 // pred_check
    _
  $region19: #{resblock2d_forward.4} parent=0 // pred_check_branch
    %434 = sbr.rel (0) target = $region21
  $region20: #{resblock2d_forward.4} parent=0 // pred_region
    _
  $region21: #{resblock2d_forward.4} parent=0 // pred_fallthru
    _
  // Predicated region
  $region22: #{resblock2d_forward.4} parent=0 // pred_check
    _
  $region23: #{resblock2d_forward.4} parent=0 // pred_check_branch
    %436 = sbr.rel (0) target = $region25
  $region24: #{resblock2d_forward.4} parent=0 // pred_region
    _
  $region25: #{resblock2d_forward.4} parent=0 // pred_fallthru
    _
  // Predicated region
  $region26: #{resblock2d_forward.4} parent=0 // pred_check
    _
  $region27: #{resblock2d_forward.4} parent=0 // pred_check_branch
    %438 = sbr.rel (0) target = $region29
  $region28: #{resblock2d_forward.4} parent=0 // pred_region
    _
  $region29: #{resblock2d_forward.4} parent=0 // pred_fallthru
    _

// kernel: resblock2d_forward.5
$region0: #{resblock2d_forward.5}
  #allocation0 [shape = 'u32[]', space=smem, size = 0x4, offset = 0x4, fixed_abs, tag = 'smem constant byte address 0x4 - core index']
  #allocation1 [shape = 'u32[144,128]{1,0:T(1,128)}', space=vmem, size = 0x12000, scoped, tag = 'internal scratch']
  #allocation2 [shape = 'f32[18,18,4]{2,1,0:T(8,128)}', space=vmem, size = 0x36000, scoped, tag = 'scratch operand']
  #allocation3 [shape = 'bf16[256,36]{1,0:T(16,128)(2,1)}', space=vmem, size = 0x10000, scoped, tag = 'scratch operand']
  %s0 = inlined_call_operand.vmem [shape: f32[2,16,16,4], index: 0, kind: input, shape index: {}]
  %s1 = inlined_call_operand.vmem [shape: f32[1,4], index: 1, kind: input, shape index: {}]
  %s2 = inlined_call_operand.vmem [shape: f32[1,4], index: 2, kind: input, shape index: {}]
  %s3 = inlined_call_operand.vmem [shape: bf16[36,4], index: 3, kind: input, shape index: {}]
  %s4 = inlined_call_operand.vmem [shape: f32[1,4], index: 4, kind: input, shape index: {}]
  %s5 = inlined_call_operand.vmem [shape: f32[2,256,4], index: 5, kind: output, shape index: {}]
  %s6 = sld [smem:[#allocation0]]
  $region57: #{resblock2d_forward.5} parent=0
    _
  %s8 = ssub.s32 1, %s6
  %s9 = scalar_select 0, %s8, %s6
  loop: start=0, step=1, limit=4
  $region2: #{resblock2d_forward.5} parent=0 // loop_pre_header
    _
  $region3: #{resblock2d_forward.5} parent=0 // loop_header
    %s11 = sphi 0, %s15
    %p12 = scmp.ge.s32.totalorder %s11, 4
    %s18 = sphi 0, %s30
    %s19 = sphi 0, %s26
    %s20 = sphi 0, %s18
    %s21 = sphi 0, %s19
    %s22 = sphi 0, %s20
    %s23 = sphi 0, %s21
    %s33 = sphi 0, %s35
    %s36 = sphi 0, %s33
    %s37 = sphi 0, %s36
    %s53 = sphi 0, %s37
    %s57 = sphi 0, %s57
    %s59 = sphi 0, %s57
    %s60 = sphi 0, %s59
    %s74 = sphi 0, %s60
    %s78 = sphi 0, %s78
    %s80 = sphi 0, %s78
    %s81 = sphi 0, %s80
    %s95 = sphi 0, %s81
    %s101 = sphi 0, %s103
    %s104 = sphi 0, %s101
    %s105 = sphi 0, %s104
    %s121 = sphi 0, %s105
    %s127 = sphi 0, %s129
    %s130 = sphi 0, %s127
    %s131 = sphi 0, %s130
    %s147 = sphi 0, %s131
    %s155 = sphi 0, %s157
    %s158 = sphi 0, %s155
    %s159 = sphi 0, %s158
    %s175 = sphi 0, %s159
  $region4: #{resblock2d_forward.5} parent=0 // loop_header_branch
    %14 = sbr.rel (%p12) target = $region8
  $region5: #{resblock2d_forward.5} parent=0 // loop_body
    %s16 = ssub.s32 %s11, 1
    %s17 = ssub.s32 %s11, 2
    %s24 = sadd.s32 1, %s19
    %p25 = scmp.ge.s32.totalorder %s24, 1
    %s26 = scalar_select %p25, 0, %s24
    %s27 = sadd.s32 1, %s18
    %s28 = scalar_select %p25, %s27, %s18
    %p29 = scmp.ge.s32.totalorder %s28, 2
    %s30 = scalar_select %p29, 0, %s28
    %s31 = ssub.s32 %s18, %s30
    %p32 = scmp.eq.s32.totalorder %s31, 0
    %s34 = sadd.s32 %s33, 1
    %s35 = scalar_select %p32, %s33, %s34
    %p38 = pneg %p32
    %p39 = scmp.eq.s32.totalorder %s11, 1
    %p40 = por %p38, %p39
    %p41 = scmp.ne.s32.totalorder %s33, %s36
    %p42 = scmp.eq.s32.totalorder %s11, 0
    %p43 = por %p41, %p42
    %p44 = scmp.ne.s32.totalorder %s33, %s36
    %p45 = scmp.eq.s32.totalorder %s16, 1
    %p46 = por %p44, %p45
    %p47 = scmp.ne.s32.totalorder %s36, %s37
    %p48 = scmp.eq.s32.totalorder %s16, 0
    %p49 = por %p47, %p48
    %p50 = scmp.ne.s32.totalorder %s36, %s37
    %p51 = scmp.eq.s32.totalorder %s17, 1
    %p52 = por %p50, %p51
    %p54 = scmp.ne.s32.totalorder %s37, %s53
    %p55 = scmp.eq.s32.totalorder %s17, 0
    %p56 = por %p54, %p55
    %s58 = sadd.s32 %s57, 1
    %p61 = scmp.eq.s32.totalorder %s11, 1
    %p62 = scmp.ne.s32.totalorder %s57, %s59
    %p63 = scmp.eq.s32.totalorder %s11, 0
    %p64 = por %p62, %p63
    %p65 = scmp.ne.s32.totalorder %s57, %s59
    %p66 = scmp.eq.s32.totalorder %s16, 1
    %p67 = por %p65, %p66
    %p68 = scmp.ne.s32.totalorder %s59, %s60
    %p69 = scmp.eq.s32.totalorder %s16, 0
    %p70 = por %p68, %p69
    %p71 = scmp.ne.s32.totalorder %s59, %s60
    %p72 = scmp.eq.s32.totalorder %s17, 1
    %p73 = por %p71, %p72
    %p75 = scmp.ne.s32.totalorder %s60, %s74
    %p76 = scmp.eq.s32.totalorder %s17, 0
    %p77 = por %p75, %p76
    %s79 = sadd.s32 %s78, 1
    %p82 = scmp.eq.s32.totalorder %s11, 1
    %p83 = scmp.ne.s32.totalorder %s78, %s80
    %p84 = scmp.eq.s32.totalorder %s11, 0
    %p85 = por %p83, %p84
    %p86 = scmp.ne.s32.totalorder %s78, %s80
    %p87 = scmp.eq.s32.totalorder %s16, 1
    %p88 = por %p86, %p87
    %p89 = scmp.ne.s32.totalorder %s80, %s81
    %p90 = scmp.eq.s32.totalorder %s16, 0
    %p91 = por %p89, %p90
    %p92 = scmp.ne.s32.totalorder %s80, %s81
    %p93 = scmp.eq.s32.totalorder %s17, 1
    %p94 = por %p92, %p93
    %p96 = scmp.ne.s32.totalorder %s81, %s95
    %p97 = scmp.eq.s32.totalorder %s17, 0
    %p98 = por %p96, %p97
    %s99 = ssub.s32 %s19, %s26
    %p100 = scmp.eq.s32.totalorder %s99, 0
    %s102 = sadd.s32 %s101, 1
    %s103 = scalar_select %p100, %s101, %s102
    %p106 = pneg %p100
    %p107 = scmp.eq.s32.totalorder %s11, 1
    %p108 = por %p106, %p107
    %p109 = scmp.ne.s32.totalorder %s101, %s104
    %p110 = scmp.eq.s32.totalorder %s11, 0
    %p111 = por %p109, %p110
    %p112 = scmp.ne.s32.totalorder %s101, %s104
    %p113 = scmp.eq.s32.totalorder %s16, 1
    %p114 = por %p112, %p113
    %p115 = scmp.ne.s32.totalorder %s104, %s105
    %p116 = scmp.eq.s32.totalorder %s16, 0
    %p117 = por %p115, %p116
    %p118 = scmp.ne.s32.totalorder %s104, %s105
    %p119 = scmp.eq.s32.totalorder %s17, 1
    %p120 = por %p118, %p119
    %p122 = scmp.ne.s32.totalorder %s105, %s121
    %p123 = scmp.eq.s32.totalorder %s17, 0
    %p124 = por %p122, %p123
    %s125 = ssub.s32 %s19, %s26
    %p126 = scmp.eq.s32.totalorder %s125, 0
    %s128 = sadd.s32 %s127, 1
    %s129 = scalar_select %p126, %s127, %s128
    %p132 = pneg %p126
    %p133 = scmp.eq.s32.totalorder %s11, 1
    %p134 = por %p132, %p133
    %p135 = scmp.ne.s32.totalorder %s127, %s130
    %p136 = scmp.eq.s32.totalorder %s11, 0
    %p137 = por %p135, %p136
    %p138 = scmp.ne.s32.totalorder %s127, %s130
    %p139 = scmp.eq.s32.totalorder %s16, 1
    %p140 = por %p138, %p139
    %p141 = scmp.ne.s32.totalorder %s130, %s131
    %p142 = scmp.eq.s32.totalorder %s16, 0
    %p143 = por %p141, %p142
    %p144 = scmp.ne.s32.totalorder %s130, %s131
    %p145 = scmp.eq.s32.totalorder %s17, 1
    %p146 = por %p144, %p145
    %p148 = scmp.ne.s32.totalorder %s131, %s147
    %p149 = scmp.eq.s32.totalorder %s17, 0
    %p150 = por %p148, %p149
    %s151 = ssub.s32 %s18, %s30
    %s152 = ssub.s32 %s19, %s26
    %s153 = sor.u32 %s151, %s152
    %p154 = scmp.eq.s32.totalorder %s153, 0
    %s156 = sadd.s32 %s155, 1
    %s157 = scalar_select %p154, %s155, %s156
    %p160 = pneg %p154
    %p161 = scmp.eq.s32.totalorder %s11, 1
    %p162 = por %p160, %p161
    %p163 = scmp.ne.s32.totalorder %s155, %s158
    %p164 = scmp.eq.s32.totalorder %s11, 0
    %p165 = por %p163, %p164
    %p166 = scmp.ne.s32.totalorder %s155, %s158
    %p167 = scmp.eq.s32.totalorder %s16, 1
    %p168 = por %p166, %p167
    %p169 = scmp.ne.s32.totalorder %s158, %s159
    %p170 = scmp.eq.s32.totalorder %s16, 0
    %p171 = por %p169, %p170
    %p172 = scmp.ne.s32.totalorder %s158, %s159
    %p173 = scmp.eq.s32.totalorder %s17, 1
    %p174 = por %p172, %p173
    %p176 = scmp.ne.s32.totalorder %s159, %s175
    %p177 = scmp.eq.s32.totalorder %s17, 0
    %p178 = por %p176, %p177
    %p179 = scmp.le.s32.totalorder 1, %s11
    %p180 = scmp.lt.s32.totalorder %s11, 3
    %p181 = pnand %p179, %p180
    %p182 = pneg %p181
    // Predicated region
    $region9: #{resblock2d_forward.5} parent=5 // pred_check
      _
    $region10: #{resblock2d_forward.5} parent=5 // pred_check_branch
      %184 = sbr.rel (%p181) target = $region12
    $region11: #{resblock2d_forward.5} parent=5 // pred_region
      %s185 = ssub.s32 %s11, 1
      // Predicated region
      $region13: #{resblock2d_forward.5} parent=11 // pred_check
        %p186 = pneg %p70
      $region14: #{resblock2d_forward.5} parent=11 // pred_check_branch
        %188 = sbr.rel (%p186) target = $region16
      $region15: #{resblock2d_forward.5} parent=11 // pred_region
        _
      $region16: #{resblock2d_forward.5} parent=11 // pred_fallthru
        _
      // Predicated region
      $region17: #{resblock2d_forward.5} parent=11 // pred_check
        %p189 = pneg %p91
      $region18: #{resblock2d_forward.5} parent=11 // pred_check_branch
        %191 = sbr.rel (%p189) target = $region20
      $region19: #{resblock2d_forward.5} parent=11 // pred_region
        _
      $region20: #{resblock2d_forward.5} parent=11 // pred_fallthru
        _
      // Predicated region
      $region21: #{resblock2d_forward.5} parent=11 // pred_check
        %p192 = pneg %p117
      $region22: #{resblock2d_forward.5} parent=11 // pred_check_branch
        %194 = sbr.rel (%p192) target = $region24
      $region23: #{resblock2d_forward.5} parent=11 // pred_region
        %p195 = scmp.lt.s32.totalorder %s21, 0
        %s196 = scalar_select %p195, %s21, 0
        %s197 = smul.addr %s196, 4
        %s198 = scalar_lea.vmem %s3, %s197
      $region24: #{resblock2d_forward.5} parent=11 // pred_fallthru
        _
      // Predicated region
      $region25: #{resblock2d_forward.5} parent=11 // pred_check
        %p199 = pneg %p143
      $region26: #{resblock2d_forward.5} parent=11 // pred_check_branch
        %201 = sbr.rel (%p199) target = $region28
      $region27: #{resblock2d_forward.5} parent=11 // pred_region
        %p202 = scmp.lt.s32.totalorder %s21, 0
        %s203 = scalar_select %p202, %s21, 0
        %s204 = scalar_lea.vmem %s4, %s203
      $region28: #{resblock2d_forward.5} parent=11 // pred_fallthru
        _
    $region12: #{resblock2d_forward.5} parent=5 // pred_fallthru
      _
    %p205 = scmp.lt.s32.totalorder %s11, 2
    // Predicated region
    $region29: #{resblock2d_forward.5} parent=5 // pred_check
      %p206 = pneg %p205
    $region30: #{resblock2d_forward.5} parent=5 // pred_check_branch
      %208 = sbr.rel (%p206) target = $region32
    $region31: #{resblock2d_forward.5} parent=5 // pred_region
      // Predicated region
      $region33: #{resblock2d_forward.5} parent=31 // pred_check
        %p209 = pneg %p43
      $region34: #{resblock2d_forward.5} parent=31 // pred_check_branch
        %211 = sbr.rel (%p209) target = $region36
      $region35: #{resblock2d_forward.5} parent=31 // pred_region
        %p212 = scmp.lt.s32.totalorder %s18, 1
        %s213 = scalar_select %p212, %s18, 1
        %s214 = smul.addr %s213, 32
        %s215 = smul.addr %s214, 8
        %s216 = scalar_lea.vmem %s0, %s215
      $region36: #{resblock2d_forward.5} parent=31 // pred_fallthru
        _
    $region32: #{resblock2d_forward.5} parent=5 // pred_fallthru
      _
    %p217 = scmp.le.s32.totalorder 1, %s11
    %p218 = scmp.lt.s32.totalorder %s11, 3
    %p219 = pnand %p217, %p218
    %p220 = pneg %p219
    // Predicated region
    $region37: #{resblock2d_forward.5} parent=5 // pred_check
      _
    $region38: #{resblock2d_forward.5} parent=5 // pred_check_branch
      %222 = sbr.rel (%p219) target = $region40
    $region39: #{resblock2d_forward.5} parent=5 // pred_region
      %s223 = ssub.s32 %s11, 1
      %p224 = scmp.lt.s32.totalorder %s20, 1
      %s225 = scalar_select %p224, %s20, 1
      %s226 = smul.addr %s225, 32
      %s227 = smul.addr %s226, 8
      %s228 = scalar_lea.vmem %s0, %s227
      %p229 = pneg %p49
      %p230 = pneg %p46
      %p231 = pneg %p70
      %p232 = pneg %p67
      %p233 = pneg %p91
      %p234 = pneg %p88
      %p235 = scmp.lt.s32.totalorder %s21, 0
      %s236 = scalar_select %p235, %s21, 0
      %s237 = smul.addr %s236, 4
      %s238 = scalar_lea.vmem %s3, %s237
      %p239 = pneg %p117
      %p240 = pneg %p114
      %p241 = scmp.lt.s32.totalorder %s21, 0
      %s242 = scalar_select %p241, %s21, 0
      %s243 = scalar_lea.vmem %s4, %s242
      %p244 = pneg %p143
      %p245 = pneg %p140
      %p246 = pneg %p171
      %p247 = pneg %p168
      %p248 = scmp.lt.s32.totalorder %s20, 1
      %s249 = scalar_select %p248, %s20, 1
      %p250 = scmp.lt.s32.totalorder %s21, 0
      %s251 = scalar_select %p250, %s21, 0
      %s252 = smul.addr %s249, 32
      %s253 = sadd.s32 %s251, %s252
      %s254 = smul.addr %s253, 8
      %s255 = scalar_lea.vmem %s5, %s254
      %p256 = scmp.lt.s32.totalorder %s20, 1
      %s257 = scalar_select %p256, %s20, 1
      %s258 = smul.addr %s257, 32
      %s259 = smul.addr %s258, 8
      %s260 = scalar_lea.vmem %s0, %s259
      %p261 = scmp.lt.s32.totalorder %s21, 0
      %s262 = scalar_select %p261, %s21, 0
      %s263 = smul.addr %s262, 4
      %s264 = scalar_lea.vmem %s3, %s263
      %p265 = scmp.lt.s32.totalorder %s21, 0
      %s266 = scalar_select %p265, %s21, 0
      %s267 = scalar_lea.vmem %s4, %s266
      %p268 = scmp.lt.s32.totalorder %s20, 1
      %s269 = scalar_select %p268, %s20, 1
      %p270 = scmp.lt.s32.totalorder %s21, 0
      %s271 = scalar_select %p270, %s21, 0
      %s272 = smul.addr %s269, 32
      %s273 = sadd.s32 %s271, %s272
      %s274 = smul.addr %s273, 8
      %s275 = scalar_lea.vmem %s5, %s274
      %p277 = scmp.eq.s32.totalorder %s21, 0
      // Predicated region
      $region41: #{resblock2d_forward.5} parent=39 // pred_check
        %p278 = pneg %p277
      $region42: #{resblock2d_forward.5} parent=39 // pred_check_branch
        %280 = sbr.rel (%p278) target = $region44
      $region43: #{resblock2d_forward.5} parent=39 // pred_region
        %vm281 = vcmask 31744
        %282 = vst.msk [vmem:[#allocation2] sm:$0xff] %vm281, 0.0
        %283 = vst.msk [vmem:[#allocation2 + $0x8] sm:$0xff] %vm281, 0.0
        %vm284 = vcmask 25600
        %285 = vst.msk [vmem:[#allocation2 + $0x10] sm:$0x3] %vm284, 0.0
        %286 = vst.msk [vmem:[#allocation2 + $0x18] sm:$0xff] %vm281, 0.0
        %287 = vst.msk [vmem:[#allocation2 + $0x20] sm:$0xff] %vm281, 0.0
        %288 = vst.msk [vmem:[#allocation2 + $0x28] sm:$0x3] %vm284, 0.0
        %289 = vst.msk [vmem:[#allocation2 + $0x30] sm:$0xff] %vm281, 0.0
        %290 = vst.msk [vmem:[#allocation2 + $0x38] sm:$0xff] %vm281, 0.0
        %291 = vst.msk [vmem:[#allocation2 + $0x40] sm:$0x3] %vm284, 0.0
        %292 = vst.msk [vmem:[#allocation2 + $0x48] sm:$0xff] %vm281, 0.0
        %293 = vst.msk [vmem:[#allocation2 + $0x50] sm:$0xff] %vm281, 0.0
        %294 = vst.msk [vmem:[#allocation2 + $0x58] sm:$0x3] %vm284, 0.0
        %295 = vst.msk [vmem:[#allocation2 + $0x60] sm:$0xff] %vm281, 0.0
        %296 = vst.msk [vmem:[#allocation2 + $0x68] sm:$0xff] %vm281, 0.0
        %297 = vst.msk [vmem:[#allocation2 + $0x70] sm:$0x3] %vm284, 0.0
        %298 = vst.msk [vmem:[#allocation2 + $0x78] sm:$0xff] %vm281, 0.0
        %299 = vst.msk [vmem:[#allocation2 + $0x80] sm:$0xff] %vm281, 0.0
        %300 = vst.msk [vmem:[#allocation2 + $0x88] sm:$0x3] %vm284, 0.0
        %301 = vst.msk [vmem:[#allocation2 + $0x90] sm:$0xff] %vm281, 0.0
        %302 = vst.msk [vmem:[#allocation2 + $0x98] sm:$0xff] %vm281, 0.0
        %303 = vst.msk [vmem:[#allocation2 + $0xa0] sm:$0x3] %vm284, 0.0
        %304 = vst.msk [vmem:[#allocation2 + $0xa8] sm:$0xff] %vm281, 0.0
        %305 = vst.msk [vmem:[#allocation2 + $0xb0] sm:$0xff] %vm281, 0.0
        %306 = vst.msk [vmem:[#allocation2 + $0xb8] sm:$0x3] %vm284, 0.0
        %307 = vst.msk [vmem:[#allocation2 + $0xc0] sm:$0xff] %vm281, 0.0
        %308 = vst.msk [vmem:[#allocation2 + $0xc8] sm:$0xff] %vm281, 0.0
        %309 = vst.msk [vmem:[#allocation2 + $0xd0] sm:$0x3] %vm284, 0.0
        %310 = vst.msk [vmem:[#allocation2 + $0xd8] sm:$0xff] %vm281, 0.0
        %311 = vst.msk [vmem:[#allocation2 + $0xe0] sm:$0xff] %vm281, 0.0
        %312 = vst.msk [vmem:[#allocation2 + $0xe8] sm:$0x3] %vm284, 0.0
        %313 = vst.msk [vmem:[#allocation2 + $0xf0] sm:$0xff] %vm281, 0.0
        %314 = vst.msk [vmem:[#allocation2 + $0xf8] sm:$0xff] %vm281, 0.0
        %315 = vst.msk [vmem:[#allocation2 + $0x100] sm:$0x3] %vm284, 0.0
        %316 = vst.msk [vmem:[#allocation2 + $0x108] sm:$0xff] %vm281, 0.0
        %317 = vst.msk [vmem:[#allocation2 + $0x110] sm:$0xff] %vm281, 0.0
        %318 = vst.msk [vmem:[#allocation2 + $0x118] sm:$0x3] %vm284, 0.0
        %319 = vst.msk [vmem:[#allocation2 + $0x120] sm:$0xff] %vm281, 0.0
        %320 = vst.msk [vmem:[#allocation2 + $0x128] sm:$0xff] %vm281, 0.0
        %321 = vst.msk [vmem:[#allocation2 + $0x130] sm:$0x3] %vm284, 0.0
        %322 = vst.msk [vmem:[#allocation2 + $0x138] sm:$0xff] %vm281, 0.0
        %323 = vst.msk [vmem:[#allocation2 + $0x140] sm:$0xff] %vm281, 0.0
        %324 = vst.msk [vmem:[#allocation2 + $0x148] sm:$0x3] %vm284, 0.0
        %325 = vst.msk [vmem:[#allocation2 + $0x150] sm:$0xff] %vm281, 0.0
        %326 = vst.msk [vmem:[#allocation2 + $0x158] sm:$0xff] %vm281, 0.0
        %327 = vst.msk [vmem:[#allocation2 + $0x160] sm:$0x3] %vm284, 0.0
        %328 = vst.msk [vmem:[#allocation2 + $0x168] sm:$0xff] %vm281, 0.0
        %329 = vst.msk [vmem:[#allocation2 + $0x170] sm:$0xff] %vm281, 0.0
        %330 = vst.msk [vmem:[#allocation2 + $0x178] sm:$0x3] %vm284, 0.0
        %331 = vst.msk [vmem:[#allocation2 + $0x180] sm:$0xff] %vm281, 0.0
        %332 = vst.msk [vmem:[#allocation2 + $0x188] sm:$0xff] %vm281, 0.0
        %333 = vst.msk [vmem:[#allocation2 + $0x190] sm:$0x3] %vm284, 0.0
        %334 = vst.msk [vmem:[#allocation2 + $0x198] sm:$0xff] %vm281, 0.0
        %335 = vst.msk [vmem:[#allocation2 + $0x1a0] sm:$0xff] %vm281, 0.0
        %336 = vst.msk [vmem:[#allocation2 + $0x1a8] sm:$0x3] %vm284, 0.0
        %v337 = vld [vmem:[%s260] sm:$0xff]
        %v338 = vld [vmem:[%s260 + $0x8] sm:$0xff]
        %v339 = vld [vmem:[%s260 + $0x10] sm:$0xff]
        %v340 = vld [vmem:[%s260 + $0x18] sm:$0xff]
        %v341 = vld [vmem:[%s260 + $0x20] sm:$0xff]
        %v342 = vld [vmem:[%s260 + $0x28] sm:$0xff]
        %v343 = vld [vmem:[%s260 + $0x30] sm:$0xff]
        %v344 = vld [vmem:[%s260 + $0x38] sm:$0xff]
        %v345 = vld [vmem:[%s260 + $0x40] sm:$0xff]
        %v346 = vld [vmem:[%s260 + $0x48] sm:$0xff]
        %v347 = vld [vmem:[%s260 + $0x50] sm:$0xff]
        %v348 = vld [vmem:[%s260 + $0x58] sm:$0xff]
        %v349 = vld [vmem:[%s260 + $0x60] sm:$0xff]
        %v350 = vld [vmem:[%s260 + $0x68] sm:$0xff]
        %v351 = vld [vmem:[%s260 + $0x70] sm:$0xff]
        %v352 = vld [vmem:[%s260 + $0x78] sm:$0xff]
        %v353 = vld [vmem:[%s260 + $0x80] sm:$0xff]
        %v354 = vld [vmem:[%s260 + $0x88] sm:$0xff]
        %v355 = vld [vmem:[%s260 + $0x90] sm:$0xff]
        %v356 = vld [vmem:[%s260 + $0x98] sm:$0xff]
        %v357 = vld [vmem:[%s260 + $0xa0] sm:$0xff]
        %v358 = vld [vmem:[%s260 + $0xa8] sm:$0xff]
        %v359 = vld [vmem:[%s260 + $0xb0] sm:$0xff]
        %v360 = vld [vmem:[%s260 + $0xb8] sm:$0xff]
        %v361 = vld [vmem:[%s260 + $0xc0] sm:$0xff]
        %v362 = vld [vmem:[%s260 + $0xc8] sm:$0xff]
        %v363 = vld [vmem:[%s260 + $0xd0] sm:$0xff]
        %v364 = vld [vmem:[%s260 + $0xd8] sm:$0xff]
        %v365 = vld [vmem:[%s260 + $0xe0] sm:$0xff]
        %v366 = vld [vmem:[%s260 + $0xe8] sm:$0xff]
        %v367 = vld [vmem:[%s260 + $0xf0] sm:$0xff]
        %v368 = vld [vmem:[%s260 + $0xf8] sm:$0xff]
        %v369 = vld [vmem:[%s1] sm:$0x1]
        %v370 = vld [vmem:[%s2] sm:$0x1]
        %v372 = vlaneseq
        %v373 = vshrl.u32 %v372, 7
        %v374 = vsub.s32 0, %v373
        %v375 = vrot.slane %v369, %v374
        %v377 = vmul.f32 %v337, %v375
        %v378 = vmul.f32 %v338, %v375
        %v379 = vmul.f32 %v339, %v375
        %v380 = vmul.f32 %v340, %v375
        %v381 = vmul.f32 %v341, %v375
        %v382 = vmul.f32 %v342, %v375
        %v383 = vmul.f32 %v343, %v375
        %v384 = vmul.f32 %v344, %v375
        %v385 = vmul.f32 %v345, %v375
        %v386 = vmul.f32 %v346, %v375
        %v387 = vmul.f32 %v347, %v375
        %v388 = vmul.f32 %v348, %v375
        %v389 = vmul.f32 %v349, %v375
        %v390 = vmul.f32 %v350, %v375
        %v391 = vmul.f32 %v351, %v375
        %v392 = vmul.f32 %v352, %v375
        %v393 = vmul.f32 %v353, %v375
        %v394 = vmul.f32 %v354, %v375
        %v395 = vmul.f32 %v355, %v375
        %v396 = vmul.f32 %v356, %v375
        %v397 = vmul.f32 %v357, %v375
        %v398 = vmul.f32 %v358, %v375
        %v399 = vmul.f32 %v359, %v375
        %v400 = vmul.f32 %v360, %v375
        %v401 = vmul.f32 %v361, %v375
        %v402 = vmul.f32 %v362, %v375
        %v403 = vmul.f32 %v363, %v375
        %v404 = vmul.f32 %v364, %v375
        %v405 = vmul.f32 %v365, %v375
        %v406 = vmul.f32 %v366, %v375
        %v407 = vmul.f32 %v367, %v375
        %v408 = vmul.f32 %v368, %v375
        %v410 = vlaneseq
        %v411 = vshrl.u32 %v410, 7
        %v412 = vsub.s32 0, %v411
        %v413 = vrot.slane %v370, %v412
        %v415 = vadd.f32 %v377, %v413
        %v416 = vadd.f32 %v378, %v413
        %v417 = vadd.f32 %v379, %v413
        %v418 = vadd.f32 %v380, %v413
        %v419 = vadd.f32 %v381, %v413
        %v420 = vadd.f32 %v382, %v413
        %v421 = vadd.f32 %v383, %v413
        %v422 = vadd.f32 %v384, %v413
        %v423 = vadd.f32 %v385, %v413
        %v424 = vadd.f32 %v386, %v413
        %v425 = vadd.f32 %v387, %v413
        %v426 = vadd.f32 %v388, %v413
        %v427 = vadd.f32 %v389, %v413
        %v428 = vadd.f32 %v390, %v413
        %v429 = vadd.f32 %v391, %v413
        %v430 = vadd.f32 %v392, %v413
        %v431 = vadd.f32 %v393, %v413
        %v432 = vadd.f32 %v394, %v413
        %v433 = vadd.f32 %v395, %v413
        %v434 = vadd.f32 %v396, %v413
        %v435 = vadd.f32 %v397, %v413
        %v436 = vadd.f32 %v398, %v413
        %v437 = vadd.f32 %v399, %v413
        %v438 = vadd.f32 %v400, %v413
        %v439 = vadd.f32 %v401, %v413
        %v440 = vadd.f32 %v402, %v413
        %v441 = vadd.f32 %v403, %v413
        %v442 = vadd.f32 %v404, %v413
        %v443 = vadd.f32 %v405, %v413
        %v444 = vadd.f32 %v406, %v413
        %v445 = vadd.f32 %v407, %v413
        %v446 = vadd.f32 %v408, %v413
        %v447 = vmax.f32 %v415, 0.0
        %v448 = vmax.f32 %v416, 0.0
        %v449 = vmax.f32 %v417, 0.0
        %v450 = vmax.f32 %v418, 0.0
        %v451 = vmax.f32 %v419, 0.0
        %v452 = vmax.f32 %v420, 0.0
        %v453 = vmax.f32 %v421, 0.0
        %v454 = vmax.f32 %v422, 0.0
        %v455 = vmax.f32 %v423, 0.0
        %v456 = vmax.f32 %v424, 0.0
        %v457 = vmax.f32 %v425, 0.0
        %v458 = vmax.f32 %v426, 0.0
        %v459 = vmax.f32 %v427, 0.0
        %v460 = vmax.f32 %v428, 0.0
        %v461 = vmax.f32 %v429, 0.0
        %v462 = vmax.f32 %v430, 0.0
        %v463 = vmax.f32 %v431, 0.0
        %v464 = vmax.f32 %v432, 0.0
        %v465 = vmax.f32 %v433, 0.0
        %v466 = vmax.f32 %v434, 0.0
        %v467 = vmax.f32 %v435, 0.0
        %v468 = vmax.f32 %v436, 0.0
        %v469 = vmax.f32 %v437, 0.0
        %v470 = vmax.f32 %v438, 0.0
        %v471 = vmax.f32 %v439, 0.0
        %v472 = vmax.f32 %v440, 0.0
        %v473 = vmax.f32 %v441, 0.0
        %v474 = vmax.f32 %v442, 0.0
        %v475 = vmax.f32 %v443, 0.0
        %v476 = vmax.f32 %v444, 0.0
        %v477 = vmax.f32 %v445, 0.0
        %v478 = vmax.f32 %v446, 0.0
        %s479 = scalar_lea.vmem [#allocation2], 24
        %480 = vst.msk [vmem:[%s479 + $0x1] sm:$0xff] %vm281, %v447
        %481 = vst.msk [vmem:[%s479 + $0x9] sm:$0xff] %vm281, %v448
        %482 = vst.msk [vmem:[%s479 + $0x19] sm:$0xff] %vm281, %v449
        %483 = vst.msk [vmem:[%s479 + $0x21] sm:$0xff] %vm281, %v450
        %484 = vst.msk [vmem:[%s479 + $0x31] sm:$0xff] %vm281, %v451
        %485 = vst.msk [vmem:[%s479 + $0x39] sm:$0xff] %vm281, %v452
        %486 = vst.msk [vmem:[%s479 + $0x49] sm:$0xff] %vm281, %v453
        %487 = vst.msk [vmem:[%s479 + $0x51] sm:$0xff] %vm281, %v454
        %488 = vst.msk [vmem:[%s479 + $0x61] sm:$0xff] %vm281, %v455
        %489 = vst.msk [vmem:[%s479 + $0x69] sm:$0xff] %vm281, %v456
        %490 = vst.msk [vmem:[%s479 + $0x79] sm:$0xff] %vm281, %v457
        %491 = vst.msk [vmem:[%s479 + $0x81] sm:$0xff] %vm281, %v458
        %492 = vst.msk [vmem:[%s479 + $0x91] sm:$0xff] %vm281, %v459
        %493 = vst.msk [vmem:[%s479 + $0x99] sm:$0xff] %vm281, %v460
        %494 = vst.msk [vmem:[%s479 + $0xa9] sm:$0xff] %vm281, %v461
        %495 = vst.msk [vmem:[%s479 + $0xb1] sm:$0xff] %vm281, %v462
        %496 = vst.msk [vmem:[%s479 + $0xc1] sm:$0xff] %vm281, %v463
        %497 = vst.msk [vmem:[%s479 + $0xc9] sm:$0xff] %vm281, %v464
        %498 = vst.msk [vmem:[%s479 + $0xd9] sm:$0xff] %vm281, %v465
        %499 = vst.msk [vmem:[%s479 + $0xe1] sm:$0xff] %vm281, %v466
        %500 = vst.msk [vmem:[%s479 + $0xf1] sm:$0xff] %vm281, %v467
        %501 = vst.msk [vmem:[%s479 + $0xf9] sm:$0xff] %vm281, %v468
        %502 = vst.msk [vmem:[%s479 + $0x109] sm:$0xff] %vm281, %v469
        %503 = vst.msk [vmem:[%s479 + $0x111] sm:$0xff] %vm281, %v470
        %504 = vst.msk [vmem:[%s479 + $0x121] sm:$0xff] %vm281, %v471
        %505 = vst.msk [vmem:[%s479 + $0x129] sm:$0xff] %vm281, %v472
        %506 = vst.msk [vmem:[%s479 + $0x139] sm:$0xff] %vm281, %v473
        %507 = vst.msk [vmem:[%s479 + $0x141] sm:$0xff] %vm281, %v474
        %508 = vst.msk [vmem:[%s479 + $0x151] sm:$0xff] %vm281, %v475
        %509 = vst.msk [vmem:[%s479 + $0x159] sm:$0xff] %vm281, %v476
        %510 = vst.msk [vmem:[%s479 + $0x169] sm:$0xff] %vm281, %v477
        %511 = vst.msk [vmem:[%s479 + $0x171] sm:$0xff] %vm281, %v478
        %v512 = vld [vmem:[#allocation2] sm:$0xff]
        %v513 = vld [vmem:[#allocation2 + $0x8] sm:$0xff]
        %v514 = vld [vmem:[#allocation2 + $0x10] sm:$0x3]
        %v515 = vld [vmem:[#allocation2 + $0x18] sm:$0xff]
        %v516 = vld [vmem:[#allocation2 + $0x20] sm:$0xff]
        %v517 = vld [vmem:[#allocation2 + $0x28] sm:$0x3]
        %v518 = vld [vmem:[#allocation2 + $0x30] sm:$0xff]
        %v519 = vld [vmem:[#allocation2 + $0x38] sm:$0xff]
        %v520 = vld [vmem:[#allocation2 + $0x40] sm:$0x3]
        %v521 = vld [vmem:[#allocation2 + $0x48] sm:$0xff]
        %v522 = vld [vmem:[#allocation2 + $0x50] sm:$0xff]
        %v523 = vld [vmem:[#allocation2 + $0x58] sm:$0x3]
        %v524 = vld [vmem:[#allocation2 + $0x60] sm:$0xff]
        %v525 = vld [vmem:[#allocation2 + $0x68] sm:$0xff]
        %v526 = vld [vmem:[#allocation2 + $0x70] sm:$0x3]
        %v527 = vld [vmem:[#allocation2 + $0x78] sm:$0xff]
        %v528 = vld [vmem:[#allocation2 + $0x80] sm:$0xff]
        %v529 = vld [vmem:[#allocation2 + $0x88] sm:$0x3]
        %v530 = vld [vmem:[#allocation2 + $0x90] sm:$0xff]
        %v531 = vld [vmem:[#allocation2 + $0x98] sm:$0xff]
        %v532 = vld [vmem:[#allocation2 + $0xa0] sm:$0x3]
        %v533 = vld [vmem:[#allocation2 + $0xa8] sm:$0xff]
        %v534 = vld [vmem:[#allocation2 + $0xb0] sm:$0xff]
        %v535 = vld [vmem:[#allocation2 + $0xb8] sm:$0x3]
        %v536 = vld [vmem:[#allocation2 + $0xc0] sm:$0xff]
        %v537 = vld [vmem:[#allocation2 + $0xc8] sm:$0xff]
        %v538 = vld [vmem:[#allocation2 + $0xd0] sm:$0x3]
        %v539 = vld [vmem:[#allocation2 + $0xd8] sm:$0xff]
        %v540 = vld [vmem:[#allocation2 + $0xe0] sm:$0xff]
        %v541 = vld [vmem:[#allocation2 + $0xe8] sm:$0x3]
        %v542 = vld [vmem:[#allocation2 + $0xf0] sm:$0xff]
        %v543 = vld [vmem:[#allocation2 + $0xf8] sm:$0xff]
        %v544 = vld [vmem:[#allocation2 + $0x100] sm:$0x3]
        %v545 = vld [vmem:[#allocation2 + $0x108] sm:$0xff]
        %v546 = vld [vmem:[#allocation2 + $0x110] sm:$0xff]
        %v547 = vld [vmem:[#allocation2 + $0x118] sm:$0x3]
        %v548 = vld [vmem:[#allocation2 + $0x120] sm:$0xff]
        %v549 = vld [vmem:[#allocation2 + $0x128] sm:$0xff]
        %v550 = vld [vmem:[#allocation2 + $0x130] sm:$0x3]
        %v551 = vld [vmem:[#allocation2 + $0x138] sm:$0xff]
        %v552 = vld [vmem:[#allocation2 + $0x140] sm:$0xff]
        %v553 = vld [vmem:[#allocation2 + $0x148] sm:$0x3]
        %v554 = vld [vmem:[#allocation2 + $0x150] sm:$0xff]
        %v555 = vld [vmem:[#allocation2 + $0x158] sm:$0xff]
        %v556 = vld [vmem:[#allocation2 + $0x160] sm:$0x3]
        %v557 = vld [vmem:[#allocation2 + $0x168] sm:$0xff]
        %v558 = vld [vmem:[#allocation2 + $0x170] sm:$0xff]
        %v559 = vld [vmem:[#allocation2 + $0x178] sm:$0x3]
        %v560 = vld [vmem:[#allocation2 + $0x180] sm:$0xff]
        %v561 = vld [vmem:[#allocation2 + $0x188] sm:$0xff]
        %v562 = vld [vmem:[#allocation2 + $0x190] sm:$0x3]
        %v563 = vld [vmem:[#allocation2 + $0x198] sm:$0xff]
        %v564 = vld [vmem:[#allocation2 + $0x1a0] sm:$0xff]
        %v565 = vld [vmem:[#allocation2 + $0x1a8] sm:$0x3]
        %v566 = vpack.c.bf16 %v513, %v512
        %v567 = vpack.c.bf16 %v516, %v515
        %v568 = vpack.c.bf16 %v519, %v518
        %v569 = vpack.c.bf16 %v522, %v521
        %v570 = vpack.c.bf16 %v525, %v524
        %v571 = vpack.c.bf16 %v528, %v527
        %v572 = vpack.c.bf16 %v531, %v530
        %v573 = vpack.c.bf16 %v534, %v533
        %v574 = vpack.c.bf16 %v537, %v536
        %v575 = vpack.c.bf16 %v540, %v539
        %v576 = vpack.c.bf16 %v543, %v542
        %v577 = vpack.c.bf16 %v546, %v545
        %v578 = vpack.c.bf16 %v549, %v548
        %v579 = vpack.c.bf16 %v552, %v551
        %v580 = vpack.c.bf16 %v555, %v554
        %v581 = vpack.c.bf16 %v558, %v557
        %582 = vst.msk [vmem:[#allocation3] sm:$0xff] %vm281, %v566
        %583 = vst.msk [vmem:[#allocation3 + $0x8] sm:$0xff] %vm281, %v567
        %584 = vst.msk [vmem:[#allocation3 + $0x10] sm:$0xff] %vm281, %v568
        %585 = vst.msk [vmem:[#allocation3 + $0x18] sm:$0xff] %vm281, %v569
        %586 = vst.msk [vmem:[#allocation3 + $0x20] sm:$0xff] %vm281, %v570
        %587 = vst.msk [vmem:[#allocation3 + $0x28] sm:$0xff] %vm281, %v571
        %588 = vst.msk [vmem:[#allocation3 + $0x30] sm:$0xff] %vm281, %v572
        %589 = vst.msk [vmem:[#allocation3 + $0x38] sm:$0xff] %vm281, %v573
        %590 = vst.msk [vmem:[#allocation3 + $0x40] sm:$0xff] %vm281, %v574
        %591 = vst.msk [vmem:[#allocation3 + $0x48] sm:$0xff] %vm281, %v575
        %592 = vst.msk [vmem:[#allocation3 + $0x50] sm:$0xff] %vm281, %v576
        %593 = vst.msk [vmem:[#allocation3 + $0x58] sm:$0xff] %vm281, %v577
        %594 = vst.msk [vmem:[#allocation3 + $0x60] sm:$0xff] %vm281, %v578
        %595 = vst.msk [vmem:[#allocation3 + $0x68] sm:$0xff] %vm281, %v579
        %596 = vst.msk [vmem:[#allocation3 + $0x70] sm:$0xff] %vm281, %v580
        %597 = vst.msk [vmem:[#allocation3 + $0x78] sm:$0xff] %vm281, %v581
        %vm646 = vcmask 1046528
        %v647 = vrot.slane %v512, 1
        %v648 = vrot.slane %v513, 1
        %v649 = vsel %vm646, %v647, %v648
        %v650 = vrot.slane %v514, 1
        %v651 = vsel %vm646, %v648, %v650
        %v652 = vrot.slane %v515, 1
        %v653 = vrot.slane %v516, 1
        %v654 = vsel %vm646, %v652, %v653
        %v655 = vrot.slane %v517, 1
        %v656 = vsel %vm646, %v653, %v655
        %v657 = vrot.slane %v518, 1
        %v658 = vrot.slane %v519, 1
        %v659 = vsel %vm646, %v657, %v658
        %v660 = vrot.slane %v520, 1
        %v661 = vsel %vm646, %v658, %v660
        %v662 = vrot.slane %v521, 1
        %v663 = vrot.slane %v522, 1
        %v664 = vsel %vm646, %v662, %v663
        %v665 = vrot.slane %v523, 1
        %v666 = vsel %vm646, %v663, %v665
        %v667 = vrot.slane %v524, 1
        %v668 = vrot.slane %v525, 1
        %v669 = vsel %vm646, %v667, %v668
        %v670 = vrot.slane %v526, 1
        %v671 = vsel %vm646, %v668, %v670
        %v672 = vrot.slane %v527, 1
        %v673 = vrot.slane %v528, 1
        %v674 = vsel %vm646, %v672, %v673
        %v675 = vrot.slane %v529, 1
        %v676 = vsel %vm646, %v673, %v675
        %v677 = vrot.slane %v530, 1
        %v678 = vrot.slane %v531, 1
        %v679 = vsel %vm646, %v677, %v678
        %v680 = vrot.slane %v532, 1
        %v681 = vsel %vm646, %v678, %v680
        %v682 = vrot.slane %v533, 1
        %v683 = vrot.slane %v534, 1
        %v684 = vsel %vm646, %v682, %v683
        %v685 = vrot.slane %v535, 1
        %v686 = vsel %vm646, %v683, %v685
        %v687 = vrot.slane %v536, 1
        %v688 = vrot.slane %v537, 1
        %v689 = vsel %vm646, %v687, %v688
        %v690 = vrot.slane %v538, 1
        %v691 = vsel %vm646, %v688, %v690
        %v692 = vrot.slane %v539, 1
        %v693 = vrot.slane %v540, 1
        %v694 = vsel %vm646, %v692, %v693
        %v695 = vrot.slane %v541, 1
        %v696 = vsel %vm646, %v693, %v695
        %v697 = vrot.slane %v542, 1
        %v698 = vrot.slane %v543, 1
        %v699 = vsel %vm646, %v697, %v698
        %v700 = vrot.slane %v544, 1
        %v701 = vsel %vm646, %v698, %v700
        %v702 = vrot.slane %v545, 1
        %v703 = vrot.slane %v546, 1
        %v704 = vsel %vm646, %v702, %v703
        %v705 = vrot.slane %v547, 1
        %v706 = vsel %vm646, %v703, %v705
        %v707 = vrot.slane %v548, 1
        %v708 = vrot.slane %v549, 1
        %v709 = vsel %vm646, %v707, %v708
        %v710 = vrot.slane %v550, 1
        %v711 = vsel %vm646, %v708, %v710
        %v712 = vrot.slane %v551, 1
        %v713 = vrot.slane %v552, 1
        %v714 = vsel %vm646, %v712, %v713
        %v715 = vrot.slane %v553, 1
        %v716 = vsel %vm646, %v713, %v715
        %v717 = vrot.slane %v554, 1
        %v718 = vrot.slane %v555, 1
        %v719 = vsel %vm646, %v717, %v718
        %v720 = vrot.slane %v556, 1
        %v721 = vsel %vm646, %v718, %v720
        %v722 = vrot.slane %v557, 1
        %v723 = vrot.slane %v558, 1
        %v724 = vsel %vm646, %v722, %v723
        %v725 = vrot.slane %v559, 1
        %v726 = vsel %vm646, %v723, %v725
        %v759 = vpack.c.bf16 %v651, %v649
        %v760 = vpack.c.bf16 %v656, %v654
        %v761 = vpack.c.bf16 %v661, %v659
        %v762 = vpack.c.bf16 %v666, %v664
        %v763 = vpack.c.bf16 %v671, %v669
        %v764 = vpack.c.bf16 %v676, %v674
        %v765 = vpack.c.bf16 %v681, %v679
        %v766 = vpack.c.bf16 %v686, %v684
        %v767 = vpack.c.bf16 %v691, %v689
        %v768 = vpack.c.bf16 %v696, %v694
        %v769 = vpack.c.bf16 %v701, %v699
        %v770 = vpack.c.bf16 %v706, %v704
        %v771 = vpack.c.bf16 %v711, %v709
        %v772 = vpack.c.bf16 %v716, %v714
        %v773 = vpack.c.bf16 %v721, %v719
        %v774 = vpack.c.bf16 %v726, %v724
        %791 = vrot.lane.b32.xlu0 %v759, 4
        %v792 = vpop.permute.xlu0 %791
        %793 = vrot.lane.b32.xlu0 %v760, 4
        %v794 = vpop.permute.xlu0 %793
        %795 = vrot.lane.b32.xlu0 %v761, 4
        %v796 = vpop.permute.xlu0 %795
        %797 = vrot.lane.b32.xlu0 %v762, 4
        %v798 = vpop.permute.xlu0 %797
        %799 = vrot.lane.b32.xlu0 %v763, 4
        %v800 = vpop.permute.xlu0 %799
        %801 = vrot.lane.b32.xlu0 %v764, 4
        %v802 = vpop.permute.xlu0 %801
        %803 = vrot.lane.b32.xlu0 %v765, 4
        %v804 = vpop.permute.xlu0 %803
        %805 = vrot.lane.b32.xlu0 %v766, 4
        %v806 = vpop.permute.xlu0 %805
        %807 = vrot.lane.b32.xlu0 %v767, 4
        %v808 = vpop.permute.xlu0 %807
        %809 = vrot.lane.b32.xlu0 %v768, 4
        %v810 = vpop.permute.xlu0 %809
        %811 = vrot.lane.b32.xlu0 %v769, 4
        %v812 = vpop.permute.xlu0 %811
        %813 = vrot.lane.b32.xlu0 %v770, 4
        %v814 = vpop.permute.xlu0 %813
        %815 = vrot.lane.b32.xlu0 %v771, 4
        %v816 = vpop.permute.xlu0 %815
        %817 = vrot.lane.b32.xlu0 %v772, 4
        %v818 = vpop.permute.xlu0 %817
        %819 = vrot.lane.b32.xlu0 %v773, 4
        %v820 = vpop.permute.xlu0 %819
        %821 = vrot.lane.b32.xlu0 %v774, 4
        %v822 = vpop.permute.xlu0 %821
        %vm839 = vcmask 64544
        %840 = vst.msk [vmem:[#allocation3] sm:$0xff] %vm839, %v792
        %841 = vst.msk [vmem:[#allocation3 + $0x8] sm:$0xff] %vm839, %v794
        %842 = vst.msk [vmem:[#allocation3 + $0x10] sm:$0xff] %vm839, %v796
        %843 = vst.msk [vmem:[#allocation3 + $0x18] sm:$0xff] %vm839, %v798
        %844 = vst.msk [vmem:[#allocation3 + $0x20] sm:$0xff] %vm839, %v800
        %845 = vst.msk [vmem:[#allocation3 + $0x28] sm:$0xff] %vm839, %v802
        %846 = vst.msk [vmem:[#allocation3 + $0x30] sm:$0xff] %vm839, %v804
        %847 = vst.msk [vmem:[#allocation3 + $0x38] sm:$0xff] %vm839, %v806
        %848 = vst.msk [vmem:[#allocation3 + $0x40] sm:$0xff] %vm839, %v808
        %849 = vst.msk [vmem:[#allocation3 + $0x48] sm:$0xff] %vm839, %v810
        %850 = vst.msk [vmem:[#allocation3 + $0x50] sm:$0xff] %vm839, %v812
        %851 = vst.msk [vmem:[#allocation3 + $0x58] sm:$0xff] %vm839, %v814
        %852 = vst.msk [vmem:[#allocation3 + $0x60] sm:$0xff] %vm839, %v816
        %853 = vst.msk [vmem:[#allocation3 + $0x68] sm:$0xff] %vm839, %v818
        %854 = vst.msk [vmem:[#allocation3 + $0x70] sm:$0xff] %vm839, %v820
        %855 = vst.msk [vmem:[#allocation3 + $0x78] sm:$0xff] %vm839, %v822
        %vm856 = vcmask 1045504
        %v857 = vrot.slane %v512, 2
        %v858 = vrot.slane %v513, 2
        %v859 = vsel %vm856, %v857, %v858
        %v860 = vrot.slane %v514, 2
        %v861 = vsel %vm856, %v858, %v860
        %v862 = vrot.slane %v515, 2
        %v863 = vrot.slane %v516, 2
        %v864 = vsel %vm856, %v862, %v863
        %v865 = vrot.slane %v517, 2
        %v866 = vsel %vm856, %v863, %v865
        %v867 = vrot.slane %v518, 2
        %v868 = vrot.slane %v519, 2
        %v869 = vsel %vm856, %v867, %v868
        %v870 = vrot.slane %v520, 2
        %v871 = vsel %vm856, %v868, %v870
        %v872 = vrot.slane %v521, 2
        %v873 = vrot.slane %v522, 2
        %v874 = vsel %vm856, %v872, %v873
        %v875 = vrot.slane %v523, 2
        %v876 = vsel %vm856, %v873, %v875
        %v877 = vrot.slane %v524, 2
        %v878 = vrot.slane %v525, 2
        %v879 = vsel %vm856, %v877, %v878
        %v880 = vrot.slane %v526, 2
        %v881 = vsel %vm856, %v878, %v880
        %v882 = vrot.slane %v527, 2
        %v883 = vrot.slane %v528, 2
        %v884 = vsel %vm856, %v882, %v883
        %v885 = vrot.slane %v529, 2
        %v886 = vsel %vm856, %v883, %v885
        %v887 = vrot.slane %v530, 2
        %v888 = vrot.slane %v531, 2
        %v889 = vsel %vm856, %v887, %v888
        %v890 = vrot.slane %v532, 2
        %v891 = vsel %vm856, %v888, %v890
        %v892 = vrot.slane %v533, 2
        %v893 = vrot.slane %v534, 2
        %v894 = vsel %vm856, %v892, %v893
        %v895 = vrot.slane %v535, 2
        %v896 = vsel %vm856, %v893, %v895
        %v897 = vrot.slane %v536, 2
        %v898 = vrot.slane %v537, 2
        %v899 = vsel %vm856, %v897, %v898
        %v900 = vrot.slane %v538, 2
        %v901 = vsel %vm856, %v898, %v900
        %v902 = vrot.slane %v539, 2
        %v903 = vrot.slane %v540, 2
        %v904 = vsel %vm856, %v902, %v903
        %v905 = vrot.slane %v541, 2
        %v906 = vsel %vm856, %v903, %v905
        %v907 = vrot.slane %v542, 2
        %v908 = vrot.slane %v543, 2
        %v909 = vsel %vm856, %v907, %v908
        %v910 = vrot.slane %v544, 2
        %v911 = vsel %vm856, %v908, %v910
        %v912 = vrot.slane %v545, 2
        %v913 = vrot.slane %v546, 2
        %v914 = vsel %vm856, %v912, %v913
        %v915 = vrot.slane %v547, 2
        %v916 = vsel %vm856, %v913, %v915
        %v917 = vrot.slane %v548, 2
        %v918 = vrot.slane %v549, 2
        %v919 = vsel %vm856, %v917, %v918
        %v920 = vrot.slane %v550, 2
        %v921 = vsel %vm856, %v918, %v920
        %v922 = vrot.slane %v551, 2
        %v923 = vrot.slane %v552, 2
        %v924 = vsel %vm856, %v922, %v923
        %v925 = vrot.slane %v553, 2
        %v926 = vsel %vm856, %v923, %v925
        %v927 = vrot.slane %v554, 2
        %v928 = vrot.slane %v555, 2
        %v929 = vsel %vm856, %v927, %v928
        %v930 = vrot.slane %v556, 2
        %v931 = vsel %vm856, %v928, %v930
        %v932 = vrot.slane %v557, 2
        %v933 = vrot.slane %v558, 2
        %v934 = vsel %vm856, %v932, %v933
        %v935 = vrot.slane %v559, 2
        %v936 = vsel %vm856, %v933, %v935
        %v969 = vpack.c.bf16 %v861, %v859
        %v970 = vpack.c.bf16 %v866, %v864
        %v971 = vpack.c.bf16 %v871, %v869
        %v972 = vpack.c.bf16 %v876, %v874
        %v973 = vpack.c.bf16 %v881, %v879
        %v974 = vpack.c.bf16 %v886, %v884
        %v975 = vpack.c.bf16 %v891, %v889
        %v976 = vpack.c.bf16 %v896, %v894
        %v977 = vpack.c.bf16 %v901, %v899
        %v978 = vpack.c.bf16 %v906, %v904
        %v979 = vpack.c.bf16 %v911, %v909
        %v980 = vpack.c.bf16 %v916, %v914
        %v981 = vpack.c.bf16 %v921, %v919
        %v982 = vpack.c.bf16 %v926, %v924
        %v983 = vpack.c.bf16 %v931, %v929
        %v984 = vpack.c.bf16 %v936, %v934
        %1001 = vrot.lane.b32.xlu0 %v969, 8
        %v1002 = vpop.permute.xlu0 %1001
        %1003 = vrot.lane.b32.xlu0 %v970, 8
        %v1004 = vpop.permute.xlu0 %1003
        %1005 = vrot.lane.b32.xlu0 %v971, 8
        %v1006 = vpop.permute.xlu0 %1005
        %1007 = vrot.lane.b32.xlu0 %v972, 8
        %v1008 = vpop.permute.xlu0 %1007
        %1009 = vrot.lane.b32.xlu0 %v973, 8
        %v1010 = vpop.permute.xlu0 %1009
        %1011 = vrot.lane.b32.xlu0 %v974, 8
        %v1012 = vpop.permute.xlu0 %1011
        %1013 = vrot.lane.b32.xlu0 %v975, 8
        %v1014 = vpop.permute.xlu0 %1013
        %1015 = vrot.lane.b32.xlu0 %v976, 8
        %v1016 = vpop.permute.xlu0 %1015
        %1017 = vrot.lane.b32.xlu0 %v977, 8
        %v1018 = vpop.permute.xlu0 %1017
        %1019 = vrot.lane.b32.xlu0 %v978, 8
        %v1020 = vpop.permute.xlu0 %1019
        %1021 = vrot.lane.b32.xlu0 %v979, 8
        %v1022 = vpop.permute.xlu0 %1021
        %1023 = vrot.lane.b32.xlu0 %v980, 8
        %v1024 = vpop.permute.xlu0 %1023
        %1025 = vrot.lane.b32.xlu0 %v981, 8
        %v1026 = vpop.permute.xlu0 %1025
        %1027 = vrot.lane.b32.xlu0 %v982, 8
        %v1028 = vpop.permute.xlu0 %1027
        %1029 = vrot.lane.b32.xlu0 %v983, 8
        %v1030 = vpop.permute.xlu0 %1029
        %1031 = vrot.lane.b32.xlu0 %v984, 8
        %v1032 = vpop.permute.xlu0 %1031
        %vm1049 = vcmask 97344
        %1050 = vst.msk [vmem:[#allocation3] sm:$0xff] %vm1049, %v1002
        %1051 = vst.msk [vmem:[#allocation3 + $0x8] sm:$0xff] %vm1049, %v1004
        %1052 = vst.msk [vmem:[#allocation3 + $0x10] sm:$0xff] %vm1049, %v1006
        %1053 = vst.msk [vmem:[#allocation3 + $0x18] sm:$0xff] %vm1049, %v1008
        %1054 = vst.msk [vmem:[#allocation3 + $0x20] sm:$0xff] %vm1049, %v1010
        %1055 = vst.msk [vmem:[#allocation3 + $0x28] sm:$0xff] %vm1049, %v1012
        %1056 = vst.msk [vmem:[#allocation3 + $0x30] sm:$0xff] %vm1049, %v1014
        %1057 = vst.msk [vmem:[#allocation3 + $0x38] sm:$0xff] %vm1049, %v1016
        %1058 = vst.msk [vmem:[#allocation3 + $0x40] sm:$0xff] %vm1049, %v1018
        %1059 = vst.msk [vmem:[#allocation3 + $0x48] sm:$0xff] %vm1049, %v1020
        %1060 = vst.msk [vmem:[#allocation3 + $0x50] sm:$0xff] %vm1049, %v1022
        %1061 = vst.msk [vmem:[#allocation3 + $0x58] sm:$0xff] %vm1049, %v1024
        %1062 = vst.msk [vmem:[#allocation3 + $0x60] sm:$0xff] %vm1049, %v1026
        %1063 = vst.msk [vmem:[#allocation3 + $0x68] sm:$0xff] %vm1049, %v1028
        %1064 = vst.msk [vmem:[#allocation3 + $0x70] sm:$0xff] %vm1049, %v1030
        %1065 = vst.msk [vmem:[#allocation3 + $0x78] sm:$0xff] %vm1049, %v1032
        %v1066 = vpack.c.bf16 %v561, %v560
        %1083 = vrot.lane.b32.xlu0 %v567, 12
        %v1084 = vpop.permute.xlu0 %1083
        %1085 = vrot.lane.b32.xlu0 %v568, 12
        %v1086 = vpop.permute.xlu0 %1085
        %1087 = vrot.lane.b32.xlu0 %v569, 12
        %v1088 = vpop.permute.xlu0 %1087
        %1089 = vrot.lane.b32.xlu0 %v570, 12
        %v1090 = vpop.permute.xlu0 %1089
        %1091 = vrot.lane.b32.xlu0 %v571, 12
        %v1092 = vpop.permute.xlu0 %1091
        %1093 = vrot.lane.b32.xlu0 %v572, 12
        %v1094 = vpop.permute.xlu0 %1093
        %1095 = vrot.lane.b32.xlu0 %v573, 12
        %v1096 = vpop.permute.xlu0 %1095
        %1097 = vrot.lane.b32.xlu0 %v574, 12
        %v1098 = vpop.permute.xlu0 %1097
        %1099 = vrot.lane.b32.xlu0 %v575, 12
        %v1100 = vpop.permute.xlu0 %1099
        %1101 = vrot.lane.b32.xlu0 %v576, 12
        %v1102 = vpop.permute.xlu0 %1101
        %1103 = vrot.lane.b32.xlu0 %v577, 12
        %v1104 = vpop.permute.xlu0 %1103
        %1105 = vrot.lane.b32.xlu0 %v578, 12
        %v1106 = vpop.permute.xlu0 %1105
        %1107 = vrot.lane.b32.xlu0 %v579, 12
        %v1108 = vpop.permute.xlu0 %1107
        %1109 = vrot.lane.b32.xlu0 %v580, 12
        %v1110 = vpop.permute.xlu0 %1109
        %1111 = vrot.lane.b32.xlu0 %v581, 12
        %v1112 = vpop.permute.xlu0 %1111
        %1113 = vrot.lane.b32.xlu0 %v1066, 12
        %v1114 = vpop.permute.xlu0 %1113
        %vm1131 = vcmask 130144
        %1132 = vst.msk [vmem:[#allocation3] sm:$0xff] %vm1131, %v1084
        %1133 = vst.msk [vmem:[#allocation3 + $0x8] sm:$0xff] %vm1131, %v1086
        %1134 = vst.msk [vmem:[#allocation3 + $0x10] sm:$0xff] %vm1131, %v1088
        %1135 = vst.msk [vmem:[#allocation3 + $0x18] sm:$0xff] %vm1131, %v1090
        %1136 = vst.msk [vmem:[#allocation3 + $0x20] sm:$0xff] %vm1131, %v1092
        %1137 = vst.msk [vmem:[#allocation3 + $0x28] sm:$0xff] %vm1131, %v1094
        %1138 = vst.msk [vmem:[#allocation3 + $0x30] sm:$0xff] %vm1131, %v1096
        %1139 = vst.msk [vmem:[#allocation3 + $0x38] sm:$0xff] %vm1131, %v1098
        %1140 = vst.msk [vmem:[#allocation3 + $0x40] sm:$0xff] %vm1131, %v1100
        %1141 = vst.msk [vmem:[#allocation3 + $0x48] sm:$0xff] %vm1131, %v1102
        %1142 = vst.msk [vmem:[#allocation3 + $0x50] sm:$0xff] %vm1131, %v1104
        %1143 = vst.msk [vmem:[#allocation3 + $0x58] sm:$0xff] %vm1131, %v1106
        %1144 = vst.msk [vmem:[#allocation3 + $0x60] sm:$0xff] %vm1131, %v1108
        %1145 = vst.msk [vmem:[#allocation3 + $0x68] sm:$0xff] %vm1131, %v1110
        %1146 = vst.msk [vmem:[#allocation3 + $0x70] sm:$0xff] %vm1131, %v1112
        %1147 = vst.msk [vmem:[#allocation3 + $0x78] sm:$0xff] %vm1131, %v1114
        %v1151 = vrot.slane %v560, 1
        %v1152 = vrot.slane %v561, 1
        %v1153 = vsel %vm646, %v1151, %v1152
        %v1154 = vrot.slane %v562, 1
        %v1155 = vsel %vm646, %v1152, %v1154
        %v1158 = vpack.c.bf16 %v1155, %v1153
        %1160 = vrot.lane.b32.xlu0 %v760, 16
        %v1161 = vpop.permute.xlu0 %1160
        %1162 = vrot.lane.b32.xlu0 %v761, 16
        %v1163 = vpop.permute.xlu0 %1162
        %1164 = vrot.lane.b32.xlu0 %v762, 16
        %v1165 = vpop.permute.xlu0 %1164
        %1166 = vrot.lane.b32.xlu0 %v763, 16
        %v1167 = vpop.permute.xlu0 %1166
        %1168 = vrot.lane.b32.xlu0 %v764, 16
        %v1169 = vpop.permute.xlu0 %1168
        %1170 = vrot.lane.b32.xlu0 %v765, 16
        %v1171 = vpop.permute.xlu0 %1170
        %1172 = vrot.lane.b32.xlu0 %v766, 16
        %v1173 = vpop.permute.xlu0 %1172
        %1174 = vrot.lane.b32.xlu0 %v767, 16
        %v1175 = vpop.permute.xlu0 %1174
        %1176 = vrot.lane.b32.xlu0 %v768, 16
        %v1177 = vpop.permute.xlu0 %1176
        %1178 = vrot.lane.b32.xlu0 %v769, 16
        %v1179 = vpop.permute.xlu0 %1178
        %1180 = vrot.lane.b32.xlu0 %v770, 16
        %v1181 = vpop.permute.xlu0 %1180
        %1182 = vrot.lane.b32.xlu0 %v771, 16
        %v1183 = vpop.permute.xlu0 %1182
        %1184 = vrot.lane.b32.xlu0 %v772, 16
        %v1185 = vpop.permute.xlu0 %1184
        %1186 = vrot.lane.b32.xlu0 %v773, 16
        %v1187 = vpop.permute.xlu0 %1186
        %1188 = vrot.lane.b32.xlu0 %v774, 16
        %v1189 = vpop.permute.xlu0 %1188
        %1190 = vrot.lane.b32.xlu0 %v1158, 16
        %v1191 = vpop.permute.xlu0 %1190
        %vm1208 = vcmask 162944
        %1209 = vst.msk [vmem:[#allocation3] sm:$0xff] %vm1208, %v1161
        %1210 = vst.msk [vmem:[#allocation3 + $0x8] sm:$0xff] %vm1208, %v1163
        %1211 = vst.msk [vmem:[#allocation3 + $0x10] sm:$0xff] %vm1208, %v1165
        %1212 = vst.msk [vmem:[#allocation3 + $0x18] sm:$0xff] %vm1208, %v1167
        %1213 = vst.msk [vmem:[#allocation3 + $0x20] sm:$0xff] %vm1208, %v1169
        %1214 = vst.msk [vmem:[#allocation3 + $0x28] sm:$0xff] %vm1208, %v1171
        %1215 = vst.msk [vmem:[#allocation3 + $0x30] sm:$0xff] %vm1208, %v1173
        %1216 = vst.msk [vmem:[#allocation3 + $0x38] sm:$0xff] %vm1208, %v1175
        %1217 = vst.msk [vmem:[#allocation3 + $0x40] sm:$0xff] %vm1208, %v1177
        %1218 = vst.msk [vmem:[#allocation3 + $0x48] sm:$0xff] %vm1208, %v1179
        %1219 = vst.msk [vmem:[#allocation3 + $0x50] sm:$0xff] %vm1208, %v1181
        %1220 = vst.msk [vmem:[#allocation3 + $0x58] sm:$0xff] %vm1208, %v1183
        %1221 = vst.msk [vmem:[#allocation3 + $0x60] sm:$0xff] %vm1208, %v1185
        %1222 = vst.msk [vmem:[#allocation3 + $0x68] sm:$0xff] %vm1208, %v1187
        %1223 = vst.msk [vmem:[#allocation3 + $0x70] sm:$0xff] %vm1208, %v1189
        %1224 = vst.msk [vmem:[#allocation3 + $0x78] sm:$0xff] %vm1208, %v1191
        %v1225 = vrot.slane %v560, 2
        %v1226 = vrot.slane %v561, 2
        %v1227 = vsel %vm856, %v1225, %v1226
        %v1228 = vrot.slane %v562, 2
        %v1229 = vsel %vm856, %v1226, %v1228
        %v1232 = vpack.c.bf16 %v1229, %v1227
        %1234 = vrot.lane.b32.xlu0 %v970, 20
        %v1235 = vpop.permute.xlu0 %1234
        %1236 = vrot.lane.b32.xlu0 %v971, 20
        %v1237 = vpop.permute.xlu0 %1236
        %1238 = vrot.lane.b32.xlu0 %v972, 20
        %v1239 = vpop.permute.xlu0 %1238
        %1240 = vrot.lane.b32.xlu0 %v973, 20
        %v1241 = vpop.permute.xlu0 %1240
        %1242 = vrot.lane.b32.xlu0 %v974, 20
        %v1243 = vpop.permute.xlu0 %1242
        %1244 = vrot.lane.b32.xlu0 %v975, 20
        %v1245 = vpop.permute.xlu0 %1244
        %1246 = vrot.lane.b32.xlu0 %v976, 20
        %v1247 = vpop.permute.xlu0 %1246
        %1248 = vrot.lane.b32.xlu0 %v977, 20
        %v1249 = vpop.permute.xlu0 %1248
        %1250 = vrot.lane.b32.xlu0 %v978, 20
        %v1251 = vpop.permute.xlu0 %1250
        %1252 = vrot.lane.b32.xlu0 %v979, 20
        %v1253 = vpop.permute.xlu0 %1252
        %1254 = vrot.lane.b32.xlu0 %v980, 20
        %v1255 = vpop.permute.xlu0 %1254
        %1256 = vrot.lane.b32.xlu0 %v981, 20
        %v1257 = vpop.permute.xlu0 %1256
        %1258 = vrot.lane.b32.xlu0 %v982, 20
        %v1259 = vpop.permute.xlu0 %1258
        %1260 = vrot.lane.b32.xlu0 %v983, 20
        %v1261 = vpop.permute.xlu0 %1260
        %1262 = vrot.lane.b32.xlu0 %v984, 20
        %v1263 = vpop.permute.xlu0 %1262
        %1264 = vrot.lane.b32.xlu0 %v1232, 20
        %v1265 = vpop.permute.xlu0 %1264
        %vm1282 = vcmask 195744
        %1283 = vst.msk [vmem:[#allocation3] sm:$0xff] %vm1282, %v1235
        %1284 = vst.msk [vmem:[#allocation3 + $0x8] sm:$0xff] %vm1282, %v1237
        %1285 = vst.msk [vmem:[#allocation3 + $0x10] sm:$0xff] %vm1282, %v1239
        %1286 = vst.msk [vmem:[#allocation3 + $0x18] sm:$0xff] %vm1282, %v1241
        %1287 = vst.msk [vmem:[#allocation3 + $0x20] sm:$0xff] %vm1282, %v1243
        %1288 = vst.msk [vmem:[#allocation3 + $0x28] sm:$0xff] %vm1282, %v1245
        %1289 = vst.msk [vmem:[#allocation3 + $0x30] sm:$0xff] %vm1282, %v1247
        %1290 = vst.msk [vmem:[#allocation3 + $0x38] sm:$0xff] %vm1282, %v1249
        %1291 = vst.msk [vmem:[#allocation3 + $0x40] sm:$0xff] %vm1282, %v1251
        %1292 = vst.msk [vmem:[#allocation3 + $0x48] sm:$0xff] %vm1282, %v1253
        %1293 = vst.msk [vmem:[#allocation3 + $0x50] sm:$0xff] %vm1282, %v1255
        %1294 = vst.msk [vmem:[#allocation3 + $0x58] sm:$0xff] %vm1282, %v1257
        %1295 = vst.msk [vmem:[#allocation3 + $0x60] sm:$0xff] %vm1282, %v1259
        %1296 = vst.msk [vmem:[#allocation3 + $0x68] sm:$0xff] %vm1282, %v1261
        %1297 = vst.msk [vmem:[#allocation3 + $0x70] sm:$0xff] %vm1282, %v1263
        %1298 = vst.msk [vmem:[#allocation3 + $0x78] sm:$0xff] %vm1282, %v1265
        %v1299 = vpack.c.bf16 %v564, %v563
        %1301 = vrot.lane.b32.xlu0 %v568, 24
        %v1302 = vpop.permute.xlu0 %1301
        %1303 = vrot.lane.b32.xlu0 %v569, 24
        %v1304 = vpop.permute.xlu0 %1303
        %1305 = vrot.lane.b32.xlu0 %v570, 24
        %v1306 = vpop.permute.xlu0 %1305
        %1307 = vrot.lane.b32.xlu0 %v571, 24
        %v1308 = vpop.permute.xlu0 %1307
        %1309 = vrot.lane.b32.xlu0 %v572, 24
        %v1310 = vpop.permute.xlu0 %1309
        %1311 = vrot.lane.b32.xlu0 %v573, 24
        %v1312 = vpop.permute.xlu0 %1311
        %1313 = vrot.lane.b32.xlu0 %v574, 24
        %v1314 = vpop.permute.xlu0 %1313
        %1315 = vrot.lane.b32.xlu0 %v575, 24
        %v1316 = vpop.permute.xlu0 %1315
        %1317 = vrot.lane.b32.xlu0 %v576, 24
        %v1318 = vpop.permute.xlu0 %1317
        %1319 = vrot.lane.b32.xlu0 %v577, 24
        %v1320 = vpop.permute.xlu0 %1319
        %1321 = vrot.lane.b32.xlu0 %v578, 24
        %v1322 = vpop.permute.xlu0 %1321
        %1323 = vrot.lane.b32.xlu0 %v579, 24
        %v1324 = vpop.permute.xlu0 %1323
        %1325 = vrot.lane.b32.xlu0 %v580, 24
        %v1326 = vpop.permute.xlu0 %1325
        %1327 = vrot.lane.b32.xlu0 %v581, 24
        %v1328 = vpop.permute.xlu0 %1327
        %1329 = vrot.lane.b32.xlu0 %v1066, 24
        %v1330 = vpop.permute.xlu0 %1329
        %1331 = vrot.lane.b32.xlu0 %v1299, 24
        %v1332 = vpop.permute.xlu0 %1331
        %vm1349 = vcmask 228544
        %1350 = vst.msk [vmem:[#allocation3] sm:$0xff] %vm1349, %v1302
        %1351 = vst.msk [vmem:[#allocation3 + $0x8] sm:$0xff] %vm1349, %v1304
        %1352 = vst.msk [vmem:[#allocation3 + $0x10] sm:$0xff] %vm1349, %v1306
        %1353 = vst.msk [vmem:[#allocation3 + $0x18] sm:$0xff] %vm1349, %v1308
        %1354 = vst.msk [vmem:[#allocation3 + $0x20] sm:$0xff] %vm1349, %v1310
        %1355 = vst.msk [vmem:[#allocation3 + $0x28] sm:$0xff] %vm1349, %v1312
        %1356 = vst.msk [vmem:[#allocation3 + $0x30] sm:$0xff] %vm1349, %v1314
        %1357 = vst.msk [vmem:[#allocation3 + $0x38] sm:$0xff] %vm1349, %v1316
        %1358 = vst.msk [vmem:[#allocation3 + $0x40] sm:$0xff] %vm1349, %v1318
        %1359 = vst.msk [vmem:[#allocation3 + $0x48] sm:$0xff] %vm1349, %v1320
        %1360 = vst.msk [vmem:[#allocation3 + $0x50] sm:$0xff] %vm1349, %v1322
        %1361 = vst.msk [vmem:[#allocation3 + $0x58] sm:$0xff] %vm1349, %v1324
        %1362 = vst.msk [vmem:[#allocation3 + $0x60] sm:$0xff] %vm1349, %v1326
        %1363 = vst.msk [vmem:[#allocation3 + $0x68] sm:$0xff] %vm1349, %v1328
        %1364 = vst.msk [vmem:[#allocation3 + $0x70] sm:$0xff] %vm1349, %v1330
        %1365 = vst.msk [vmem:[#allocation3 + $0x78] sm:$0xff] %vm1349, %v1332
        %v1369 = vrot.slane %v563, 1
        %v1370 = vrot.slane %v564, 1
        %v1371 = vsel %vm646, %v1369, %v1370
        %v1372 = vrot.slane %v565, 1
        %v1373 = vsel %vm646, %v1370, %v1372
        %v1376 = vpack.c.bf16 %v1373, %v1371
        %1378 = vrot.lane.b32.xlu0 %v761, 28
        %v1379 = vpop.permute.xlu0 %1378
        %1380 = vrot.lane.b32.xlu0 %v762, 28
        %v1381 = vpop.permute.xlu0 %1380
        %1382 = vrot.lane.b32.xlu0 %v763, 28
        %v1383 = vpop.permute.xlu0 %1382
        %1384 = vrot.lane.b32.xlu0 %v764, 28
        %v1385 = vpop.permute.xlu0 %1384
        %1386 = vrot.lane.b32.xlu0 %v765, 28
        %v1387 = vpop.permute.xlu0 %1386
        %1388 = vrot.lane.b32.xlu0 %v766, 28
        %v1389 = vpop.permute.xlu0 %1388
        %1390 = vrot.lane.b32.xlu0 %v767, 28
        %v1391 = vpop.permute.xlu0 %1390
        %1392 = vrot.lane.b32.xlu0 %v768, 28
        %v1393 = vpop.permute.xlu0 %1392
        %1394 = vrot.lane.b32.xlu0 %v769, 28
        %v1395 = vpop.permute.xlu0 %1394
        %1396 = vrot.lane.b32.xlu0 %v770, 28
        %v1397 = vpop.permute.xlu0 %1396
        %1398 = vrot.lane.b32.xlu0 %v771, 28
        %v1399 = vpop.permute.xlu0 %1398
        %1400 = vrot.lane.b32.xlu0 %v772, 28
        %v1401 = vpop.permute.xlu0 %1400
        %1402 = vrot.lane.b32.xlu0 %v773, 28
        %v1403 = vpop.permute.xlu0 %1402
        %1404 = vrot.lane.b32.xlu0 %v774, 28
        %v1405 = vpop.permute.xlu0 %1404
        %1406 = vrot.lane.b32.xlu0 %v1158, 28
        %v1407 = vpop.permute.xlu0 %1406
        %1408 = vrot.lane.b32.xlu0 %v1376, 28
        %v1409 = vpop.permute.xlu0 %1408
        %vm1426 = vcmask 261344
        %1427 = vst.msk [vmem:[#allocation3] sm:$0xff] %vm1426, %v1379
        %1428 = vst.msk [vmem:[#allocation3 + $0x8] sm:$0xff] %vm1426, %v1381
        %1429 = vst.msk [vmem:[#allocation3 + $0x10] sm:$0xff] %vm1426, %v1383
        %1430 = vst.msk [vmem:[#allocation3 + $0x18] sm:$0xff] %vm1426, %v1385
        %1431 = vst.msk [vmem:[#allocation3 + $0x20] sm:$0xff] %vm1426, %v1387
        %1432 = vst.msk [vmem:[#allocation3 + $0x28] sm:$0xff] %vm1426, %v1389
        %1433 = vst.msk [vmem:[#allocation3 + $0x30] sm:$0xff] %vm1426, %v1391
        %1434 = vst.msk [vmem:[#allocation3 + $0x38] sm:$0xff] %vm1426, %v1393
        %1435 = vst.msk [vmem:[#allocation3 + $0x40] sm:$0xff] %vm1426, %v1395
        %1436 = vst.msk [vmem:[#allocation3 + $0x48] sm:$0xff] %vm1426, %v1397
        %1437 = vst.msk [vmem:[#allocation3 + $0x50] sm:$0xff] %vm1426, %v1399
        %1438 = vst.msk [vmem:[#allocation3 + $0x58] sm:$0xff] %vm1426, %v1401
        %1439 = vst.msk [vmem:[#allocation3 + $0x60] sm:$0xff] %vm1426, %v1403
        %1440 = vst.msk [vmem:[#allocation3 + $0x68] sm:$0xff] %vm1426, %v1405
        %1441 = vst.msk [vmem:[#allocation3 + $0x70] sm:$0xff] %vm1426, %v1407
        %1442 = vst.msk [vmem:[#allocation3 + $0x78] sm:$0xff] %vm1426, %v1409
        %v1443 = vrot.slane %v563, 2
        %v1444 = vrot.slane %v564, 2
        %v1445 = vsel %vm856, %v1443, %v1444
        %v1446 = vrot.slane %v565, 2
        %v1447 = vsel %vm856, %v1444, %v1446
        %v1450 = vpack.c.bf16 %v1447, %v1445
        %1452 = vrot.lane.b32.xlu0 %v971, 32
        %v1453 = vpop.permute.xlu0 %1452
        %1454 = vrot.lane.b32.xlu0 %v972, 32
        %v1455 = vpop.permute.xlu0 %1454
        %1456 = vrot.lane.b32.xlu0 %v973, 32
        %v1457 = vpop.permute.xlu0 %1456
        %1458 = vrot.lane.b32.xlu0 %v974, 32
        %v1459 = vpop.permute.xlu0 %1458
        %1460 = vrot.lane.b32.xlu0 %v975, 32
        %v1461 = vpop.permute.xlu0 %1460
        %1462 = vrot.lane.b32.xlu0 %v976, 32
        %v1463 = vpop.permute.xlu0 %1462
        %1464 = vrot.lane.b32.xlu0 %v977, 32
        %v1465 = vpop.permute.xlu0 %1464
        %1466 = vrot.lane.b32.xlu0 %v978, 32
        %v1467 = vpop.permute.xlu0 %1466
        %1468 = vrot.lane.b32.xlu0 %v979, 32
        %v1469 = vpop.permute.xlu0 %1468
        %1470 = vrot.lane.b32.xlu0 %v980, 32
        %v1471 = vpop.permute.xlu0 %1470
        %1472 = vrot.lane.b32.xlu0 %v981, 32
        %v1473 = vpop.permute.xlu0 %1472
        %1474 = vrot.lane.b32.xlu0 %v982, 32
        %v1475 = vpop.permute.xlu0 %1474
        %1476 = vrot.lane.b32.xlu0 %v983, 32
        %v1477 = vpop.permute.xlu0 %1476
        %1478 = vrot.lane.b32.xlu0 %v984, 32
        %v1479 = vpop.permute.xlu0 %1478
        %1480 = vrot.lane.b32.xlu0 %v1232, 32
        %v1481 = vpop.permute.xlu0 %1480
        %1482 = vrot.lane.b32.xlu0 %v1450, 32
        %v1483 = vpop.permute.xlu0 %1482
        %vm1500 = vcmask 294144
        %1501 = vst.msk [vmem:[#allocation3] sm:$0xff] %vm1500, %v1453
        %1502 = vst.msk [vmem:[#allocation3 + $0x8] sm:$0xff] %vm1500, %v1455
        %1503 = vst.msk [vmem:[#allocation3 + $0x10] sm:$0xff] %vm1500, %v1457
        %1504 = vst.msk [vmem:[#allocation3 + $0x18] sm:$0xff] %vm1500, %v1459
        %1505 = vst.msk [vmem:[#allocation3 + $0x20] sm:$0xff] %vm1500, %v1461
        %1506 = vst.msk [vmem:[#allocation3 + $0x28] sm:$0xff] %vm1500, %v1463
        %1507 = vst.msk [vmem:[#allocation3 + $0x30] sm:$0xff] %vm1500, %v1465
        %1508 = vst.msk [vmem:[#allocation3 + $0x38] sm:$0xff] %vm1500, %v1467
        %1509 = vst.msk [vmem:[#allocation3 + $0x40] sm:$0xff] %vm1500, %v1469
        %1510 = vst.msk [vmem:[#allocation3 + $0x48] sm:$0xff] %vm1500, %v1471
        %1511 = vst.msk [vmem:[#allocation3 + $0x50] sm:$0xff] %vm1500, %v1473
        %1512 = vst.msk [vmem:[#allocation3 + $0x58] sm:$0xff] %vm1500, %v1475
        %1513 = vst.msk [vmem:[#allocation3 + $0x60] sm:$0xff] %vm1500, %v1477
        %1514 = vst.msk [vmem:[#allocation3 + $0x68] sm:$0xff] %vm1500, %v1479
        %1515 = vst.msk [vmem:[#allocation3 + $0x70] sm:$0xff] %vm1500, %v1481
        %1516 = vst.msk [vmem:[#allocation3 + $0x78] sm:$0xff] %vm1500, %v1483
      $region44: #{resblock2d_forward.5} parent=39 // pred_fallthru
        _
      %v1517 = vld [vmem:[#allocation3] sm:$0xff]
      %v1518 = vld [vmem:[#allocation3 + $0x8] sm:$0xff]
      %v1519 = vld [vmem:[#allocation3 + $0x10] sm:$0xff]
      %v1520 = vld [vmem:[#allocation3 + $0x18] sm:$0xff]
      %v1521 = vld [vmem:[#allocation3 + $0x20] sm:$0xff]
      %v1522 = vld [vmem:[#allocation3 + $0x28] sm:$0xff]
      %v1523 = vld [vmem:[#allocation3 + $0x30] sm:$0xff]
      %v1524 = vld [vmem:[#allocation3 + $0x38] sm:$0xff]
      %v1525 = vld [vmem:[#allocation3 + $0x40] sm:$0xff]
      %v1526 = vld [vmem:[#allocation3 + $0x48] sm:$0xff]
      %v1527 = vld [vmem:[#allocation3 + $0x50] sm:$0xff]
      %v1528 = vld [vmem:[#allocation3 + $0x58] sm:$0xff]
      %v1529 = vld [vmem:[#allocation3 + $0x60] sm:$0xff]
      %v1530 = vld [vmem:[#allocation3 + $0x68] sm:$0xff]
      %v1531 = vld [vmem:[#allocation3 + $0x70] sm:$0xff]
      %v1532 = vld [vmem:[#allocation3 + $0x78] sm:$0xff]
      %v1533 = vld [vmem:[%s264] sm:$0xf]
      %v1534 = vld [vmem:[%s264 + $0x4] sm:$0xf]
      %v1535 = vld [vmem:[%s264 + $0x8] sm:$0xf]
      %v1536 = vld [vmem:[%s264 + $0xc] sm:$0xf]
      %v1537 = vld [vmem:[%s264 + $0x10] sm:$0x3]
      %v1538 = vld [vmem:[%s267] sm:$0x1]
      %v1540 = vlaneseq
      %v1541 = vshrl.u32 %v1540, 7
      %v1542 = vsub.s32 0, %v1541
      %v1543 = vrot.slane %v1538, %v1542
      %v1550 = vunpack.c.l.b16 %v1533
      %v1551 = vunpack.c.l.b16 %v1534
      %v1552 = vunpack.c.l.b16 %v1535
      %v1553 = vunpack.c.l.b16 %v1536
      %v1554 = vunpack.c.l.b16 %v1537
      %v1555 = vpack.c.b16 %v1551, %v1550
      %v1556 = vpack.c.b16 %v1553, %v1552
      %v1557 = vpack.c.b16 %v1554, %v1554
      %vm1560 = vcmask 293888
      %v1562 = vsel %vm1560, %v1517, 0
      %v1565 = vsel %vm1560, %v1518, 0
      %v1568 = vsel %vm1560, %v1519, 0
      %v1571 = vsel %vm1560, %v1520, 0
      %v1574 = vsel %vm1560, %v1521, 0
      %v1577 = vsel %vm1560, %v1522, 0
      %v1580 = vsel %vm1560, %v1523, 0
      %v1583 = vsel %vm1560, %v1524, 0
      %v1586 = vsel %vm1560, %v1525, 0
      %v1589 = vsel %vm1560, %v1526, 0
      %v1592 = vsel %vm1560, %v1527, 0
      %v1595 = vsel %vm1560, %v1528, 0
      %v1598 = vsel %vm1560, %v1529, 0
      %v1601 = vsel %vm1560, %v1530, 0
      %v1604 = vsel %vm1560, %v1531, 0
      %v1607 = vsel %vm1560, %v1532, 0
      %vm1609 = vcmask 1041408
      %v1611 = vsel %vm1609, %v1557, 0
      %1613 = vmatprep.subr.bf16.mxu0 0
      %1614 = vmatpush1.bf16.msra.mxu0 %v1555
      %1615 = vmatprep.subr.bf16.mxu0 0
      %1616 = vmatpush1.bf16.msra.mxu0 %v1556
      %1617 = vmatprep.subr.bf16.mxu0 0
      %1618 = vmatpush1.bf16.msra.mxu0 %v1611
      %1619 = vmatprep.subr.bf16.mxu0 0
      %1620 = vmatpush1.bf16.msra.mxu0 0
      %1621 = vmatprep.subr.bf16.mxu0 0
      %1622 = vmatpush1.bf16.msra.mxu0 0
      %1623 = vmatprep.subr.bf16.mxu0 0
      %1624 = vmatpush1.bf16.msra.mxu0 0
      %1625 = vmatprep.subr.bf16.mxu0 0
      %1626 = vmatpush1.bf16.msra.mxu0 0
      %1627 = vmatprep.subr.bf16.mxu0 0
      %1628 = vmatpush1.bf16.msra.mxu0 0
      %1629 = vmatprep.subr.bf16.mxu0 0
      %1630 = vmatpush1.bf16.msra.mxu0 0
      %1631 = vmatprep.subr.bf16.mxu0 0
      %1632 = vmatpush1.bf16.msra.mxu0 0
      %1633 = vmatprep.subr.bf16.mxu0 0
      %1634 = vmatpush1.bf16.msra.mxu0 0
      %1635 = vmatprep.subr.bf16.mxu0 0
      %1636 = vmatpush1.bf16.msra.mxu0 0
      %1637 = vmatprep.subr.bf16.mxu0 0
      %1638 = vmatpush1.bf16.msra.mxu0 0
      %1639 = vmatprep.subr.bf16.mxu0 0
      %1640 = vmatpush1.bf16.msra.mxu0 0
      %1641 = vmatprep.subr.bf16.mxu0 0
      %1642 = vmatpush1.bf16.msra.mxu0 0
      %1643 = vmatprep.subr.bf16.mxu0 0
      %1644 = vmatpush1.bf16.msra.mxu0 0
      %1645 = vmatprep.mubr.bf16.mxu0 0
      %1646 = vmatmul.mubr.bf16.gmra.mrb[0].mxu0 %v1562
      %v1647 = vpop.f32.mrb[0].mxu0
      %v1648 = vadd.f32 %v1543, %v1647
      %v1649 = vpop.f32.mrb[0].mxu0
      %v1650 = vpop.f32.mrb[0].mxu0
      %v1651 = vadd.f32 %v1543, %v1650
      %v1652 = vpop.f32.mrb[0].mxu0
      %1653 = vmatprep.mubr.bf16.mxu0 0
      %1654 = vmatmul.mubr.bf16.gmra.mrb[0].mxu0 %v1565
      %v1655 = vpop.f32.mrb[0].mxu0
      %v1656 = vadd.f32 %v1543, %v1655
      %v1657 = vpop.f32.mrb[0].mxu0
      %v1658 = vpop.f32.mrb[0].mxu0
      %v1659 = vadd.f32 %v1543, %v1658
      %v1660 = vpop.f32.mrb[0].mxu0
      %1661 = vmatprep.mubr.bf16.mxu0 0
      %1662 = vmatmul.mubr.bf16.gmra.mrb[0].mxu0 %v1568
      %v1663 = vpop.f32.mrb[0].mxu0
      %v1664 = vadd.f32 %v1543, %v1663
      %v1665 = vpop.f32.mrb[0].mxu0
      %v1666 = vpop.f32.mrb[0].mxu0
      %v1667 = vadd.f32 %v1543, %v1666
      %v1668 = vpop.f32.mrb[0].mxu0
      %1669 = vmatprep.mubr.bf16.mxu0 0
      %1670 = vmatmul.mubr.bf16.gmra.mrb[0].mxu0 %v1571
      %v1671 = vpop.f32.mrb[0].mxu0
      %v1672 = vadd.f32 %v1543, %v1671
      %v1673 = vpop.f32.mrb[0].mxu0
      %v1674 = vpop.f32.mrb[0].mxu0
      %v1675 = vadd.f32 %v1543, %v1674
      %v1676 = vpop.f32.mrb[0].mxu0
      %1677 = vmatprep.mubr.bf16.mxu0 0
      %1678 = vmatmul.mubr.bf16.gmra.mrb[0].mxu0 %v1574
      %v1679 = vpop.f32.mrb[0].mxu0
      %v1680 = vadd.f32 %v1543, %v1679
      %v1681 = vpop.f32.mrb[0].mxu0
      %v1682 = vpop.f32.mrb[0].mxu0
      %v1683 = vadd.f32 %v1543, %v1682
      %v1684 = vpop.f32.mrb[0].mxu0
      %1685 = vmatprep.mubr.bf16.mxu0 0
      %1686 = vmatmul.mubr.bf16.gmra.mrb[0].mxu0 %v1577
      %v1687 = vpop.f32.mrb[0].mxu0
      %v1688 = vadd.f32 %v1543, %v1687
      %v1689 = vpop.f32.mrb[0].mxu0
      %v1690 = vpop.f32.mrb[0].mxu0
      %v1691 = vadd.f32 %v1543, %v1690
      %v1692 = vpop.f32.mrb[0].mxu0
      %1693 = vmatprep.mubr.bf16.mxu0 0
      %1694 = vmatmul.mubr.bf16.gmra.mrb[0].mxu0 %v1580
      %v1695 = vpop.f32.mrb[0].mxu0
      %v1696 = vadd.f32 %v1543, %v1695
      %v1697 = vpop.f32.mrb[0].mxu0
      %v1698 = vpop.f32.mrb[0].mxu0
      %v1699 = vadd.f32 %v1543, %v1698
      %v1700 = vpop.f32.mrb[0].mxu0
      %1701 = vmatprep.mubr.bf16.mxu0 0
      %1702 = vmatmul.mubr.bf16.gmra.mrb[0].mxu0 %v1583
      %v1703 = vpop.f32.mrb[0].mxu0
      %v1704 = vadd.f32 %v1543, %v1703
      %v1705 = vpop.f32.mrb[0].mxu0
      %v1706 = vpop.f32.mrb[0].mxu0
      %v1707 = vadd.f32 %v1543, %v1706
      %v1708 = vpop.f32.mrb[0].mxu0
      %1709 = vmatprep.mubr.bf16.mxu0 0
      %1710 = vmatmul.mubr.bf16.gmra.mrb[0].mxu0 %v1586
      %v1711 = vpop.f32.mrb[0].mxu0
      %v1712 = vadd.f32 %v1543, %v1711
      %v1713 = vpop.f32.mrb[0].mxu0
      %v1714 = vpop.f32.mrb[0].mxu0
      %v1715 = vadd.f32 %v1543, %v1714
      %v1716 = vpop.f32.mrb[0].mxu0
      %1717 = vmatprep.mubr.bf16.mxu0 0
      %1718 = vmatmul.mubr.bf16.gmra.mrb[0].mxu0 %v1589
      %v1719 = vpop.f32.mrb[0].mxu0
      %v1720 = vadd.f32 %v1543, %v1719
      %v1721 = vpop.f32.mrb[0].mxu0
      %v1722 = vpop.f32.mrb[0].mxu0
      %v1723 = vadd.f32 %v1543, %v1722
      %v1724 = vpop.f32.mrb[0].mxu0
      %1725 = vmatprep.mubr.bf16.mxu0 0
      %1726 = vmatmul.mubr.bf16.gmra.mrb[0].mxu0 %v1592
      %v1727 = vpop.f32.mrb[0].mxu0
      %v1728 = vadd.f32 %v1543, %v1727
      %v1729 = vpop.f32.mrb[0].mxu0
      %v1730 = vpop.f32.mrb[0].mxu0
      %v1731 = vadd.f32 %v1543, %v1730
      %v1732 = vpop.f32.mrb[0].mxu0
      %1733 = vmatprep.mubr.bf16.mxu0 0
      %1734 = vmatmul.mubr.bf16.gmra.mrb[0].mxu0 %v1595
      %v1735 = vpop.f32.mrb[0].mxu0
      %v1736 = vadd.f32 %v1543, %v1735
      %v1737 = vpop.f32.mrb[0].mxu0
      %v1738 = vpop.f32.mrb[0].mxu0
      %v1739 = vadd.f32 %v1543, %v1738
      %v1740 = vpop.f32.mrb[0].mxu0
      %1741 = vmatprep.mubr.bf16.mxu0 0
      %1742 = vmatmul.mubr.bf16.gmra.mrb[0].mxu0 %v1598
      %v1743 = vpop.f32.mrb[0].mxu0
      %v1744 = vadd.f32 %v1543, %v1743
      %v1745 = vpop.f32.mrb[0].mxu0
      %v1746 = vpop.f32.mrb[0].mxu0
      %v1747 = vadd.f32 %v1543, %v1746
      %v1748 = vpop.f32.mrb[0].mxu0
      %1749 = vmatprep.mubr.bf16.mxu0 0
      %1750 = vmatmul.mubr.bf16.gmra.mrb[0].mxu0 %v1601
      %v1751 = vpop.f32.mrb[0].mxu0
      %v1752 = vadd.f32 %v1543, %v1751
      %v1753 = vpop.f32.mrb[0].mxu0
      %v1754 = vpop.f32.mrb[0].mxu0
      %v1755 = vadd.f32 %v1543, %v1754
      %v1756 = vpop.f32.mrb[0].mxu0
      %1757 = vmatprep.mubr.bf16.mxu0 0
      %1758 = vmatmul.mubr.bf16.gmra.mrb[0].mxu0 %v1604
      %v1759 = vpop.f32.mrb[0].mxu0
      %v1760 = vadd.f32 %v1543, %v1759
      %v1761 = vpop.f32.mrb[0].mxu0
      %v1762 = vpop.f32.mrb[0].mxu0
      %v1763 = vadd.f32 %v1543, %v1762
      %v1764 = vpop.f32.mrb[0].mxu0
      %1765 = vmatprep.mubr.bf16.mxu0 0
      %1766 = vmatmul.mubr.bf16.gmra.mrb[0].mxu0 %v1607
      %v1767 = vpop.f32.mrb[0].mxu0
      %v1768 = vadd.f32 %v1543, %v1767
      %v1769 = vpop.f32.mrb[0].mxu0
      %v1770 = vpop.f32.mrb[0].mxu0
      %v1771 = vadd.f32 %v1543, %v1770
      %v1772 = vpop.f32.mrb[0].mxu0
      %1773 = vdwg.mxu0
      %vm1774 = vcmask 31744
      %1775 = vst.msk [vmem:[%s275] sm:$0xff] %vm1774, %v1648
      %1776 = vst.msk [vmem:[%s275 + $0x8] sm:$0xff] %vm1774, %v1651
      %1777 = vst.msk [vmem:[%s275 + $0x10] sm:$0xff] %vm1774, %v1656
      %1778 = vst.msk [vmem:[%s275 + $0x18] sm:$0xff] %vm1774, %v1659
      %1779 = vst.msk [vmem:[%s275 + $0x20] sm:$0xff] %vm1774, %v1664
      %1780 = vst.msk [vmem:[%s275 + $0x28] sm:$0xff] %vm1774, %v1667
      %1781 = vst.msk [vmem:[%s275 + $0x30] sm:$0xff] %vm1774, %v1672
      %1782 = vst.msk [vmem:[%s275 + $0x38] sm:$0xff] %vm1774, %v1675
      %1783 = vst.msk [vmem:[%s275 + $0x40] sm:$0xff] %vm1774, %v1680
      %1784 = vst.msk [vmem:[%s275 + $0x48] sm:$0xff] %vm1774, %v1683
      %1785 = vst.msk [vmem:[%s275 + $0x50] sm:$0xff] %vm1774, %v1688
      %1786 = vst.msk [vmem:[%s275 + $0x58] sm:$0xff] %vm1774, %v1691
      %1787 = vst.msk [vmem:[%s275 + $0x60] sm:$0xff] %vm1774, %v1696
      %1788 = vst.msk [vmem:[%s275 + $0x68] sm:$0xff] %vm1774, %v1699
      %1789 = vst.msk [vmem:[%s275 + $0x70] sm:$0xff] %vm1774, %v1704
      %1790 = vst.msk [vmem:[%s275 + $0x78] sm:$0xff] %vm1774, %v1707
      %1791 = vst.msk [vmem:[%s275 + $0x80] sm:$0xff] %vm1774, %v1712
      %1792 = vst.msk [vmem:[%s275 + $0x88] sm:$0xff] %vm1774, %v1715
      %1793 = vst.msk [vmem:[%s275 + $0x90] sm:$0xff] %vm1774, %v1720
      %1794 = vst.msk [vmem:[%s275 + $0x98] sm:$0xff] %vm1774, %v1723
      %1795 = vst.msk [vmem:[%s275 + $0xa0] sm:$0xff] %vm1774, %v1728
      %1796 = vst.msk [vmem:[%s275 + $0xa8] sm:$0xff] %vm1774, %v1731
      %1797 = vst.msk [vmem:[%s275 + $0xb0] sm:$0xff] %vm1774, %v1736
      %1798 = vst.msk [vmem:[%s275 + $0xb8] sm:$0xff] %vm1774, %v1739
      %1799 = vst.msk [vmem:[%s275 + $0xc0] sm:$0xff] %vm1774, %v1744
      %1800 = vst.msk [vmem:[%s275 + $0xc8] sm:$0xff] %vm1774, %v1747
      %1801 = vst.msk [vmem:[%s275 + $0xd0] sm:$0xff] %vm1774, %v1752
      %1802 = vst.msk [vmem:[%s275 + $0xd8] sm:$0xff] %vm1774, %v1755
      %1803 = vst.msk [vmem:[%s275 + $0xe0] sm:$0xff] %vm1774, %v1760
      %1804 = vst.msk [vmem:[%s275 + $0xe8] sm:$0xff] %vm1774, %v1763
      %1805 = vst.msk [vmem:[%s275 + $0xf0] sm:$0xff] %vm1774, %v1768
      %1806 = vst.msk [vmem:[%s275 + $0xf8] sm:$0xff] %vm1774, %v1771
      %p1807 = scmp.lt.s32.totalorder %s20, 1
      %s1808 = scalar_select %p1807, %s20, 1
      %p1809 = scmp.lt.s32.totalorder %s21, 0
      %s1810 = scalar_select %p1809, %s21, 0
      %s1811 = smul.addr %s1808, 32
      %s1812 = sadd.s32 %s1810, %s1811
      %s1813 = smul.addr %s1812, 8
      %s1814 = scalar_lea.vmem %s5, %s1813
      // Predicated region
      $region45: #{resblock2d_forward.5} parent=39 // pred_check
        %p1815 = pneg %p168
      $region46: #{resblock2d_forward.5} parent=39 // pred_check_branch
        %1817 = sbr.rel (%p1815) target = $region48
      $region47: #{resblock2d_forward.5} parent=39 // pred_region
        _
      $region48: #{resblock2d_forward.5} parent=39 // pred_fallthru
        _
    $region40: #{resblock2d_forward.5} parent=5 // pred_fallthru
      _
    %p1818 = scmp.le.s32.totalorder 2, %s11
    // Predicated region
    $region49: #{resblock2d_forward.5} parent=5 // pred_check
      %p1819 = pneg %p1818
    $region50: #{resblock2d_forward.5} parent=5 // pred_check_branch
      %1821 = sbr.rel (%p1819) target = $region52
    $region51: #{resblock2d_forward.5} parent=5 // pred_region
      %s1822 = ssub.s32 %s11, 2
      // Predicated region
      $region53: #{resblock2d_forward.5} parent=51 // pred_check
        %p1823 = pneg %p174
      $region54: #{resblock2d_forward.5} parent=51 // pred_check_branch
        %1825 = sbr.rel (%p1823) target = $region56
      $region55: #{resblock2d_forward.5} parent=51 // pred_region
        %p1826 = scmp.lt.s32.totalorder %s22, 1
        %s1827 = scalar_select %p1826, %s22, 1
        %p1828 = scmp.lt.s32.totalorder %s23, 0
        %s1829 = scalar_select %p1828, %s23, 0
        %s1830 = smul.addr %s1827, 32
        %s1831 = sadd.s32 %s1829, %s1830
        %s1832 = smul.addr %s1831, 8
        %s1833 = scalar_lea.vmem %s5, %s1832
      $region56: #{resblock2d_forward.5} parent=51 // pred_fallthru
        _
    $region52: #{resblock2d_forward.5} parent=5 // pred_fallthru
      _
  $region6: #{resblock2d_forward.5} parent=0 // loop_footer
    %s15 = sadd.s32 1, %s11
  $region7: #{resblock2d_forward.5} parent=0 // loop_footer_branch
    %10 = sbr.rel target = $region3
  $region8: #{resblock2d_forward.5} parent=0 // loop_exit
    _

// kernel: resblock2d_forward.7
$region0: #{resblock2d_forward.7}
  #allocation0 [shape = 'u32[]', space=smem, size = 0x4, offset = 0x4, fixed_abs, tag = 'smem constant byte address 0x4 - core index']
  #allocation1 [shape = 'u32[144,128]{1,0:T(1,128)}', space=vmem, size = 0x12000, scoped, tag = 'internal scratch']
  #allocation2 [shape = 'f32[18,18,4]{2,1,0:T(8,128)}', space=vmem, size = 0x36000, scoped, tag = 'scratch operand']
  #allocation3 [shape = 'bf16[256,36]{1,0:T(16,128)(2,1)}', space=vmem, size = 0x10000, scoped, tag = 'scratch operand']
  %s0 = inlined_call_operand.vmem [shape: f32[2,16,16,4], index: 0, kind: input, shape index: {}]
  %s1 = inlined_call_operand.vmem [shape: f32[1,4], index: 1, kind: input, shape index: {}]
  %s2 = inlined_call_operand.vmem [shape: f32[1,4], index: 2, kind: input, shape index: {}]
  %s3 = inlined_call_operand.vmem [shape: bf16[36,4], index: 3, kind: input, shape index: {}]
  %s4 = inlined_call_operand.vmem [shape: f32[1,4], index: 4, kind: input, shape index: {}]
  %s5 = inlined_call_operand.vmem [shape: f32[2,256,4], index: 5, kind: input, shape index: {}]
  %s6 = inlined_call_operand.vmem [shape: f32[2,256,4], index: 6, kind: output, shape index: {}]
  %s7 = sld [smem:[#allocation0]]
  $region61: #{resblock2d_forward.7} parent=0
    _
  %s9 = ssub.s32 1, %s7
  %s10 = scalar_select 0, %s9, %s7
  loop: start=0, step=1, limit=4
  $region2: #{resblock2d_forward.7} parent=0 // loop_pre_header
    _
  $region3: #{resblock2d_forward.7} parent=0 // loop_header
    %s12 = sphi 0, %s16
    %p13 = scmp.ge.s32.totalorder %s12, 4
    %s19 = sphi 0, %s31
    %s20 = sphi 0, %s27
    %s21 = sphi 0, %s19
    %s22 = sphi 0, %s20
    %s23 = sphi 0, %s21
    %s24 = sphi 0, %s22
    %s34 = sphi 0, %s36
    %s37 = sphi 0, %s34
    %s38 = sphi 0, %s37
    %s54 = sphi 0, %s38
    %s58 = sphi 0, %s58
    %s60 = sphi 0, %s58
    %s61 = sphi 0, %s60
    %s75 = sphi 0, %s61
    %s79 = sphi 0, %s79
    %s81 = sphi 0, %s79
    %s82 = sphi 0, %s81
    %s96 = sphi 0, %s82
    %s102 = sphi 0, %s104
    %s105 = sphi 0, %s102
    %s106 = sphi 0, %s105
    %s122 = sphi 0, %s106
    %s128 = sphi 0, %s130
    %s131 = sphi 0, %s128
    %s132 = sphi 0, %s131
    %s148 = sphi 0, %s132
    %s156 = sphi 0, %s158
    %s159 = sphi 0, %s156
    %s160 = sphi 0, %s159
    %s176 = sphi 0, %s160
    %s184 = sphi 0, %s186
    %s187 = sphi 0, %s184
    %s188 = sphi 0, %s187
    %s204 = sphi 0, %s188
  $region4: #{resblock2d_forward.7} parent=0 // loop_header_branch
    %15 = sbr.rel (%p13) target = $region8
  $region5: #{resblock2d_forward.7} parent=0 // loop_body
    %s17 = ssub.s32 %s12, 1
    %s18 = ssub.s32 %s12, 2
    %s25 = sadd.s32 1, %s20
    %p26 = scmp.ge.s32.totalorder %s25, 1
    %s27 = scalar_select %p26, 0, %s25
    %s28 = sadd.s32 1, %s19
    %s29 = scalar_select %p26, %s28, %s19
    %p30 = scmp.ge.s32.totalorder %s29, 2
    %s31 = scalar_select %p30, 0, %s29
    %s32 = ssub.s32 %s19, %s31
    %p33 = scmp.eq.s32.totalorder %s32, 0
    %s35 = sadd.s32 %s34, 1
    %s36 = scalar_select %p33, %s34, %s35
    %p39 = pneg %p33
    %p40 = scmp.eq.s32.totalorder %s12, 1
    %p41 = por %p39, %p40
    %p42 = scmp.ne.s32.totalorder %s34, %s37
    %p43 = scmp.eq.s32.totalorder %s12, 0
    %p44 = por %p42, %p43
    %p45 = scmp.ne.s32.totalorder %s34, %s37
    %p46 = scmp.eq.s32.totalorder %s17, 1
    %p47 = por %p45, %p46
    %p48 = scmp.ne.s32.totalorder %s37, %s38
    %p49 = scmp.eq.s32.totalorder %s17, 0
    %p50 = por %p48, %p49
    %p51 = scmp.ne.s32.totalorder %s37, %s38
    %p52 = scmp.eq.s32.totalorder %s18, 1
    %p53 = por %p51, %p52
    %p55 = scmp.ne.s32.totalorder %s38, %s54
    %p56 = scmp.eq.s32.totalorder %s18, 0
    %p57 = por %p55, %p56
    %s59 = sadd.s32 %s58, 1
    %p62 = scmp.eq.s32.totalorder %s12, 1
    %p63 = scmp.ne.s32.totalorder %s58, %s60
    %p64 = scmp.eq.s32.totalorder %s12, 0
    %p65 = por %p63, %p64
    %p66 = scmp.ne.s32.totalorder %s58, %s60
    %p67 = scmp.eq.s32.totalorder %s17, 1
    %p68 = por %p66, %p67
    %p69 = scmp.ne.s32.totalorder %s60, %s61
    %p70 = scmp.eq.s32.totalorder %s17, 0
    %p71 = por %p69, %p70
    %p72 = scmp.ne.s32.totalorder %s60, %s61
    %p73 = scmp.eq.s32.totalorder %s18, 1
    %p74 = por %p72, %p73
    %p76 = scmp.ne.s32.totalorder %s61, %s75
    %p77 = scmp.eq.s32.totalorder %s18, 0
    %p78 = por %p76, %p77
    %s80 = sadd.s32 %s79, 1
    %p83 = scmp.eq.s32.totalorder %s12, 1
    %p84 = scmp.ne.s32.totalorder %s79, %s81
    %p85 = scmp.eq.s32.totalorder %s12, 0
    %p86 = por %p84, %p85
    %p87 = scmp.ne.s32.totalorder %s79, %s81
    %p88 = scmp.eq.s32.totalorder %s17, 1
    %p89 = por %p87, %p88
    %p90 = scmp.ne.s32.totalorder %s81, %s82
    %p91 = scmp.eq.s32.totalorder %s17, 0
    %p92 = por %p90, %p91
    %p93 = scmp.ne.s32.totalorder %s81, %s82
    %p94 = scmp.eq.s32.totalorder %s18, 1
    %p95 = por %p93, %p94
    %p97 = scmp.ne.s32.totalorder %s82, %s96
    %p98 = scmp.eq.s32.totalorder %s18, 0
    %p99 = por %p97, %p98
    %s100 = ssub.s32 %s20, %s27
    %p101 = scmp.eq.s32.totalorder %s100, 0
    %s103 = sadd.s32 %s102, 1
    %s104 = scalar_select %p101, %s102, %s103
    %p107 = pneg %p101
    %p108 = scmp.eq.s32.totalorder %s12, 1
    %p109 = por %p107, %p108
    %p110 = scmp.ne.s32.totalorder %s102, %s105
    %p111 = scmp.eq.s32.totalorder %s12, 0
    %p112 = por %p110, %p111
    %p113 = scmp.ne.s32.totalorder %s102, %s105
    %p114 = scmp.eq.s32.totalorder %s17, 1
    %p115 = por %p113, %p114
    %p116 = scmp.ne.s32.totalorder %s105, %s106
    %p117 = scmp.eq.s32.totalorder %s17, 0
    %p118 = por %p116, %p117
    %p119 = scmp.ne.s32.totalorder %s105, %s106
    %p120 = scmp.eq.s32.totalorder %s18, 1
    %p121 = por %p119, %p120
    %p123 = scmp.ne.s32.totalorder %s106, %s122
    %p124 = scmp.eq.s32.totalorder %s18, 0
    %p125 = por %p123, %p124
    %s126 = ssub.s32 %s20, %s27
    %p127 = scmp.eq.s32.totalorder %s126, 0
    %s129 = sadd.s32 %s128, 1
    %s130 = scalar_select %p127, %s128, %s129
    %p133 = pneg %p127
    %p134 = scmp.eq.s32.totalorder %s12, 1
    %p135 = por %p133, %p134
    %p136 = scmp.ne.s32.totalorder %s128, %s131
    %p137 = scmp.eq.s32.totalorder %s12, 0
    %p138 = por %p136, %p137
    %p139 = scmp.ne.s32.totalorder %s128, %s131
    %p140 = scmp.eq.s32.totalorder %s17, 1
    %p141 = por %p139, %p140
    %p142 = scmp.ne.s32.totalorder %s131, %s132
    %p143 = scmp.eq.s32.totalorder %s17, 0
    %p144 = por %p142, %p143
    %p145 = scmp.ne.s32.totalorder %s131, %s132
    %p146 = scmp.eq.s32.totalorder %s18, 1
    %p147 = por %p145, %p146
    %p149 = scmp.ne.s32.totalorder %s132, %s148
    %p150 = scmp.eq.s32.totalorder %s18, 0
    %p151 = por %p149, %p150
    %s152 = ssub.s32 %s19, %s31
    %s153 = ssub.s32 %s20, %s27
    %s154 = sor.u32 %s152, %s153
    %p155 = scmp.eq.s32.totalorder %s154, 0
    %s157 = sadd.s32 %s156, 1
    %s158 = scalar_select %p155, %s156, %s157
    %p161 = pneg %p155
    %p162 = scmp.eq.s32.totalorder %s12, 1
    %p163 = por %p161, %p162
    %p164 = scmp.ne.s32.totalorder %s156, %s159
    %p165 = scmp.eq.s32.totalorder %s12, 0
    %p166 = por %p164, %p165
    %p167 = scmp.ne.s32.totalorder %s156, %s159
    %p168 = scmp.eq.s32.totalorder %s17, 1
    %p169 = por %p167, %p168
    %p170 = scmp.ne.s32.totalorder %s159, %s160
    %p171 = scmp.eq.s32.totalorder %s17, 0
    %p172 = por %p170, %p171
    %p173 = scmp.ne.s32.totalorder %s159, %s160
    %p174 = scmp.eq.s32.totalorder %s18, 1
    %p175 = por %p173, %p174
    %p177 = scmp.ne.s32.totalorder %s160, %s176
    %p178 = scmp.eq.s32.totalorder %s18, 0
    %p179 = por %p177, %p178
    %s180 = ssub.s32 %s19, %s31
    %s181 = ssub.s32 %s20, %s27
    %s182 = sor.u32 %s180, %s181
    %p183 = scmp.eq.s32.totalorder %s182, 0
    %s185 = sadd.s32 %s184, 1
    %s186 = scalar_select %p183, %s184, %s185
    %p189 = pneg %p183
    %p190 = scmp.eq.s32.totalorder %s12, 1
    %p191 = por %p189, %p190
    %p192 = scmp.ne.s32.totalorder %s184, %s187
    %p193 = scmp.eq.s32.totalorder %s12, 0
    %p194 = por %p192, %p193
    %p195 = scmp.ne.s32.totalorder %s184, %s187
    %p196 = scmp.eq.s32.totalorder %s17, 1
    %p197 = por %p195, %p196
    %p198 = scmp.ne.s32.totalorder %s187, %s188
    %p199 = scmp.eq.s32.totalorder %s17, 0
    %p200 = por %p198, %p199
    %p201 = scmp.ne.s32.totalorder %s187, %s188
    %p202 = scmp.eq.s32.totalorder %s18, 1
    %p203 = por %p201, %p202
    %p205 = scmp.ne.s32.totalorder %s188, %s204
    %p206 = scmp.eq.s32.totalorder %s18, 0
    %p207 = por %p205, %p206
    %p208 = scmp.le.s32.totalorder 1, %s12
    %p209 = scmp.lt.s32.totalorder %s12, 3
    %p210 = pnand %p208, %p209
    %p211 = pneg %p210
    // Predicated region
    $region9: #{resblock2d_forward.7} parent=5 // pred_check
      _
    $region10: #{resblock2d_forward.7} parent=5 // pred_check_branch
      %213 = sbr.rel (%p210) target = $region12
    $region11: #{resblock2d_forward.7} parent=5 // pred_region
      %s214 = ssub.s32 %s12, 1
      // Predicated region
      $region13: #{resblock2d_forward.7} parent=11 // pred_check
        %p215 = pneg %p71
      $region14: #{resblock2d_forward.7} parent=11 // pred_check_branch
        %217 = sbr.rel (%p215) target = $region16
      $region15: #{resblock2d_forward.7} parent=11 // pred_region
        _
      $region16: #{resblock2d_forward.7} parent=11 // pred_fallthru
        _
      // Predicated region
      $region17: #{resblock2d_forward.7} parent=11 // pred_check
        %p218 = pneg %p92
      $region18: #{resblock2d_forward.7} parent=11 // pred_check_branch
        %220 = sbr.rel (%p218) target = $region20
      $region19: #{resblock2d_forward.7} parent=11 // pred_region
        _
      $region20: #{resblock2d_forward.7} parent=11 // pred_fallthru
        _
      // Predicated region
      $region21: #{resblock2d_forward.7} parent=11 // pred_check
        %p221 = pneg %p118
      $region22: #{resblock2d_forward.7} parent=11 // pred_check_branch
        %223 = sbr.rel (%p221) target = $region24
      $region23: #{resblock2d_forward.7} parent=11 // pred_region
        %p224 = scmp.lt.s32.totalorder %s22, 0
        %s225 = scalar_select %p224, %s22, 0
        %s226 = smul.addr %s225, 4
        %s227 = scalar_lea.vmem %s3, %s226
      $region24: #{resblock2d_forward.7} parent=11 // pred_fallthru
        _
      // Predicated region
      $region25: #{resblock2d_forward.7} parent=11 // pred_check
        %p228 = pneg %p144
      $region26: #{resblock2d_forward.7} parent=11 // pred_check_branch
        %230 = sbr.rel (%p228) target = $region28
      $region27: #{resblock2d_forward.7} parent=11 // pred_region
        %p231 = scmp.lt.s32.totalorder %s22, 0
        %s232 = scalar_select %p231, %s22, 0
        %s233 = scalar_lea.vmem %s4, %s232
      $region28: #{resblock2d_forward.7} parent=11 // pred_fallthru
        _
    $region12: #{resblock2d_forward.7} parent=5 // pred_fallthru
      _
    %p234 = scmp.lt.s32.totalorder %s12, 2
    // Predicated region
    $region29: #{resblock2d_forward.7} parent=5 // pred_check
      %p235 = pneg %p234
    $region30: #{resblock2d_forward.7} parent=5 // pred_check_branch
      %237 = sbr.rel (%p235) target = $region32
    $region31: #{resblock2d_forward.7} parent=5 // pred_region
      // Predicated region
      $region33: #{resblock2d_forward.7} parent=31 // pred_check
        %p238 = pneg %p44
      $region34: #{resblock2d_forward.7} parent=31 // pred_check_branch
        %240 = sbr.rel (%p238) target = $region36
      $region35: #{resblock2d_forward.7} parent=31 // pred_region
        %p241 = scmp.lt.s32.totalorder %s19, 1
        %s242 = scalar_select %p241, %s19, 1
        %s243 = smul.addr %s242, 32
        %s244 = smul.addr %s243, 8
        %s245 = scalar_lea.vmem %s0, %s244
      $region36: #{resblock2d_forward.7} parent=31 // pred_fallthru
        _
      // Predicated region
      $region37: #{resblock2d_forward.7} parent=31 // pred_check
        %p246 = pneg %p166
      $region38: #{resblock2d_forward.7} parent=31 // pred_check_branch
        %248 = sbr.rel (%p246) target = $region40
      $region39: #{resblock2d_forward.7} parent=31 // pred_region
        %p249 = scmp.lt.s32.totalorder %s19, 1
        %s250 = scalar_select %p249, %s19, 1
        %p251 = scmp.lt.s32.totalorder %s20, 0
        %s252 = scalar_select %p251, %s20, 0
        %s253 = smul.addr %s250, 32
        %s254 = sadd.s32 %s252, %s253
        %s255 = smul.addr %s254, 8
        %s256 = scalar_lea.vmem %s5, %s255
      $region40: #{resblock2d_forward.7} parent=31 // pred_fallthru
        _
    $region32: #{resblock2d_forward.7} parent=5 // pred_fallthru
      _
    %p257 = scmp.le.s32.totalorder 1, %s12
    %p258 = scmp.lt.s32.totalorder %s12, 3
    %p259 = pnand %p257, %p258
    %p260 = pneg %p259
    // Predicated region
    $region41: #{resblock2d_forward.7} parent=5 // pred_check
      _
    $region42: #{resblock2d_forward.7} parent=5 // pred_check_branch
      %262 = sbr.rel (%p259) target = $region44
    $region43: #{resblock2d_forward.7} parent=5 // pred_region
      %s263 = ssub.s32 %s12, 1
      %p264 = scmp.lt.s32.totalorder %s21, 1
      %s265 = scalar_select %p264, %s21, 1
      %s266 = smul.addr %s265, 32
      %s267 = smul.addr %s266, 8
      %s268 = scalar_lea.vmem %s0, %s267
      %p269 = pneg %p50
      %p270 = pneg %p47
      %p271 = pneg %p71
      %p272 = pneg %p68
      %p273 = pneg %p92
      %p274 = pneg %p89
      %p275 = scmp.lt.s32.totalorder %s22, 0
      %s276 = scalar_select %p275, %s22, 0
      %s277 = smul.addr %s276, 4
      %s278 = scalar_lea.vmem %s3, %s277
      %p279 = pneg %p118
      %p280 = pneg %p115
      %p281 = scmp.lt.s32.totalorder %s22, 0
      %s282 = scalar_select %p281, %s22, 0
      %s283 = scalar_lea.vmem %s4, %s282
      %p284 = pneg %p144
      %p285 = pneg %p141
      %p286 = scmp.lt.s32.totalorder %s21, 1
      %s287 = scalar_select %p286, %s21, 1
      %p288 = scmp.lt.s32.totalorder %s22, 0
      %s289 = scalar_select %p288, %s22, 0
      %s290 = smul.addr %s287, 32
      %s291 = sadd.s32 %s289, %s290
      %s292 = smul.addr %s291, 8
      %s293 = scalar_lea.vmem %s5, %s292
      %p294 = pneg %p172
      %p295 = pneg %p169
      %p296 = pneg %p200
      %p297 = pneg %p197
      %p298 = scmp.lt.s32.totalorder %s21, 1
      %s299 = scalar_select %p298, %s21, 1
      %p300 = scmp.lt.s32.totalorder %s22, 0
      %s301 = scalar_select %p300, %s22, 0
      %s302 = smul.addr %s299, 32
      %s303 = sadd.s32 %s301, %s302
      %s304 = smul.addr %s303, 8
      %s305 = scalar_lea.vmem %s6, %s304
      %p306 = scmp.lt.s32.totalorder %s21, 1
      %s307 = scalar_select %p306, %s21, 1
      %s308 = smul.addr %s307, 32
      %s309 = smul.addr %s308, 8
      %s310 = scalar_lea.vmem %s0, %s309
      %p311 = scmp.lt.s32.totalorder %s22, 0
      %s312 = scalar_select %p311, %s22, 0
      %s313 = smul.addr %s312, 4
      %s314 = scalar_lea.vmem %s3, %s313
      %p315 = scmp.lt.s32.totalorder %s22, 0
      %s316 = scalar_select %p315, %s22, 0
      %s317 = scalar_lea.vmem %s4, %s316
      %p318 = scmp.lt.s32.totalorder %s21, 1
      %s319 = scalar_select %p318, %s21, 1
      %p320 = scmp.lt.s32.totalorder %s22, 0
      %s321 = scalar_select %p320, %s22, 0
      %s322 = smul.addr %s319, 32
      %s323 = sadd.s32 %s321, %s322
      %s324 = smul.addr %s323, 8
      %s325 = scalar_lea.vmem %s5, %s324
      %p326 = scmp.lt.s32.totalorder %s21, 1
      %s327 = scalar_select %p326, %s21, 1
      %p328 = scmp.lt.s32.totalorder %s22, 0
      %s329 = scalar_select %p328, %s22, 0
      %s330 = smul.addr %s327, 32
      %s331 = sadd.s32 %s329, %s330
      %s332 = smul.addr %s331, 8
      %s333 = scalar_lea.vmem %s6, %s332
      %p335 = scmp.eq.s32.totalorder %s22, 0
      // Predicated region
      $region45: #{resblock2d_forward.7} parent=43 // pred_check
        %p336 = pneg %p335
      $region46: #{resblock2d_forward.7} parent=43 // pred_check_branch
        %338 = sbr.rel (%p336) target = $region48
      $region47: #{resblock2d_forward.7} parent=43 // pred_region
        %vm339 = vcmask 31744
        %340 = vst.msk [vmem:[#allocation2] sm:$0xff] %vm339, 0.0
        %341 = vst.msk [vmem:[#allocation2 + $0x8] sm:$0xff] %vm339, 0.0
        %vm342 = vcmask 25600
        %343 = vst.msk [vmem:[#allocation2 + $0x10] sm:$0x3] %vm342, 0.0
        %344 = vst.msk [vmem:[#allocation2 + $0x18] sm:$0xff] %vm339, 0.0
        %345 = vst.msk [vmem:[#allocation2 + $0x20] sm:$0xff] %vm339, 0.0
        %346 = vst.msk [vmem:[#allocation2 + $0x28] sm:$0x3] %vm342, 0.0
        %347 = vst.msk [vmem:[#allocation2 + $0x30] sm:$0xff] %vm339, 0.0
        %348 = vst.msk [vmem:[#allocation2 + $0x38] sm:$0xff] %vm339, 0.0
        %349 = vst.msk [vmem:[#allocation2 + $0x40] sm:$0x3] %vm342, 0.0
        %350 = vst.msk [vmem:[#allocation2 + $0x48] sm:$0xff] %vm339, 0.0
        %351 = vst.msk [vmem:[#allocation2 + $0x50] sm:$0xff] %vm339, 0.0
        %352 = vst.msk [vmem:[#allocation2 + $0x58] sm:$0x3] %vm342, 0.0
        %353 = vst.msk [vmem:[#allocation2 + $0x60] sm:$0xff] %vm339, 0.0
        %354 = vst.msk [vmem:[#allocation2 + $0x68] sm:$0xff] %vm339, 0.0
        %355 = vst.msk [vmem:[#allocation2 + $0x70] sm:$0x3] %vm342, 0.0
        %356 = vst.msk [vmem:[#allocation2 + $0x78] sm:$0xff] %vm339, 0.0
        %357 = vst.msk [vmem:[#allocation2 + $0x80] sm:$0xff] %vm339, 0.0
        %358 = vst.msk [vmem:[#allocation2 + $0x88] sm:$0x3] %vm342, 0.0
        %359 = vst.msk [vmem:[#allocation2 + $0x90] sm:$0xff] %vm339, 0.0
        %360 = vst.msk [vmem:[#allocation2 + $0x98] sm:$0xff] %vm339, 0.0
        %361 = vst.msk [vmem:[#allocation2 + $0xa0] sm:$0x3] %vm342, 0.0
        %362 = vst.msk [vmem:[#allocation2 + $0xa8] sm:$0xff] %vm339, 0.0
        %363 = vst.msk [vmem:[#allocation2 + $0xb0] sm:$0xff] %vm339, 0.0
        %364 = vst.msk [vmem:[#allocation2 + $0xb8] sm:$0x3] %vm342, 0.0
        %365 = vst.msk [vmem:[#allocation2 + $0xc0] sm:$0xff] %vm339, 0.0
        %366 = vst.msk [vmem:[#allocation2 + $0xc8] sm:$0xff] %vm339, 0.0
        %367 = vst.msk [vmem:[#allocation2 + $0xd0] sm:$0x3] %vm342, 0.0
        %368 = vst.msk [vmem:[#allocation2 + $0xd8] sm:$0xff] %vm339, 0.0
        %369 = vst.msk [vmem:[#allocation2 + $0xe0] sm:$0xff] %vm339, 0.0
        %370 = vst.msk [vmem:[#allocation2 + $0xe8] sm:$0x3] %vm342, 0.0
        %371 = vst.msk [vmem:[#allocation2 + $0xf0] sm:$0xff] %vm339, 0.0
        %372 = vst.msk [vmem:[#allocation2 + $0xf8] sm:$0xff] %vm339, 0.0
        %373 = vst.msk [vmem:[#allocation2 + $0x100] sm:$0x3] %vm342, 0.0
        %374 = vst.msk [vmem:[#allocation2 + $0x108] sm:$0xff] %vm339, 0.0
        %375 = vst.msk [vmem:[#allocation2 + $0x110] sm:$0xff] %vm339, 0.0
        %376 = vst.msk [vmem:[#allocation2 + $0x118] sm:$0x3] %vm342, 0.0
        %377 = vst.msk [vmem:[#allocation2 + $0x120] sm:$0xff] %vm339, 0.0
        %378 = vst.msk [vmem:[#allocation2 + $0x128] sm:$0xff] %vm339, 0.0
        %379 = vst.msk [vmem:[#allocation2 + $0x130] sm:$0x3] %vm342, 0.0
        %380 = vst.msk [vmem:[#allocation2 + $0x138] sm:$0xff] %vm339, 0.0
        %381 = vst.msk [vmem:[#allocation2 + $0x140] sm:$0xff] %vm339, 0.0
        %382 = vst.msk [vmem:[#allocation2 + $0x148] sm:$0x3] %vm342, 0.0
        %383 = vst.msk [vmem:[#allocation2 + $0x150] sm:$0xff] %vm339, 0.0
        %384 = vst.msk [vmem:[#allocation2 + $0x158] sm:$0xff] %vm339, 0.0
        %385 = vst.msk [vmem:[#allocation2 + $0x160] sm:$0x3] %vm342, 0.0
        %386 = vst.msk [vmem:[#allocation2 + $0x168] sm:$0xff] %vm339, 0.0
        %387 = vst.msk [vmem:[#allocation2 + $0x170] sm:$0xff] %vm339, 0.0
        %388 = vst.msk [vmem:[#allocation2 + $0x178] sm:$0x3] %vm342, 0.0
        %389 = vst.msk [vmem:[#allocation2 + $0x180] sm:$0xff] %vm339, 0.0
        %390 = vst.msk [vmem:[#allocation2 + $0x188] sm:$0xff] %vm339, 0.0
        %391 = vst.msk [vmem:[#allocation2 + $0x190] sm:$0x3] %vm342, 0.0
        %392 = vst.msk [vmem:[#allocation2 + $0x198] sm:$0xff] %vm339, 0.0
        %393 = vst.msk [vmem:[#allocation2 + $0x1a0] sm:$0xff] %vm339, 0.0
        %394 = vst.msk [vmem:[#allocation2 + $0x1a8] sm:$0x3] %vm342, 0.0
        %v395 = vld [vmem:[%s310] sm:$0xff]
        %v396 = vld [vmem:[%s310 + $0x8] sm:$0xff]
        %v397 = vld [vmem:[%s310 + $0x10] sm:$0xff]
        %v398 = vld [vmem:[%s310 + $0x18] sm:$0xff]
        %v399 = vld [vmem:[%s310 + $0x20] sm:$0xff]
        %v400 = vld [vmem:[%s310 + $0x28] sm:$0xff]
        %v401 = vld [vmem:[%s310 + $0x30] sm:$0xff]
        %v402 = vld [vmem:[%s310 + $0x38] sm:$0xff]
        %v403 = vld [vmem:[%s310 + $0x40] sm:$0xff]
        %v404 = vld [vmem:[%s310 + $0x48] sm:$0xff]
        %v405 = vld [vmem:[%s310 + $0x50] sm:$0xff]
        %v406 = vld [vmem:[%s310 + $0x58] sm:$0xff]
        %v407 = vld [vmem:[%s310 + $0x60] sm:$0xff]
        %v408 = vld [vmem:[%s310 + $0x68] sm:$0xff]
        %v409 = vld [vmem:[%s310 + $0x70] sm:$0xff]
        %v410 = vld [vmem:[%s310 + $0x78] sm:$0xff]
        %v411 = vld [vmem:[%s310 + $0x80] sm:$0xff]
        %v412 = vld [vmem:[%s310 + $0x88] sm:$0xff]
        %v413 = vld [vmem:[%s310 + $0x90] sm:$0xff]
        %v414 = vld [vmem:[%s310 + $0x98] sm:$0xff]
        %v415 = vld [vmem:[%s310 + $0xa0] sm:$0xff]
        %v416 = vld [vmem:[%s310 + $0xa8] sm:$0xff]
        %v417 = vld [vmem:[%s310 + $0xb0] sm:$0xff]
        %v418 = vld [vmem:[%s310 + $0xb8] sm:$0xff]
        %v419 = vld [vmem:[%s310 + $0xc0] sm:$0xff]
        %v420 = vld [vmem:[%s310 + $0xc8] sm:$0xff]
        %v421 = vld [vmem:[%s310 + $0xd0] sm:$0xff]
        %v422 = vld [vmem:[%s310 + $0xd8] sm:$0xff]
        %v423 = vld [vmem:[%s310 + $0xe0] sm:$0xff]
        %v424 = vld [vmem:[%s310 + $0xe8] sm:$0xff]
        %v425 = vld [vmem:[%s310 + $0xf0] sm:$0xff]
        %v426 = vld [vmem:[%s310 + $0xf8] sm:$0xff]
        %v427 = vld [vmem:[%s1] sm:$0x1]
        %v428 = vld [vmem:[%s2] sm:$0x1]
        %v430 = vlaneseq
        %v431 = vshrl.u32 %v430, 7
        %v432 = vsub.s32 0, %v431
        %v433 = vrot.slane %v427, %v432
        %v435 = vmul.f32 %v395, %v433
        %v436 = vmul.f32 %v396, %v433
        %v437 = vmul.f32 %v397, %v433
        %v438 = vmul.f32 %v398, %v433
        %v439 = vmul.f32 %v399, %v433
        %v440 = vmul.f32 %v400, %v433
        %v441 = vmul.f32 %v401, %v433
        %v442 = vmul.f32 %v402, %v433
        %v443 = vmul.f32 %v403, %v433
        %v444 = vmul.f32 %v404, %v433
        %v445 = vmul.f32 %v405, %v433
        %v446 = vmul.f32 %v406, %v433
        %v447 = vmul.f32 %v407, %v433
        %v448 = vmul.f32 %v408, %v433
        %v449 = vmul.f32 %v409, %v433
        %v450 = vmul.f32 %v410, %v433
        %v451 = vmul.f32 %v411, %v433
        %v452 = vmul.f32 %v412, %v433
        %v453 = vmul.f32 %v413, %v433
        %v454 = vmul.f32 %v414, %v433
        %v455 = vmul.f32 %v415, %v433
        %v456 = vmul.f32 %v416, %v433
        %v457 = vmul.f32 %v417, %v433
        %v458 = vmul.f32 %v418, %v433
        %v459 = vmul.f32 %v419, %v433
        %v460 = vmul.f32 %v420, %v433
        %v461 = vmul.f32 %v421, %v433
        %v462 = vmul.f32 %v422, %v433
        %v463 = vmul.f32 %v423, %v433
        %v464 = vmul.f32 %v424, %v433
        %v465 = vmul.f32 %v425, %v433
        %v466 = vmul.f32 %v426, %v433
        %v468 = vlaneseq
        %v469 = vshrl.u32 %v468, 7
        %v470 = vsub.s32 0, %v469
        %v471 = vrot.slane %v428, %v470
        %v473 = vadd.f32 %v435, %v471
        %v474 = vadd.f32 %v436, %v471
        %v475 = vadd.f32 %v437, %v471
        %v476 = vadd.f32 %v438, %v471
        %v477 = vadd.f32 %v439, %v471
        %v478 = vadd.f32 %v440, %v471
        %v479 = vadd.f32 %v441, %v471
        %v480 = vadd.f32 %v442, %v471
        %v481 = vadd.f32 %v443, %v471
        %v482 = vadd.f32 %v444, %v471
        %v483 = vadd.f32 %v445, %v471
        %v484 = vadd.f32 %v446, %v471
        %v485 = vadd.f32 %v447, %v471
        %v486 = vadd.f32 %v448, %v471
        %v487 = vadd.f32 %v449, %v471
        %v488 = vadd.f32 %v450, %v471
        %v489 = vadd.f32 %v451, %v471
        %v490 = vadd.f32 %v452, %v471
        %v491 = vadd.f32 %v453, %v471
        %v492 = vadd.f32 %v454, %v471
        %v493 = vadd.f32 %v455, %v471
        %v494 = vadd.f32 %v456, %v471
        %v495 = vadd.f32 %v457, %v471
        %v496 = vadd.f32 %v458, %v471
        %v497 = vadd.f32 %v459, %v471
        %v498 = vadd.f32 %v460, %v471
        %v499 = vadd.f32 %v461, %v471
        %v500 = vadd.f32 %v462, %v471
        %v501 = vadd.f32 %v463, %v471
        %v502 = vadd.f32 %v464, %v471
        %v503 = vadd.f32 %v465, %v471
        %v504 = vadd.f32 %v466, %v471
        %v505 = vmax.f32 %v473, 0.0
        %v506 = vmax.f32 %v474, 0.0
        %v507 = vmax.f32 %v475, 0.0
        %v508 = vmax.f32 %v476, 0.0
        %v509 = vmax.f32 %v477, 0.0
        %v510 = vmax.f32 %v478, 0.0
        %v511 = vmax.f32 %v479, 0.0
        %v512 = vmax.f32 %v480, 0.0
        %v513 = vmax.f32 %v481, 0.0
        %v514 = vmax.f32 %v482, 0.0
        %v515 = vmax.f32 %v483, 0.0
        %v516 = vmax.f32 %v484, 0.0
        %v517 = vmax.f32 %v485, 0.0
        %v518 = vmax.f32 %v486, 0.0
        %v519 = vmax.f32 %v487, 0.0
        %v520 = vmax.f32 %v488, 0.0
        %v521 = vmax.f32 %v489, 0.0
        %v522 = vmax.f32 %v490, 0.0
        %v523 = vmax.f32 %v491, 0.0
        %v524 = vmax.f32 %v492, 0.0
        %v525 = vmax.f32 %v493, 0.0
        %v526 = vmax.f32 %v494, 0.0
        %v527 = vmax.f32 %v495, 0.0
        %v528 = vmax.f32 %v496, 0.0
        %v529 = vmax.f32 %v497, 0.0
        %v530 = vmax.f32 %v498, 0.0
        %v531 = vmax.f32 %v499, 0.0
        %v532 = vmax.f32 %v500, 0.0
        %v533 = vmax.f32 %v501, 0.0
        %v534 = vmax.f32 %v502, 0.0
        %v535 = vmax.f32 %v503, 0.0
        %v536 = vmax.f32 %v504, 0.0
        %s537 = scalar_lea.vmem [#allocation2], 24
        %538 = vst.msk [vmem:[%s537 + $0x1] sm:$0xff] %vm339, %v505
        %539 = vst.msk [vmem:[%s537 + $0x9] sm:$0xff] %vm339, %v506
        %540 = vst.msk [vmem:[%s537 + $0x19] sm:$0xff] %vm339, %v507
        %541 = vst.msk [vmem:[%s537 + $0x21] sm:$0xff] %vm339, %v508
        %542 = vst.msk [vmem:[%s537 + $0x31] sm:$0xff] %vm339, %v509
        %543 = vst.msk [vmem:[%s537 + $0x39] sm:$0xff] %vm339, %v510
        %544 = vst.msk [vmem:[%s537 + $0x49] sm:$0xff] %vm339, %v511
        %545 = vst.msk [vmem:[%s537 + $0x51] sm:$0xff] %vm339, %v512
        %546 = vst.msk [vmem:[%s537 + $0x61] sm:$0xff] %vm339, %v513
        %547 = vst.msk [vmem:[%s537 + $0x69] sm:$0xff] %vm339, %v514
        %548 = vst.msk [vmem:[%s537 + $0x79] sm:$0xff] %vm339, %v515
        %549 = vst.msk [vmem:[%s537 + $0x81] sm:$0xff] %vm339, %v516
        %550 = vst.msk [vmem:[%s537 + $0x91] sm:$0xff] %vm339, %v517
        %551 = vst.msk [vmem:[%s537 + $0x99] sm:$0xff] %vm339, %v518
        %552 = vst.msk [vmem:[%s537 + $0xa9] sm:$0xff] %vm339, %v519
        %553 = vst.msk [vmem:[%s537 + $0xb1] sm:$0xff] %vm339, %v520
        %554 = vst.msk [vmem:[%s537 + $0xc1] sm:$0xff] %vm339, %v521
        %555 = vst.msk [vmem:[%s537 + $0xc9] sm:$0xff] %vm339, %v522
        %556 = vst.msk [vmem:[%s537 + $0xd9] sm:$0xff] %vm339, %v523
        %557 = vst.msk [vmem:[%s537 + $0xe1] sm:$0xff] %vm339, %v524
        %558 = vst.msk [vmem:[%s537 + $0xf1] sm:$0xff] %vm339, %v525
        %559 = vst.msk [vmem:[%s537 + $0xf9] sm:$0xff] %vm339, %v526
        %560 = vst.msk [vmem:[%s537 + $0x109] sm:$0xff] %vm339, %v527
        %561 = vst.msk [vmem:[%s537 + $0x111] sm:$0xff] %vm339, %v528
        %562 = vst.msk [vmem:[%s537 + $0x121] sm:$0xff] %vm339, %v529
        %563 = vst.msk [vmem:[%s537 + $0x129] sm:$0xff] %vm339, %v530
        %564 = vst.msk [vmem:[%s537 + $0x139] sm:$0xff] %vm339, %v531
        %565 = vst.msk [vmem:[%s537 + $0x141] sm:$0xff] %vm339, %v532
        %566 = vst.msk [vmem:[%s537 + $0x151] sm:$0xff] %vm339, %v533
        %567 = vst.msk [vmem:[%s537 + $0x159] sm:$0xff] %vm339, %v534
        %568 = vst.msk [vmem:[%s537 + $0x169] sm:$0xff] %vm339, %v535
        %569 = vst.msk [vmem:[%s537 + $0x171] sm:$0xff] %vm339, %v536
        %v570 = vld [vmem:[#allocation2] sm:$0xff]
        %v571 = vld [vmem:[#allocation2 + $0x8] sm:$0xff]
        %v572 = vld [vmem:[#allocation2 + $0x10] sm:$0x3]
        %v573 = vld [vmem:[#allocation2 + $0x18] sm:$0xff]
        %v574 = vld [vmem:[#allocation2 + $0x20] sm:$0xff]
        %v575 = vld [vmem:[#allocation2 + $0x28] sm:$0x3]
        %v576 = vld [vmem:[#allocation2 + $0x30] sm:$0xff]
        %v577 = vld [vmem:[#allocation2 + $0x38] sm:$0xff]
        %v578 = vld [vmem:[#allocation2 + $0x40] sm:$0x3]
        %v579 = vld [vmem:[#allocation2 + $0x48] sm:$0xff]
        %v580 = vld [vmem:[#allocation2 + $0x50] sm:$0xff]
        %v581 = vld [vmem:[#allocation2 + $0x58] sm:$0x3]
        %v582 = vld [vmem:[#allocation2 + $0x60] sm:$0xff]
        %v583 = vld [vmem:[#allocation2 + $0x68] sm:$0xff]
        %v584 = vld [vmem:[#allocation2 + $0x70] sm:$0x3]
        %v585 = vld [vmem:[#allocation2 + $0x78] sm:$0xff]
        %v586 = vld [vmem:[#allocation2 + $0x80] sm:$0xff]
        %v587 = vld [vmem:[#allocation2 + $0x88] sm:$0x3]
        %v588 = vld [vmem:[#allocation2 + $0x90] sm:$0xff]
        %v589 = vld [vmem:[#allocation2 + $0x98] sm:$0xff]
        %v590 = vld [vmem:[#allocation2 + $0xa0] sm:$0x3]
        %v591 = vld [vmem:[#allocation2 + $0xa8] sm:$0xff]
        %v592 = vld [vmem:[#allocation2 + $0xb0] sm:$0xff]
        %v593 = vld [vmem:[#allocation2 + $0xb8] sm:$0x3]
        %v594 = vld [vmem:[#allocation2 + $0xc0] sm:$0xff]
        %v595 = vld [vmem:[#allocation2 + $0xc8] sm:$0xff]
        %v596 = vld [vmem:[#allocation2 + $0xd0] sm:$0x3]
        %v597 = vld [vmem:[#allocation2 + $0xd8] sm:$0xff]
        %v598 = vld [vmem:[#allocation2 + $0xe0] sm:$0xff]
        %v599 = vld [vmem:[#allocation2 + $0xe8] sm:$0x3]
        %v600 = vld [vmem:[#allocation2 + $0xf0] sm:$0xff]
        %v601 = vld [vmem:[#allocation2 + $0xf8] sm:$0xff]
        %v602 = vld [vmem:[#allocation2 + $0x100] sm:$0x3]
        %v603 = vld [vmem:[#allocation2 + $0x108] sm:$0xff]
        %v604 = vld [vmem:[#allocation2 + $0x110] sm:$0xff]
        %v605 = vld [vmem:[#allocation2 + $0x118] sm:$0x3]
        %v606 = vld [vmem:[#allocation2 + $0x120] sm:$0xff]
        %v607 = vld [vmem:[#allocation2 + $0x128] sm:$0xff]
        %v608 = vld [vmem:[#allocation2 + $0x130] sm:$0x3]
        %v609 = vld [vmem:[#allocation2 + $0x138] sm:$0xff]
        %v610 = vld [vmem:[#allocation2 + $0x140] sm:$0xff]
        %v611 = vld [vmem:[#allocation2 + $0x148] sm:$0x3]
        %v612 = vld [vmem:[#allocation2 + $0x150] sm:$0xff]
        %v613 = vld [vmem:[#allocation2 + $0x158] sm:$0xff]
        %v614 = vld [vmem:[#allocation2 + $0x160] sm:$0x3]
        %v615 = vld [vmem:[#allocation2 + $0x168] sm:$0xff]
        %v616 = vld [vmem:[#allocation2 + $0x170] sm:$0xff]
        %v617 = vld [vmem:[#allocation2 + $0x178] sm:$0x3]
        %v618 = vld [vmem:[#allocation2 + $0x180] sm:$0xff]
        %v619 = vld [vmem:[#allocation2 + $0x188] sm:$0xff]
        %v620 = vld [vmem:[#allocation2 + $0x190] sm:$0x3]
        %v621 = vld [vmem:[#allocation2 + $0x198] sm:$0xff]
        %v622 = vld [vmem:[#allocation2 + $0x1a0] sm:$0xff]
        %v623 = vld [vmem:[#allocation2 + $0x1a8] sm:$0x3]
        %v624 = vpack.c.bf16 %v571, %v570
        %v625 = vpack.c.bf16 %v574, %v573
        %v626 = vpack.c.bf16 %v577, %v576
        %v627 = vpack.c.bf16 %v580, %v579
        %v628 = vpack.c.bf16 %v583, %v582
        %v629 = vpack.c.bf16 %v586, %v585
        %v630 = vpack.c.bf16 %v589, %v588
        %v631 = vpack.c.bf16 %v592, %v591
        %v632 = vpack.c.bf16 %v595, %v594
        %v633 = vpack.c.bf16 %v598, %v597
        %v634 = vpack.c.bf16 %v601, %v600
        %v635 = vpack.c.bf16 %v604, %v603
        %v636 = vpack.c.bf16 %v607, %v606
        %v637 = vpack.c.bf16 %v610, %v609
        %v638 = vpack.c.bf16 %v613, %v612
        %v639 = vpack.c.bf16 %v616, %v615
        %640 = vst.msk [vmem:[#allocation3] sm:$0xff] %vm339, %v624
        %641 = vst.msk [vmem:[#allocation3 + $0x8] sm:$0xff] %vm339, %v625
        %642 = vst.msk [vmem:[#allocation3 + $0x10] sm:$0xff] %vm339, %v626
        %643 = vst.msk [vmem:[#allocation3 + $0x18] sm:$0xff] %vm339, %v627
        %644 = vst.msk [vmem:[#allocation3 + $0x20] sm:$0xff] %vm339, %v628
        %645 = vst.msk [vmem:[#allocation3 + $0x28] sm:$0xff] %vm339, %v629
        %646 = vst.msk [vmem:[#allocation3 + $0x30] sm:$0xff] %vm339, %v630
        %647 = vst.msk [vmem:[#allocation3 + $0x38] sm:$0xff] %vm339, %v631
        %648 = vst.msk [vmem:[#allocation3 + $0x40] sm:$0xff] %vm339, %v632
        %649 = vst.msk [vmem:[#allocation3 + $0x48] sm:$0xff] %vm339, %v633
        %650 = vst.msk [vmem:[#allocation3 + $0x50] sm:$0xff] %vm339, %v634
        %651 = vst.msk [vmem:[#allocation3 + $0x58] sm:$0xff] %vm339, %v635
        %652 = vst.msk [vmem:[#allocation3 + $0x60] sm:$0xff] %vm339, %v636
        %653 = vst.msk [vmem:[#allocation3 + $0x68] sm:$0xff] %vm339, %v637
        %654 = vst.msk [vmem:[#allocation3 + $0x70] sm:$0xff] %vm339, %v638
        %655 = vst.msk [vmem:[#allocation3 + $0x78] sm:$0xff] %vm339, %v639
        %vm704 = vcmask 1046528
        %v705 = vrot.slane %v570, 1
        %v706 = vrot.slane %v571, 1
        %v707 = vsel %vm704, %v705, %v706
        %v708 = vrot.slane %v572, 1
        %v709 = vsel %vm704, %v706, %v708
        %v710 = vrot.slane %v573, 1
        %v711 = vrot.slane %v574, 1
        %v712 = vsel %vm704, %v710, %v711
        %v713 = vrot.slane %v575, 1
        %v714 = vsel %vm704, %v711, %v713
        %v715 = vrot.slane %v576, 1
        %v716 = vrot.slane %v577, 1
        %v717 = vsel %vm704, %v715, %v716
        %v718 = vrot.slane %v578, 1
        %v719 = vsel %vm704, %v716, %v718
        %v720 = vrot.slane %v579, 1
        %v721 = vrot.slane %v580, 1
        %v722 = vsel %vm704, %v720, %v721
        %v723 = vrot.slane %v581, 1
        %v724 = vsel %vm704, %v721, %v723
        %v725 = vrot.slane %v582, 1
        %v726 = vrot.slane %v583, 1
        %v727 = vsel %vm704, %v725, %v726
        %v728 = vrot.slane %v584, 1
        %v729 = vsel %vm704, %v726, %v728
        %v730 = vrot.slane %v585, 1
        %v731 = vrot.slane %v586, 1
        %v732 = vsel %vm704, %v730, %v731
        %v733 = vrot.slane %v587, 1
        %v734 = vsel %vm704, %v731, %v733
        %v735 = vrot.slane %v588, 1
        %v736 = vrot.slane %v589, 1
        %v737 = vsel %vm704, %v735, %v736
        %v738 = vrot.slane %v590, 1
        %v739 = vsel %vm704, %v736, %v738
        %v740 = vrot.slane %v591, 1
        %v741 = vrot.slane %v592, 1
        %v742 = vsel %vm704, %v740, %v741
        %v743 = vrot.slane %v593, 1
        %v744 = vsel %vm704, %v741, %v743
        %v745 = vrot.slane %v594, 1
        %v746 = vrot.slane %v595, 1
        %v747 = vsel %vm704, %v745, %v746
        %v748 = vrot.slane %v596, 1
        %v749 = vsel %vm704, %v746, %v748
        %v750 = vrot.slane %v597, 1
        %v751 = vrot.slane %v598, 1
        %v752 = vsel %vm704, %v750, %v751
        %v753 = vrot.slane %v599, 1
        %v754 = vsel %vm704, %v751, %v753
        %v755 = vrot.slane %v600, 1
        %v756 = vrot.slane %v601, 1
        %v757 = vsel %vm704, %v755, %v756
        %v758 = vrot.slane %v602, 1
        %v759 = vsel %vm704, %v756, %v758
        %v760 = vrot.slane %v603, 1
        %v761 = vrot.slane %v604, 1
        %v762 = vsel %vm704, %v760, %v761
        %v763 = vrot.slane %v605, 1
        %v764 = vsel %vm704, %v761, %v763
        %v765 = vrot.slane %v606, 1
        %v766 = vrot.slane %v607, 1
        %v767 = vsel %vm704, %v765, %v766
        %v768 = vrot.slane %v608, 1
        %v769 = vsel %vm704, %v766, %v768
        %v770 = vrot.slane %v609, 1
        %v771 = vrot.slane %v610, 1
        %v772 = vsel %vm704, %v770, %v771
        %v773 = vrot.slane %v611, 1
        %v774 = vsel %vm704, %v771, %v773
        %v775 = vrot.slane %v612, 1
        %v776 = vrot.slane %v613, 1
        %v777 = vsel %vm704, %v775, %v776
        %v778 = vrot.slane %v614, 1
        %v779 = vsel %vm704, %v776, %v778
        %v780 = vrot.slane %v615, 1
        %v781 = vrot.slane %v616, 1
        %v782 = vsel %vm704, %v780, %v781
        %v783 = vrot.slane %v617, 1
        %v784 = vsel %vm704, %v781, %v783
        %v817 = vpack.c.bf16 %v709, %v707
        %v818 = vpack.c.bf16 %v714, %v712
        %v819 = vpack.c.bf16 %v719, %v717
        %v820 = vpack.c.bf16 %v724, %v722
        %v821 = vpack.c.bf16 %v729, %v727
        %v822 = vpack.c.bf16 %v734, %v732
        %v823 = vpack.c.bf16 %v739, %v737
        %v824 = vpack.c.bf16 %v744, %v742
        %v825 = vpack.c.bf16 %v749, %v747
        %v826 = vpack.c.bf16 %v754, %v752
        %v827 = vpack.c.bf16 %v759, %v757
        %v828 = vpack.c.bf16 %v764, %v762
        %v829 = vpack.c.bf16 %v769, %v767
        %v830 = vpack.c.bf16 %v774, %v772
        %v831 = vpack.c.bf16 %v779, %v777
        %v832 = vpack.c.bf16 %v784, %v782
        %849 = vrot.lane.b32.xlu0 %v817, 4
        %v850 = vpop.permute.xlu0 %849
        %851 = vrot.lane.b32.xlu0 %v818, 4
        %v852 = vpop.permute.xlu0 %851
        %853 = vrot.lane.b32.xlu0 %v819, 4
        %v854 = vpop.permute.xlu0 %853
        %855 = vrot.lane.b32.xlu0 %v820, 4
        %v856 = vpop.permute.xlu0 %855
        %857 = vrot.lane.b32.xlu0 %v821, 4
        %v858 = vpop.permute.xlu0 %857
        %859 = vrot.lane.b32.xlu0 %v822, 4
        %v860 = vpop.permute.xlu0 %859
        %861 = vrot.lane.b32.xlu0 %v823, 4
        %v862 = vpop.permute.xlu0 %861
        %863 = vrot.lane.b32.xlu0 %v824, 4
        %v864 = vpop.permute.xlu0 %863
        %865 = vrot.lane.b32.xlu0 %v825, 4
        %v866 = vpop.permute.xlu0 %865
        %867 = vrot.lane.b32.xlu0 %v826, 4
        %v868 = vpop.permute.xlu0 %867
        %869 = vrot.lane.b32.xlu0 %v827, 4
        %v870 = vpop.permute.xlu0 %869
        %871 = vrot.lane.b32.xlu0 %v828, 4
        %v872 = vpop.permute.xlu0 %871
        %873 = vrot.lane.b32.xlu0 %v829, 4
        %v874 = vpop.permute.xlu0 %873
        %875 = vrot.lane.b32.xlu0 %v830, 4
        %v876 = vpop.permute.xlu0 %875
        %877 = vrot.lane.b32.xlu0 %v831, 4
        %v878 = vpop.permute.xlu0 %877
        %879 = vrot.lane.b32.xlu0 %v832, 4
        %v880 = vpop.permute.xlu0 %879
        %vm897 = vcmask 64544
        %898 = vst.msk [vmem:[#allocation3] sm:$0xff] %vm897, %v850
        %899 = vst.msk [vmem:[#allocation3 + $0x8] sm:$0xff] %vm897, %v852
        %900 = vst.msk [vmem:[#allocation3 + $0x10] sm:$0xff] %vm897, %v854
        %901 = vst.msk [vmem:[#allocation3 + $0x18] sm:$0xff] %vm897, %v856
        %902 = vst.msk [vmem:[#allocation3 + $0x20] sm:$0xff] %vm897, %v858
        %903 = vst.msk [vmem:[#allocation3 + $0x28] sm:$0xff] %vm897, %v860
        %904 = vst.msk [vmem:[#allocation3 + $0x30] sm:$0xff] %vm897, %v862
        %905 = vst.msk [vmem:[#allocation3 + $0x38] sm:$0xff] %vm897, %v864
        %906 = vst.msk [vmem:[#allocation3 + $0x40] sm:$0xff] %vm897, %v866
        %907 = vst.msk [vmem:[#allocation3 + $0x48] sm:$0xff] %vm897, %v868
        %908 = vst.msk [vmem:[#allocation3 + $0x50] sm:$0xff] %vm897, %v870
        %909 = vst.msk [vmem:[#allocation3 + $0x58] sm:$0xff] %vm897, %v872
        %910 = vst.msk [vmem:[#allocation3 + $0x60] sm:$0xff] %vm897, %v874
        %911 = vst.msk [vmem:[#allocation3 + $0x68] sm:$0xff] %vm897, %v876
        %912 = vst.msk [vmem:[#allocation3 + $0x70] sm:$0xff] %vm897, %v878
        %913 = vst.msk [vmem:[#allocation3 + $0x78] sm:$0xff] %vm897, %v880
        %vm914 = vcmask 1045504
        %v915 = vrot.slane %v570, 2
        %v916 = vrot.slane %v571, 2
        %v917 = vsel %vm914, %v915, %v916
        %v918 = vrot.slane %v572, 2
        %v919 = vsel %vm914, %v916, %v918
        %v920 = vrot.slane %v573, 2
        %v921 = vrot.slane %v574, 2
        %v922 = vsel %vm914, %v920, %v921
        %v923 = vrot.slane %v575, 2
        %v924 = vsel %vm914, %v921, %v923
        %v925 = vrot.slane %v576, 2
        %v926 = vrot.slane %v577, 2
        %v927 = vsel %vm914, %v925, %v926
        %v928 = vrot.slane %v578, 2
        %v929 = vsel %vm914, %v926, %v928
        %v930 = vrot.slane %v579, 2
        %v931 = vrot.slane %v580, 2
        %v932 = vsel %vm914, %v930, %v931
        %v933 = vrot.slane %v581, 2
        %v934 = vsel %vm914, %v931, %v933
        %v935 = vrot.slane %v582, 2
        %v936 = vrot.slane %v583, 2
        %v937 = vsel %vm914, %v935, %v936
        %v938 = vrot.slane %v584, 2
        %v939 = vsel %vm914, %v936, %v938
        %v940 = vrot.slane %v585, 2
        %v941 = vrot.slane %v586, 2
        %v942 = vsel %vm914, %v940, %v941
        %v943 = vrot.slane %v587, 2
        %v944 = vsel %vm914, %v941, %v943
        %v945 = vrot.slane %v588, 2
        %v946 = vrot.slane %v589, 2
        %v947 = vsel %vm914, %v945, %v946
        %v948 = vrot.slane %v590, 2
        %v949 = vsel %vm914, %v946, %v948
        %v950 = vrot.slane %v591, 2
        %v951 = vrot.slane %v592, 2
        %v952 = vsel %vm914, %v950, %v951
        %v953 = vrot.slane %v593, 2
        %v954 = vsel %vm914, %v951, %v953
        %v955 = vrot.slane %v594, 2
        %v956 = vrot.slane %v595, 2
        %v957 = vsel %vm914, %v955, %v956
        %v958 = vrot.slane %v596, 2
        %v959 = vsel %vm914, %v956, %v958
        %v960 = vrot.slane %v597, 2
        %v961 = vrot.slane %v598, 2
        %v962 = vsel %vm914, %v960, %v961
        %v963 = vrot.slane %v599, 2
        %v964 = vsel %vm914, %v961, %v963
        %v965 = vrot.slane %v600, 2
        %v966 = vrot.slane %v601, 2
        %v967 = vsel %vm914, %v965, %v966
        %v968 = vrot.slane %v602, 2
        %v969 = vsel %vm914, %v966, %v968
        %v970 = vrot.slane %v603, 2
        %v971 = vrot.slane %v604, 2
        %v972 = vsel %vm914, %v970, %v971
        %v973 = vrot.slane %v605, 2
        %v974 = vsel %vm914, %v971, %v973
        %v975 = vrot.slane %v606, 2
        %v976 = vrot.slane %v607, 2
        %v977 = vsel %vm914, %v975, %v976
        %v978 = vrot.slane %v608, 2
        %v979 = vsel %vm914, %v976, %v978
        %v980 = vrot.slane %v609, 2
        %v981 = vrot.slane %v610, 2
        %v982 = vsel %vm914, %v980, %v981
        %v983 = vrot.slane %v611, 2
        %v984 = vsel %vm914, %v981, %v983
        %v985 = vrot.slane %v612, 2
        %v986 = vrot.slane %v613, 2
        %v987 = vsel %vm914, %v985, %v986
        %v988 = vrot.slane %v614, 2
        %v989 = vsel %vm914, %v986, %v988
        %v990 = vrot.slane %v615, 2
        %v991 = vrot.slane %v616, 2
        %v992 = vsel %vm914, %v990, %v991
        %v993 = vrot.slane %v617, 2
        %v994 = vsel %vm914, %v991, %v993
        %v1027 = vpack.c.bf16 %v919, %v917
        %v1028 = vpack.c.bf16 %v924, %v922
        %v1029 = vpack.c.bf16 %v929, %v927
        %v1030 = vpack.c.bf16 %v934, %v932
        %v1031 = vpack.c.bf16 %v939, %v937
        %v1032 = vpack.c.bf16 %v944, %v942
        %v1033 = vpack.c.bf16 %v949, %v947
        %v1034 = vpack.c.bf16 %v954, %v952
        %v1035 = vpack.c.bf16 %v959, %v957
        %v1036 = vpack.c.bf16 %v964, %v962
        %v1037 = vpack.c.bf16 %v969, %v967
        %v1038 = vpack.c.bf16 %v974, %v972
        %v1039 = vpack.c.bf16 %v979, %v977
        %v1040 = vpack.c.bf16 %v984, %v982
        %v1041 = vpack.c.bf16 %v989, %v987
        %v1042 = vpack.c.bf16 %v994, %v992
        %1059 = vrot.lane.b32.xlu0 %v1027, 8
        %v1060 = vpop.permute.xlu0 %1059
        %1061 = vrot.lane.b32.xlu0 %v1028, 8
        %v1062 = vpop.permute.xlu0 %1061
        %1063 = vrot.lane.b32.xlu0 %v1029, 8
        %v1064 = vpop.permute.xlu0 %1063
        %1065 = vrot.lane.b32.xlu0 %v1030, 8
        %v1066 = vpop.permute.xlu0 %1065
        %1067 = vrot.lane.b32.xlu0 %v1031, 8
        %v1068 = vpop.permute.xlu0 %1067
        %1069 = vrot.lane.b32.xlu0 %v1032, 8
        %v1070 = vpop.permute.xlu0 %1069
        %1071 = vrot.lane.b32.xlu0 %v1033, 8
        %v1072 = vpop.permute.xlu0 %1071
        %1073 = vrot.lane.b32.xlu0 %v1034, 8
        %v1074 = vpop.permute.xlu0 %1073
        %1075 = vrot.lane.b32.xlu0 %v1035, 8
        %v1076 = vpop.permute.xlu0 %1075
        %1077 = vrot.lane.b32.xlu0 %v1036, 8
        %v1078 = vpop.permute.xlu0 %1077
        %1079 = vrot.lane.b32.xlu0 %v1037, 8
        %v1080 = vpop.permute.xlu0 %1079
        %1081 = vrot.lane.b32.xlu0 %v1038, 8
        %v1082 = vpop.permute.xlu0 %1081
        %1083 = vrot.lane.b32.xlu0 %v1039, 8
        %v1084 = vpop.permute.xlu0 %1083
        %1085 = vrot.lane.b32.xlu0 %v1040, 8
        %v1086 = vpop.permute.xlu0 %1085
        %1087 = vrot.lane.b32.xlu0 %v1041, 8
        %v1088 = vpop.permute.xlu0 %1087
        %1089 = vrot.lane.b32.xlu0 %v1042, 8
        %v1090 = vpop.permute.xlu0 %1089
        %vm1107 = vcmask 97344
        %1108 = vst.msk [vmem:[#allocation3] sm:$0xff] %vm1107, %v1060
        %1109 = vst.msk [vmem:[#allocation3 + $0x8] sm:$0xff] %vm1107, %v1062
        %1110 = vst.msk [vmem:[#allocation3 + $0x10] sm:$0xff] %vm1107, %v1064
        %1111 = vst.msk [vmem:[#allocation3 + $0x18] sm:$0xff] %vm1107, %v1066
        %1112 = vst.msk [vmem:[#allocation3 + $0x20] sm:$0xff] %vm1107, %v1068
        %1113 = vst.msk [vmem:[#allocation3 + $0x28] sm:$0xff] %vm1107, %v1070
        %1114 = vst.msk [vmem:[#allocation3 + $0x30] sm:$0xff] %vm1107, %v1072
        %1115 = vst.msk [vmem:[#allocation3 + $0x38] sm:$0xff] %vm1107, %v1074
        %1116 = vst.msk [vmem:[#allocation3 + $0x40] sm:$0xff] %vm1107, %v1076
        %1117 = vst.msk [vmem:[#allocation3 + $0x48] sm:$0xff] %vm1107, %v1078
        %1118 = vst.msk [vmem:[#allocation3 + $0x50] sm:$0xff] %vm1107, %v1080
        %1119 = vst.msk [vmem:[#allocation3 + $0x58] sm:$0xff] %vm1107, %v1082
        %1120 = vst.msk [vmem:[#allocation3 + $0x60] sm:$0xff] %vm1107, %v1084
        %1121 = vst.msk [vmem:[#allocation3 + $0x68] sm:$0xff] %vm1107, %v1086
        %1122 = vst.msk [vmem:[#allocation3 + $0x70] sm:$0xff] %vm1107, %v1088
        %1123 = vst.msk [vmem:[#allocation3 + $0x78] sm:$0xff] %vm1107, %v1090
        %v1124 = vpack.c.bf16 %v619, %v618
        %1141 = vrot.lane.b32.xlu0 %v625, 12
        %v1142 = vpop.permute.xlu0 %1141
        %1143 = vrot.lane.b32.xlu0 %v626, 12
        %v1144 = vpop.permute.xlu0 %1143
        %1145 = vrot.lane.b32.xlu0 %v627, 12
        %v1146 = vpop.permute.xlu0 %1145
        %1147 = vrot.lane.b32.xlu0 %v628, 12
        %v1148 = vpop.permute.xlu0 %1147
        %1149 = vrot.lane.b32.xlu0 %v629, 12
        %v1150 = vpop.permute.xlu0 %1149
        %1151 = vrot.lane.b32.xlu0 %v630, 12
        %v1152 = vpop.permute.xlu0 %1151
        %1153 = vrot.lane.b32.xlu0 %v631, 12
        %v1154 = vpop.permute.xlu0 %1153
        %1155 = vrot.lane.b32.xlu0 %v632, 12
        %v1156 = vpop.permute.xlu0 %1155
        %1157 = vrot.lane.b32.xlu0 %v633, 12
        %v1158 = vpop.permute.xlu0 %1157
        %1159 = vrot.lane.b32.xlu0 %v634, 12
        %v1160 = vpop.permute.xlu0 %1159
        %1161 = vrot.lane.b32.xlu0 %v635, 12
        %v1162 = vpop.permute.xlu0 %1161
        %1163 = vrot.lane.b32.xlu0 %v636, 12
        %v1164 = vpop.permute.xlu0 %1163
        %1165 = vrot.lane.b32.xlu0 %v637, 12
        %v1166 = vpop.permute.xlu0 %1165
        %1167 = vrot.lane.b32.xlu0 %v638, 12
        %v1168 = vpop.permute.xlu0 %1167
        %1169 = vrot.lane.b32.xlu0 %v639, 12
        %v1170 = vpop.permute.xlu0 %1169
        %1171 = vrot.lane.b32.xlu0 %v1124, 12
        %v1172 = vpop.permute.xlu0 %1171
        %vm1189 = vcmask 130144
        %1190 = vst.msk [vmem:[#allocation3] sm:$0xff] %vm1189, %v1142
        %1191 = vst.msk [vmem:[#allocation3 + $0x8] sm:$0xff] %vm1189, %v1144
        %1192 = vst.msk [vmem:[#allocation3 + $0x10] sm:$0xff] %vm1189, %v1146
        %1193 = vst.msk [vmem:[#allocation3 + $0x18] sm:$0xff] %vm1189, %v1148
        %1194 = vst.msk [vmem:[#allocation3 + $0x20] sm:$0xff] %vm1189, %v1150
        %1195 = vst.msk [vmem:[#allocation3 + $0x28] sm:$0xff] %vm1189, %v1152
        %1196 = vst.msk [vmem:[#allocation3 + $0x30] sm:$0xff] %vm1189, %v1154
        %1197 = vst.msk [vmem:[#allocation3 + $0x38] sm:$0xff] %vm1189, %v1156
        %1198 = vst.msk [vmem:[#allocation3 + $0x40] sm:$0xff] %vm1189, %v1158
        %1199 = vst.msk [vmem:[#allocation3 + $0x48] sm:$0xff] %vm1189, %v1160
        %1200 = vst.msk [vmem:[#allocation3 + $0x50] sm:$0xff] %vm1189, %v1162
        %1201 = vst.msk [vmem:[#allocation3 + $0x58] sm:$0xff] %vm1189, %v1164
        %1202 = vst.msk [vmem:[#allocation3 + $0x60] sm:$0xff] %vm1189, %v1166
        %1203 = vst.msk [vmem:[#allocation3 + $0x68] sm:$0xff] %vm1189, %v1168
        %1204 = vst.msk [vmem:[#allocation3 + $0x70] sm:$0xff] %vm1189, %v1170
        %1205 = vst.msk [vmem:[#allocation3 + $0x78] sm:$0xff] %vm1189, %v1172
        %v1209 = vrot.slane %v618, 1
        %v1210 = vrot.slane %v619, 1
        %v1211 = vsel %vm704, %v1209, %v1210
        %v1212 = vrot.slane %v620, 1
        %v1213 = vsel %vm704, %v1210, %v1212
        %v1216 = vpack.c.bf16 %v1213, %v1211
        %1218 = vrot.lane.b32.xlu0 %v818, 16
        %v1219 = vpop.permute.xlu0 %1218
        %1220 = vrot.lane.b32.xlu0 %v819, 16
        %v1221 = vpop.permute.xlu0 %1220
        %1222 = vrot.lane.b32.xlu0 %v820, 16
        %v1223 = vpop.permute.xlu0 %1222
        %1224 = vrot.lane.b32.xlu0 %v821, 16
        %v1225 = vpop.permute.xlu0 %1224
        %1226 = vrot.lane.b32.xlu0 %v822, 16
        %v1227 = vpop.permute.xlu0 %1226
        %1228 = vrot.lane.b32.xlu0 %v823, 16
        %v1229 = vpop.permute.xlu0 %1228
        %1230 = vrot.lane.b32.xlu0 %v824, 16
        %v1231 = vpop.permute.xlu0 %1230
        %1232 = vrot.lane.b32.xlu0 %v825, 16
        %v1233 = vpop.permute.xlu0 %1232
        %1234 = vrot.lane.b32.xlu0 %v826, 16
        %v1235 = vpop.permute.xlu0 %1234
        %1236 = vrot.lane.b32.xlu0 %v827, 16
        %v1237 = vpop.permute.xlu0 %1236
        %1238 = vrot.lane.b32.xlu0 %v828, 16
        %v1239 = vpop.permute.xlu0 %1238
        %1240 = vrot.lane.b32.xlu0 %v829, 16
        %v1241 = vpop.permute.xlu0 %1240
        %1242 = vrot.lane.b32.xlu0 %v830, 16
        %v1243 = vpop.permute.xlu0 %1242
        %1244 = vrot.lane.b32.xlu0 %v831, 16
        %v1245 = vpop.permute.xlu0 %1244
        %1246 = vrot.lane.b32.xlu0 %v832, 16
        %v1247 = vpop.permute.xlu0 %1246
        %1248 = vrot.lane.b32.xlu0 %v1216, 16
        %v1249 = vpop.permute.xlu0 %1248
        %vm1266 = vcmask 162944
        %1267 = vst.msk [vmem:[#allocation3] sm:$0xff] %vm1266, %v1219
        %1268 = vst.msk [vmem:[#allocation3 + $0x8] sm:$0xff] %vm1266, %v1221
        %1269 = vst.msk [vmem:[#allocation3 + $0x10] sm:$0xff] %vm1266, %v1223
        %1270 = vst.msk [vmem:[#allocation3 + $0x18] sm:$0xff] %vm1266, %v1225
        %1271 = vst.msk [vmem:[#allocation3 + $0x20] sm:$0xff] %vm1266, %v1227
        %1272 = vst.msk [vmem:[#allocation3 + $0x28] sm:$0xff] %vm1266, %v1229
        %1273 = vst.msk [vmem:[#allocation3 + $0x30] sm:$0xff] %vm1266, %v1231
        %1274 = vst.msk [vmem:[#allocation3 + $0x38] sm:$0xff] %vm1266, %v1233
        %1275 = vst.msk [vmem:[#allocation3 + $0x40] sm:$0xff] %vm1266, %v1235
        %1276 = vst.msk [vmem:[#allocation3 + $0x48] sm:$0xff] %vm1266, %v1237
        %1277 = vst.msk [vmem:[#allocation3 + $0x50] sm:$0xff] %vm1266, %v1239
        %1278 = vst.msk [vmem:[#allocation3 + $0x58] sm:$0xff] %vm1266, %v1241
        %1279 = vst.msk [vmem:[#allocation3 + $0x60] sm:$0xff] %vm1266, %v1243
        %1280 = vst.msk [vmem:[#allocation3 + $0x68] sm:$0xff] %vm1266, %v1245
        %1281 = vst.msk [vmem:[#allocation3 + $0x70] sm:$0xff] %vm1266, %v1247
        %1282 = vst.msk [vmem:[#allocation3 + $0x78] sm:$0xff] %vm1266, %v1249
        %v1283 = vrot.slane %v618, 2
        %v1284 = vrot.slane %v619, 2
        %v1285 = vsel %vm914, %v1283, %v1284
        %v1286 = vrot.slane %v620, 2
        %v1287 = vsel %vm914, %v1284, %v1286
        %v1290 = vpack.c.bf16 %v1287, %v1285
        %1292 = vrot.lane.b32.xlu0 %v1028, 20
        %v1293 = vpop.permute.xlu0 %1292
        %1294 = vrot.lane.b32.xlu0 %v1029, 20
        %v1295 = vpop.permute.xlu0 %1294
        %1296 = vrot.lane.b32.xlu0 %v1030, 20
        %v1297 = vpop.permute.xlu0 %1296
        %1298 = vrot.lane.b32.xlu0 %v1031, 20
        %v1299 = vpop.permute.xlu0 %1298
        %1300 = vrot.lane.b32.xlu0 %v1032, 20
        %v1301 = vpop.permute.xlu0 %1300
        %1302 = vrot.lane.b32.xlu0 %v1033, 20
        %v1303 = vpop.permute.xlu0 %1302
        %1304 = vrot.lane.b32.xlu0 %v1034, 20
        %v1305 = vpop.permute.xlu0 %1304
        %1306 = vrot.lane.b32.xlu0 %v1035, 20
        %v1307 = vpop.permute.xlu0 %1306
        %1308 = vrot.lane.b32.xlu0 %v1036, 20
        %v1309 = vpop.permute.xlu0 %1308
        %1310 = vrot.lane.b32.xlu0 %v1037, 20
        %v1311 = vpop.permute.xlu0 %1310
        %1312 = vrot.lane.b32.xlu0 %v1038, 20
        %v1313 = vpop.permute.xlu0 %1312
        %1314 = vrot.lane.b32.xlu0 %v1039, 20
        %v1315 = vpop.permute.xlu0 %1314
        %1316 = vrot.lane.b32.xlu0 %v1040, 20
        %v1317 = vpop.permute.xlu0 %1316
        %1318 = vrot.lane.b32.xlu0 %v1041, 20
        %v1319 = vpop.permute.xlu0 %1318
        %1320 = vrot.lane.b32.xlu0 %v1042, 20
        %v1321 = vpop.permute.xlu0 %1320
        %1322 = vrot.lane.b32.xlu0 %v1290, 20
        %v1323 = vpop.permute.xlu0 %1322
        %vm1340 = vcmask 195744
        %1341 = vst.msk [vmem:[#allocation3] sm:$0xff] %vm1340, %v1293
        %1342 = vst.msk [vmem:[#allocation3 + $0x8] sm:$0xff] %vm1340, %v1295
        %1343 = vst.msk [vmem:[#allocation3 + $0x10] sm:$0xff] %vm1340, %v1297
        %1344 = vst.msk [vmem:[#allocation3 + $0x18] sm:$0xff] %vm1340, %v1299
        %1345 = vst.msk [vmem:[#allocation3 + $0x20] sm:$0xff] %vm1340, %v1301
        %1346 = vst.msk [vmem:[#allocation3 + $0x28] sm:$0xff] %vm1340, %v1303
        %1347 = vst.msk [vmem:[#allocation3 + $0x30] sm:$0xff] %vm1340, %v1305
        %1348 = vst.msk [vmem:[#allocation3 + $0x38] sm:$0xff] %vm1340, %v1307
        %1349 = vst.msk [vmem:[#allocation3 + $0x40] sm:$0xff] %vm1340, %v1309
        %1350 = vst.msk [vmem:[#allocation3 + $0x48] sm:$0xff] %vm1340, %v1311
        %1351 = vst.msk [vmem:[#allocation3 + $0x50] sm:$0xff] %vm1340, %v1313
        %1352 = vst.msk [vmem:[#allocation3 + $0x58] sm:$0xff] %vm1340, %v1315
        %1353 = vst.msk [vmem:[#allocation3 + $0x60] sm:$0xff] %vm1340, %v1317
        %1354 = vst.msk [vmem:[#allocation3 + $0x68] sm:$0xff] %vm1340, %v1319
        %1355 = vst.msk [vmem:[#allocation3 + $0x70] sm:$0xff] %vm1340, %v1321
        %1356 = vst.msk [vmem:[#allocation3 + $0x78] sm:$0xff] %vm1340, %v1323
        %v1357 = vpack.c.bf16 %v622, %v621
        %1359 = vrot.lane.b32.xlu0 %v626, 24
        %v1360 = vpop.permute.xlu0 %1359
        %1361 = vrot.lane.b32.xlu0 %v627, 24
        %v1362 = vpop.permute.xlu0 %1361
        %1363 = vrot.lane.b32.xlu0 %v628, 24
        %v1364 = vpop.permute.xlu0 %1363
        %1365 = vrot.lane.b32.xlu0 %v629, 24
        %v1366 = vpop.permute.xlu0 %1365
        %1367 = vrot.lane.b32.xlu0 %v630, 24
        %v1368 = vpop.permute.xlu0 %1367
        %1369 = vrot.lane.b32.xlu0 %v631, 24
        %v1370 = vpop.permute.xlu0 %1369
        %1371 = vrot.lane.b32.xlu0 %v632, 24
        %v1372 = vpop.permute.xlu0 %1371
        %1373 = vrot.lane.b32.xlu0 %v633, 24
        %v1374 = vpop.permute.xlu0 %1373
        %1375 = vrot.lane.b32.xlu0 %v634, 24
        %v1376 = vpop.permute.xlu0 %1375
        %1377 = vrot.lane.b32.xlu0 %v635, 24
        %v1378 = vpop.permute.xlu0 %1377
        %1379 = vrot.lane.b32.xlu0 %v636, 24
        %v1380 = vpop.permute.xlu0 %1379
        %1381 = vrot.lane.b32.xlu0 %v637, 24
        %v1382 = vpop.permute.xlu0 %1381
        %1383 = vrot.lane.b32.xlu0 %v638, 24
        %v1384 = vpop.permute.xlu0 %1383
        %1385 = vrot.lane.b32.xlu0 %v639, 24
        %v1386 = vpop.permute.xlu0 %1385
        %1387 = vrot.lane.b32.xlu0 %v1124, 24
        %v1388 = vpop.permute.xlu0 %1387
        %1389 = vrot.lane.b32.xlu0 %v1357, 24
        %v1390 = vpop.permute.xlu0 %1389
        %vm1407 = vcmask 228544
        %1408 = vst.msk [vmem:[#allocation3] sm:$0xff] %vm1407, %v1360
        %1409 = vst.msk [vmem:[#allocation3 + $0x8] sm:$0xff] %vm1407, %v1362
        %1410 = vst.msk [vmem:[#allocation3 + $0x10] sm:$0xff] %vm1407, %v1364
        %1411 = vst.msk [vmem:[#allocation3 + $0x18] sm:$0xff] %vm1407, %v1366
        %1412 = vst.msk [vmem:[#allocation3 + $0x20] sm:$0xff] %vm1407, %v1368
        %1413 = vst.msk [vmem:[#allocation3 + $0x28] sm:$0xff] %vm1407, %v1370
        %1414 = vst.msk [vmem:[#allocation3 + $0x30] sm:$0xff] %vm1407, %v1372
        %1415 = vst.msk [vmem:[#allocation3 + $0x38] sm:$0xff] %vm1407, %v1374
        %1416 = vst.msk [vmem:[#allocation3 + $0x40] sm:$0xff] %vm1407, %v1376
        %1417 = vst.msk [vmem:[#allocation3 + $0x48] sm:$0xff] %vm1407, %v1378
        %1418 = vst.msk [vmem:[#allocation3 + $0x50] sm:$0xff] %vm1407, %v1380
        %1419 = vst.msk [vmem:[#allocation3 + $0x58] sm:$0xff] %vm1407, %v1382
        %1420 = vst.msk [vmem:[#allocation3 + $0x60] sm:$0xff] %vm1407, %v1384
        %1421 = vst.msk [vmem:[#allocation3 + $0x68] sm:$0xff] %vm1407, %v1386
        %1422 = vst.msk [vmem:[#allocation3 + $0x70] sm:$0xff] %vm1407, %v1388
        %1423 = vst.msk [vmem:[#allocation3 + $0x78] sm:$0xff] %vm1407, %v1390
        %v1427 = vrot.slane %v621, 1
        %v1428 = vrot.slane %v622, 1
        %v1429 = vsel %vm704, %v1427, %v1428
        %v1430 = vrot.slane %v623, 1
        %v1431 = vsel %vm704, %v1428, %v1430
        %v1434 = vpack.c.bf16 %v1431, %v1429
        %1436 = vrot.lane.b32.xlu0 %v819, 28
        %v1437 = vpop.permute.xlu0 %1436
        %1438 = vrot.lane.b32.xlu0 %v820, 28
        %v1439 = vpop.permute.xlu0 %1438
        %1440 = vrot.lane.b32.xlu0 %v821, 28
        %v1441 = vpop.permute.xlu0 %1440
        %1442 = vrot.lane.b32.xlu0 %v822, 28
        %v1443 = vpop.permute.xlu0 %1442
        %1444 = vrot.lane.b32.xlu0 %v823, 28
        %v1445 = vpop.permute.xlu0 %1444
        %1446 = vrot.lane.b32.xlu0 %v824, 28
        %v1447 = vpop.permute.xlu0 %1446
        %1448 = vrot.lane.b32.xlu0 %v825, 28
        %v1449 = vpop.permute.xlu0 %1448
        %1450 = vrot.lane.b32.xlu0 %v826, 28
        %v1451 = vpop.permute.xlu0 %1450
        %1452 = vrot.lane.b32.xlu0 %v827, 28
        %v1453 = vpop.permute.xlu0 %1452
        %1454 = vrot.lane.b32.xlu0 %v828, 28
        %v1455 = vpop.permute.xlu0 %1454
        %1456 = vrot.lane.b32.xlu0 %v829, 28
        %v1457 = vpop.permute.xlu0 %1456
        %1458 = vrot.lane.b32.xlu0 %v830, 28
        %v1459 = vpop.permute.xlu0 %1458
        %1460 = vrot.lane.b32.xlu0 %v831, 28
        %v1461 = vpop.permute.xlu0 %1460
        %1462 = vrot.lane.b32.xlu0 %v832, 28
        %v1463 = vpop.permute.xlu0 %1462
        %1464 = vrot.lane.b32.xlu0 %v1216, 28
        %v1465 = vpop.permute.xlu0 %1464
        %1466 = vrot.lane.b32.xlu0 %v1434, 28
        %v1467 = vpop.permute.xlu0 %1466
        %vm1484 = vcmask 261344
        %1485 = vst.msk [vmem:[#allocation3] sm:$0xff] %vm1484, %v1437
        %1486 = vst.msk [vmem:[#allocation3 + $0x8] sm:$0xff] %vm1484, %v1439
        %1487 = vst.msk [vmem:[#allocation3 + $0x10] sm:$0xff] %vm1484, %v1441
        %1488 = vst.msk [vmem:[#allocation3 + $0x18] sm:$0xff] %vm1484, %v1443
        %1489 = vst.msk [vmem:[#allocation3 + $0x20] sm:$0xff] %vm1484, %v1445
        %1490 = vst.msk [vmem:[#allocation3 + $0x28] sm:$0xff] %vm1484, %v1447
        %1491 = vst.msk [vmem:[#allocation3 + $0x30] sm:$0xff] %vm1484, %v1449
        %1492 = vst.msk [vmem:[#allocation3 + $0x38] sm:$0xff] %vm1484, %v1451
        %1493 = vst.msk [vmem:[#allocation3 + $0x40] sm:$0xff] %vm1484, %v1453
        %1494 = vst.msk [vmem:[#allocation3 + $0x48] sm:$0xff] %vm1484, %v1455
        %1495 = vst.msk [vmem:[#allocation3 + $0x50] sm:$0xff] %vm1484, %v1457
        %1496 = vst.msk [vmem:[#allocation3 + $0x58] sm:$0xff] %vm1484, %v1459
        %1497 = vst.msk [vmem:[#allocation3 + $0x60] sm:$0xff] %vm1484, %v1461
        %1498 = vst.msk [vmem:[#allocation3 + $0x68] sm:$0xff] %vm1484, %v1463
        %1499 = vst.msk [vmem:[#allocation3 + $0x70] sm:$0xff] %vm1484, %v1465
        %1500 = vst.msk [vmem:[#allocation3 + $0x78] sm:$0xff] %vm1484, %v1467
        %v1501 = vrot.slane %v621, 2
        %v1502 = vrot.slane %v622, 2
        %v1503 = vsel %vm914, %v1501, %v1502
        %v1504 = vrot.slane %v623, 2
        %v1505 = vsel %vm914, %v1502, %v1504
        %v1508 = vpack.c.bf16 %v1505, %v1503
        %1510 = vrot.lane.b32.xlu0 %v1029, 32
        %v1511 = vpop.permute.xlu0 %1510
        %1512 = vrot.lane.b32.xlu0 %v1030, 32
        %v1513 = vpop.permute.xlu0 %1512
        %1514 = vrot.lane.b32.xlu0 %v1031, 32
        %v1515 = vpop.permute.xlu0 %1514
        %1516 = vrot.lane.b32.xlu0 %v1032, 32
        %v1517 = vpop.permute.xlu0 %1516
        %1518 = vrot.lane.b32.xlu0 %v1033, 32
        %v1519 = vpop.permute.xlu0 %1518
        %1520 = vrot.lane.b32.xlu0 %v1034, 32
        %v1521 = vpop.permute.xlu0 %1520
        %1522 = vrot.lane.b32.xlu0 %v1035, 32
        %v1523 = vpop.permute.xlu0 %1522
        %1524 = vrot.lane.b32.xlu0 %v1036, 32
        %v1525 = vpop.permute.xlu0 %1524
        %1526 = vrot.lane.b32.xlu0 %v1037, 32
        %v1527 = vpop.permute.xlu0 %1526
        %1528 = vrot.lane.b32.xlu0 %v1038, 32
        %v1529 = vpop.permute.xlu0 %1528
        %1530 = vrot.lane.b32.xlu0 %v1039, 32
        %v1531 = vpop.permute.xlu0 %1530
        %1532 = vrot.lane.b32.xlu0 %v1040, 32
        %v1533 = vpop.permute.xlu0 %1532
        %1534 = vrot.lane.b32.xlu0 %v1041, 32
        %v1535 = vpop.permute.xlu0 %1534
        %1536 = vrot.lane.b32.xlu0 %v1042, 32
        %v1537 = vpop.permute.xlu0 %1536
        %1538 = vrot.lane.b32.xlu0 %v1290, 32
        %v1539 = vpop.permute.xlu0 %1538
        %1540 = vrot.lane.b32.xlu0 %v1508, 32
        %v1541 = vpop.permute.xlu0 %1540
        %vm1558 = vcmask 294144
        %1559 = vst.msk [vmem:[#allocation3] sm:$0xff] %vm1558, %v1511
        %1560 = vst.msk [vmem:[#allocation3 + $0x8] sm:$0xff] %vm1558, %v1513
        %1561 = vst.msk [vmem:[#allocation3 + $0x10] sm:$0xff] %vm1558, %v1515
        %1562 = vst.msk [vmem:[#allocation3 + $0x18] sm:$0xff] %vm1558, %v1517
        %1563 = vst.msk [vmem:[#allocation3 + $0x20] sm:$0xff] %vm1558, %v1519
        %1564 = vst.msk [vmem:[#allocation3 + $0x28] sm:$0xff] %vm1558, %v1521
        %1565 = vst.msk [vmem:[#allocation3 + $0x30] sm:$0xff] %vm1558, %v1523
        %1566 = vst.msk [vmem:[#allocation3 + $0x38] sm:$0xff] %vm1558, %v1525
        %1567 = vst.msk [vmem:[#allocation3 + $0x40] sm:$0xff] %vm1558, %v1527
        %1568 = vst.msk [vmem:[#allocation3 + $0x48] sm:$0xff] %vm1558, %v1529
        %1569 = vst.msk [vmem:[#allocation3 + $0x50] sm:$0xff] %vm1558, %v1531
        %1570 = vst.msk [vmem:[#allocation3 + $0x58] sm:$0xff] %vm1558, %v1533
        %1571 = vst.msk [vmem:[#allocation3 + $0x60] sm:$0xff] %vm1558, %v1535
        %1572 = vst.msk [vmem:[#allocation3 + $0x68] sm:$0xff] %vm1558, %v1537
        %1573 = vst.msk [vmem:[#allocation3 + $0x70] sm:$0xff] %vm1558, %v1539
        %1574 = vst.msk [vmem:[#allocation3 + $0x78] sm:$0xff] %vm1558, %v1541
      $region48: #{resblock2d_forward.7} parent=43 // pred_fallthru
        _
      %v1575 = vld [vmem:[#allocation3] sm:$0xff]
      %v1576 = vld [vmem:[#allocation3 + $0x8] sm:$0xff]
      %v1577 = vld [vmem:[#allocation3 + $0x10] sm:$0xff]
      %v1578 = vld [vmem:[#allocation3 + $0x18] sm:$0xff]
      %v1579 = vld [vmem:[#allocation3 + $0x20] sm:$0xff]
      %v1580 = vld [vmem:[#allocation3 + $0x28] sm:$0xff]
      %v1581 = vld [vmem:[#allocation3 + $0x30] sm:$0xff]
      %v1582 = vld [vmem:[#allocation3 + $0x38] sm:$0xff]
      %v1583 = vld [vmem:[#allocation3 + $0x40] sm:$0xff]
      %v1584 = vld [vmem:[#allocation3 + $0x48] sm:$0xff]
      %v1585 = vld [vmem:[#allocation3 + $0x50] sm:$0xff]
      %v1586 = vld [vmem:[#allocation3 + $0x58] sm:$0xff]
      %v1587 = vld [vmem:[#allocation3 + $0x60] sm:$0xff]
      %v1588 = vld [vmem:[#allocation3 + $0x68] sm:$0xff]
      %v1589 = vld [vmem:[#allocation3 + $0x70] sm:$0xff]
      %v1590 = vld [vmem:[#allocation3 + $0x78] sm:$0xff]
      %v1591 = vld [vmem:[%s314] sm:$0xf]
      %v1592 = vld [vmem:[%s314 + $0x4] sm:$0xf]
      %v1593 = vld [vmem:[%s314 + $0x8] sm:$0xf]
      %v1594 = vld [vmem:[%s314 + $0xc] sm:$0xf]
      %v1595 = vld [vmem:[%s314 + $0x10] sm:$0x3]
      %v1596 = vld [vmem:[%s317] sm:$0x1]
      %v1598 = vlaneseq
      %v1599 = vshrl.u32 %v1598, 7
      %v1600 = vsub.s32 0, %v1599
      %v1601 = vrot.slane %v1596, %v1600
      %v1608 = vunpack.c.l.b16 %v1591
      %v1609 = vunpack.c.l.b16 %v1592
      %v1610 = vunpack.c.l.b16 %v1593
      %v1611 = vunpack.c.l.b16 %v1594
      %v1612 = vunpack.c.l.b16 %v1595
      %v1613 = vpack.c.b16 %v1609, %v1608
      %v1614 = vpack.c.b16 %v1611, %v1610
      %v1615 = vpack.c.b16 %v1612, %v1612
      %vm1618 = vcmask 293888
      %v1620 = vsel %vm1618, %v1575, 0
      %v1623 = vsel %vm1618, %v1576, 0
      %v1626 = vsel %vm1618, %v1577, 0
      %v1629 = vsel %vm1618, %v1578, 0
      %v1632 = vsel %vm1618, %v1579, 0
      %v1635 = vsel %vm1618, %v1580, 0
      %v1638 = vsel %vm1618, %v1581, 0
      %v1641 = vsel %vm1618, %v1582, 0
      %v1644 = vsel %vm1618, %v1583, 0
      %v1647 = vsel %vm1618, %v1584, 0
      %v1650 = vsel %vm1618, %v1585, 0
      %v1653 = vsel %vm1618, %v1586, 0
      %v1656 = vsel %vm1618, %v1587, 0
      %v1659 = vsel %vm1618, %v1588, 0
      %v1662 = vsel %vm1618, %v1589, 0
      %v1665 = vsel %vm1618, %v1590, 0
      %vm1667 = vcmask 1041408
      %v1669 = vsel %vm1667, %v1615, 0
      %1671 = vmatprep.subr.bf16.mxu0 0
      %1672 = vmatpush1.bf16.msra.mxu0 %v1613
      %1673 = vmatprep.subr.bf16.mxu0 0
      %1674 = vmatpush1.bf16.msra.mxu0 %v1614
      %1675 = vmatprep.subr.bf16.mxu0 0
      %1676 = vmatpush1.bf16.msra.mxu0 %v1669
      %1677 = vmatprep.subr.bf16.mxu0 0
      %1678 = vmatpush1.bf16.msra.mxu0 0
      %1679 = vmatprep.subr.bf16.mxu0 0
      %1680 = vmatpush1.bf16.msra.mxu0 0
      %1681 = vmatprep.subr.bf16.mxu0 0
      %1682 = vmatpush1.bf16.msra.mxu0 0
      %1683 = vmatprep.subr.bf16.mxu0 0
      %1684 = vmatpush1.bf16.msra.mxu0 0
      %1685 = vmatprep.subr.bf16.mxu0 0
      %1686 = vmatpush1.bf16.msra.mxu0 0
      %1687 = vmatprep.subr.bf16.mxu0 0
      %1688 = vmatpush1.bf16.msra.mxu0 0
      %1689 = vmatprep.subr.bf16.mxu0 0
      %1690 = vmatpush1.bf16.msra.mxu0 0
      %1691 = vmatprep.subr.bf16.mxu0 0
      %1692 = vmatpush1.bf16.msra.mxu0 0
      %1693 = vmatprep.subr.bf16.mxu0 0
      %1694 = vmatpush1.bf16.msra.mxu0 0
      %1695 = vmatprep.subr.bf16.mxu0 0
      %1696 = vmatpush1.bf16.msra.mxu0 0
      %1697 = vmatprep.subr.bf16.mxu0 0
      %1698 = vmatpush1.bf16.msra.mxu0 0
      %1699 = vmatprep.subr.bf16.mxu0 0
      %1700 = vmatpush1.bf16.msra.mxu0 0
      %1701 = vmatprep.subr.bf16.mxu0 0
      %1702 = vmatpush1.bf16.msra.mxu0 0
      %1703 = vmatprep.mubr.bf16.mxu0 0
      %1704 = vmatmul.mubr.bf16.gmra.mrb[0].mxu0 %v1620
      %v1705 = vpop.f32.mrb[0].mxu0
      %v1706 = vadd.f32 %v1601, %v1705
      %v1707 = vpop.f32.mrb[0].mxu0
      %v1708 = vpop.f32.mrb[0].mxu0
      %v1709 = vadd.f32 %v1601, %v1708
      %v1710 = vpop.f32.mrb[0].mxu0
      %1711 = vmatprep.mubr.bf16.mxu0 0
      %1712 = vmatmul.mubr.bf16.gmra.mrb[0].mxu0 %v1623
      %v1713 = vpop.f32.mrb[0].mxu0
      %v1714 = vadd.f32 %v1601, %v1713
      %v1715 = vpop.f32.mrb[0].mxu0
      %v1716 = vpop.f32.mrb[0].mxu0
      %v1717 = vadd.f32 %v1601, %v1716
      %v1718 = vpop.f32.mrb[0].mxu0
      %1719 = vmatprep.mubr.bf16.mxu0 0
      %1720 = vmatmul.mubr.bf16.gmra.mrb[0].mxu0 %v1626
      %v1721 = vpop.f32.mrb[0].mxu0
      %v1722 = vadd.f32 %v1601, %v1721
      %v1723 = vpop.f32.mrb[0].mxu0
      %v1724 = vpop.f32.mrb[0].mxu0
      %v1725 = vadd.f32 %v1601, %v1724
      %v1726 = vpop.f32.mrb[0].mxu0
      %1727 = vmatprep.mubr.bf16.mxu0 0
      %1728 = vmatmul.mubr.bf16.gmra.mrb[0].mxu0 %v1629
      %v1729 = vpop.f32.mrb[0].mxu0
      %v1730 = vadd.f32 %v1601, %v1729
      %v1731 = vpop.f32.mrb[0].mxu0
      %v1732 = vpop.f32.mrb[0].mxu0
      %v1733 = vadd.f32 %v1601, %v1732
      %v1734 = vpop.f32.mrb[0].mxu0
      %1735 = vmatprep.mubr.bf16.mxu0 0
      %1736 = vmatmul.mubr.bf16.gmra.mrb[0].mxu0 %v1632
      %v1737 = vpop.f32.mrb[0].mxu0
      %v1738 = vadd.f32 %v1601, %v1737
      %v1739 = vpop.f32.mrb[0].mxu0
      %v1740 = vpop.f32.mrb[0].mxu0
      %v1741 = vadd.f32 %v1601, %v1740
      %v1742 = vpop.f32.mrb[0].mxu0
      %1743 = vmatprep.mubr.bf16.mxu0 0
      %1744 = vmatmul.mubr.bf16.gmra.mrb[0].mxu0 %v1635
      %v1745 = vpop.f32.mrb[0].mxu0
      %v1746 = vadd.f32 %v1601, %v1745
      %v1747 = vpop.f32.mrb[0].mxu0
      %v1748 = vpop.f32.mrb[0].mxu0
      %v1749 = vadd.f32 %v1601, %v1748
      %v1750 = vpop.f32.mrb[0].mxu0
      %1751 = vmatprep.mubr.bf16.mxu0 0
      %1752 = vmatmul.mubr.bf16.gmra.mrb[0].mxu0 %v1638
      %v1753 = vpop.f32.mrb[0].mxu0
      %v1754 = vadd.f32 %v1601, %v1753
      %v1755 = vpop.f32.mrb[0].mxu0
      %v1756 = vpop.f32.mrb[0].mxu0
      %v1757 = vadd.f32 %v1601, %v1756
      %v1758 = vpop.f32.mrb[0].mxu0
      %1759 = vmatprep.mubr.bf16.mxu0 0
      %1760 = vmatmul.mubr.bf16.gmra.mrb[0].mxu0 %v1641
      %v1761 = vpop.f32.mrb[0].mxu0
      %v1762 = vadd.f32 %v1601, %v1761
      %v1763 = vpop.f32.mrb[0].mxu0
      %v1764 = vpop.f32.mrb[0].mxu0
      %v1765 = vadd.f32 %v1601, %v1764
      %v1766 = vpop.f32.mrb[0].mxu0
      %1767 = vmatprep.mubr.bf16.mxu0 0
      %1768 = vmatmul.mubr.bf16.gmra.mrb[0].mxu0 %v1644
      %v1769 = vpop.f32.mrb[0].mxu0
      %v1770 = vadd.f32 %v1601, %v1769
      %v1771 = vpop.f32.mrb[0].mxu0
      %v1772 = vpop.f32.mrb[0].mxu0
      %v1773 = vadd.f32 %v1601, %v1772
      %v1774 = vpop.f32.mrb[0].mxu0
      %1775 = vmatprep.mubr.bf16.mxu0 0
      %1776 = vmatmul.mubr.bf16.gmra.mrb[0].mxu0 %v1647
      %v1777 = vpop.f32.mrb[0].mxu0
      %v1778 = vadd.f32 %v1601, %v1777
      %v1779 = vpop.f32.mrb[0].mxu0
      %v1780 = vpop.f32.mrb[0].mxu0
      %v1781 = vadd.f32 %v1601, %v1780
      %v1782 = vpop.f32.mrb[0].mxu0
      %1783 = vmatprep.mubr.bf16.mxu0 0
      %1784 = vmatmul.mubr.bf16.gmra.mrb[0].mxu0 %v1650
      %v1785 = vpop.f32.mrb[0].mxu0
      %v1786 = vadd.f32 %v1601, %v1785
      %v1787 = vpop.f32.mrb[0].mxu0
      %v1788 = vpop.f32.mrb[0].mxu0
      %v1789 = vadd.f32 %v1601, %v1788
      %v1790 = vpop.f32.mrb[0].mxu0
      %1791 = vmatprep.mubr.bf16.mxu0 0
      %1792 = vmatmul.mubr.bf16.gmra.mrb[0].mxu0 %v1653
      %v1793 = vpop.f32.mrb[0].mxu0
      %v1794 = vadd.f32 %v1601, %v1793
      %v1795 = vpop.f32.mrb[0].mxu0
      %v1796 = vpop.f32.mrb[0].mxu0
      %v1797 = vadd.f32 %v1601, %v1796
      %v1798 = vpop.f32.mrb[0].mxu0
      %1799 = vmatprep.mubr.bf16.mxu0 0
      %1800 = vmatmul.mubr.bf16.gmra.mrb[0].mxu0 %v1656
      %v1801 = vpop.f32.mrb[0].mxu0
      %v1802 = vadd.f32 %v1601, %v1801
      %v1803 = vpop.f32.mrb[0].mxu0
      %v1804 = vpop.f32.mrb[0].mxu0
      %v1805 = vadd.f32 %v1601, %v1804
      %v1806 = vpop.f32.mrb[0].mxu0
      %1807 = vmatprep.mubr.bf16.mxu0 0
      %1808 = vmatmul.mubr.bf16.gmra.mrb[0].mxu0 %v1659
      %v1809 = vpop.f32.mrb[0].mxu0
      %v1810 = vadd.f32 %v1601, %v1809
      %v1811 = vpop.f32.mrb[0].mxu0
      %v1812 = vpop.f32.mrb[0].mxu0
      %v1813 = vadd.f32 %v1601, %v1812
      %v1814 = vpop.f32.mrb[0].mxu0
      %1815 = vmatprep.mubr.bf16.mxu0 0
      %1816 = vmatmul.mubr.bf16.gmra.mrb[0].mxu0 %v1662
      %v1817 = vpop.f32.mrb[0].mxu0
      %v1818 = vadd.f32 %v1601, %v1817
      %v1819 = vpop.f32.mrb[0].mxu0
      %v1820 = vpop.f32.mrb[0].mxu0
      %v1821 = vadd.f32 %v1601, %v1820
      %v1822 = vpop.f32.mrb[0].mxu0
      %1823 = vmatprep.mubr.bf16.mxu0 0
      %1824 = vmatmul.mubr.bf16.gmra.mrb[0].mxu0 %v1665
      %v1825 = vpop.f32.mrb[0].mxu0
      %v1826 = vadd.f32 %v1601, %v1825
      %v1827 = vpop.f32.mrb[0].mxu0
      %v1828 = vpop.f32.mrb[0].mxu0
      %v1829 = vadd.f32 %v1601, %v1828
      %v1830 = vpop.f32.mrb[0].mxu0
      %1831 = vdwg.mxu0
      %v1832 = vld [vmem:[%s325] sm:$0xff]
      %v1833 = vld [vmem:[%s325 + $0x8] sm:$0xff]
      %v1834 = vld [vmem:[%s325 + $0x10] sm:$0xff]
      %v1835 = vld [vmem:[%s325 + $0x18] sm:$0xff]
      %v1836 = vld [vmem:[%s325 + $0x20] sm:$0xff]
      %v1837 = vld [vmem:[%s325 + $0x28] sm:$0xff]
      %v1838 = vld [vmem:[%s325 + $0x30] sm:$0xff]
      %v1839 = vld [vmem:[%s325 + $0x38] sm:$0xff]
      %v1840 = vld [vmem:[%s325 + $0x40] sm:$0xff]
      %v1841 = vld [vmem:[%s325 + $0x48] sm:$0xff]
      %v1842 = vld [vmem:[%s325 + $0x50] sm:$0xff]
      %v1843 = vld [vmem:[%s325 + $0x58] sm:$0xff]
      %v1844 = vld [vmem:[%s325 + $0x60] sm:$0xff]
      %v1845 = vld [vmem:[%s325 + $0x68] sm:$0xff]
      %v1846 = vld [vmem:[%s325 + $0x70] sm:$0xff]
      %v1847 = vld [vmem:[%s325 + $0x78] sm:$0xff]
      %v1848 = vld [vmem:[%s325 + $0x80] sm:$0xff]
      %v1849 = vld [vmem:[%s325 + $0x88] sm:$0xff]
      %v1850 = vld [vmem:[%s325 + $0x90] sm:$0xff]
      %v1851 = vld [vmem:[%s325 + $0x98] sm:$0xff]
      %v1852 = vld [vmem:[%s325 + $0xa0] sm:$0xff]
      %v1853 = vld [vmem:[%s325 + $0xa8] sm:$0xff]
      %v1854 = vld [vmem:[%s325 + $0xb0] sm:$0xff]
      %v1855 = vld [vmem:[%s325 + $0xb8] sm:$0xff]
      %v1856 = vld [vmem:[%s325 + $0xc0] sm:$0xff]
      %v1857 = vld [vmem:[%s325 + $0xc8] sm:$0xff]
      %v1858 = vld [vmem:[%s325 + $0xd0] sm:$0xff]
      %v1859 = vld [vmem:[%s325 + $0xd8] sm:$0xff]
      %v1860 = vld [vmem:[%s325 + $0xe0] sm:$0xff]
      %v1861 = vld [vmem:[%s325 + $0xe8] sm:$0xff]
      %v1862 = vld [vmem:[%s325 + $0xf0] sm:$0xff]
      %v1863 = vld [vmem:[%s325 + $0xf8] sm:$0xff]
      %v1864 = vadd.f32 %v1706, %v1832
      %v1865 = vadd.f32 %v1709, %v1833
      %v1866 = vadd.f32 %v1714, %v1834
      %v1867 = vadd.f32 %v1717, %v1835
      %v1868 = vadd.f32 %v1722, %v1836
      %v1869 = vadd.f32 %v1725, %v1837
      %v1870 = vadd.f32 %v1730, %v1838
      %v1871 = vadd.f32 %v1733, %v1839
      %v1872 = vadd.f32 %v1738, %v1840
      %v1873 = vadd.f32 %v1741, %v1841
      %v1874 = vadd.f32 %v1746, %v1842
      %v1875 = vadd.f32 %v1749, %v1843
      %v1876 = vadd.f32 %v1754, %v1844
      %v1877 = vadd.f32 %v1757, %v1845
      %v1878 = vadd.f32 %v1762, %v1846
      %v1879 = vadd.f32 %v1765, %v1847
      %v1880 = vadd.f32 %v1770, %v1848
      %v1881 = vadd.f32 %v1773, %v1849
      %v1882 = vadd.f32 %v1778, %v1850
      %v1883 = vadd.f32 %v1781, %v1851
      %v1884 = vadd.f32 %v1786, %v1852
      %v1885 = vadd.f32 %v1789, %v1853
      %v1886 = vadd.f32 %v1794, %v1854
      %v1887 = vadd.f32 %v1797, %v1855
      %v1888 = vadd.f32 %v1802, %v1856
      %v1889 = vadd.f32 %v1805, %v1857
      %v1890 = vadd.f32 %v1810, %v1858
      %v1891 = vadd.f32 %v1813, %v1859
      %v1892 = vadd.f32 %v1818, %v1860
      %v1893 = vadd.f32 %v1821, %v1861
      %v1894 = vadd.f32 %v1826, %v1862
      %v1895 = vadd.f32 %v1829, %v1863
      %vm1896 = vcmask 31744
      %1897 = vst.msk [vmem:[%s333] sm:$0xff] %vm1896, %v1864
      %1898 = vst.msk [vmem:[%s333 + $0x8] sm:$0xff] %vm1896, %v1865
      %1899 = vst.msk [vmem:[%s333 + $0x10] sm:$0xff] %vm1896, %v1866
      %1900 = vst.msk [vmem:[%s333 + $0x18] sm:$0xff] %vm1896, %v1867
      %1901 = vst.msk [vmem:[%s333 + $0x20] sm:$0xff] %vm1896, %v1868
      %1902 = vst.msk [vmem:[%s333 + $0x28] sm:$0xff] %vm1896, %v1869
      %1903 = vst.msk [vmem:[%s333 + $0x30] sm:$0xff] %vm1896, %v1870
      %1904 = vst.msk [vmem:[%s333 + $0x38] sm:$0xff] %vm1896, %v1871
      %1905 = vst.msk [vmem:[%s333 + $0x40] sm:$0xff] %vm1896, %v1872
      %1906 = vst.msk [vmem:[%s333 + $0x48] sm:$0xff] %vm1896, %v1873
      %1907 = vst.msk [vmem:[%s333 + $0x50] sm:$0xff] %vm1896, %v1874
      %1908 = vst.msk [vmem:[%s333 + $0x58] sm:$0xff] %vm1896, %v1875
      %1909 = vst.msk [vmem:[%s333 + $0x60] sm:$0xff] %vm1896, %v1876
      %1910 = vst.msk [vmem:[%s333 + $0x68] sm:$0xff] %vm1896, %v1877
      %1911 = vst.msk [vmem:[%s333 + $0x70] sm:$0xff] %vm1896, %v1878
      %1912 = vst.msk [vmem:[%s333 + $0x78] sm:$0xff] %vm1896, %v1879
      %1913 = vst.msk [vmem:[%s333 + $0x80] sm:$0xff] %vm1896, %v1880
      %1914 = vst.msk [vmem:[%s333 + $0x88] sm:$0xff] %vm1896, %v1881
      %1915 = vst.msk [vmem:[%s333 + $0x90] sm:$0xff] %vm1896, %v1882
      %1916 = vst.msk [vmem:[%s333 + $0x98] sm:$0xff] %vm1896, %v1883
      %1917 = vst.msk [vmem:[%s333 + $0xa0] sm:$0xff] %vm1896, %v1884
      %1918 = vst.msk [vmem:[%s333 + $0xa8] sm:$0xff] %vm1896, %v1885
      %1919 = vst.msk [vmem:[%s333 + $0xb0] sm:$0xff] %vm1896, %v1886
      %1920 = vst.msk [vmem:[%s333 + $0xb8] sm:$0xff] %vm1896, %v1887
      %1921 = vst.msk [vmem:[%s333 + $0xc0] sm:$0xff] %vm1896, %v1888
      %1922 = vst.msk [vmem:[%s333 + $0xc8] sm:$0xff] %vm1896, %v1889
      %1923 = vst.msk [vmem:[%s333 + $0xd0] sm:$0xff] %vm1896, %v1890
      %1924 = vst.msk [vmem:[%s333 + $0xd8] sm:$0xff] %vm1896, %v1891
      %1925 = vst.msk [vmem:[%s333 + $0xe0] sm:$0xff] %vm1896, %v1892
      %1926 = vst.msk [vmem:[%s333 + $0xe8] sm:$0xff] %vm1896, %v1893
      %1927 = vst.msk [vmem:[%s333 + $0xf0] sm:$0xff] %vm1896, %v1894
      %1928 = vst.msk [vmem:[%s333 + $0xf8] sm:$0xff] %vm1896, %v1895
      %p1929 = scmp.lt.s32.totalorder %s21, 1
      %s1930 = scalar_select %p1929, %s21, 1
      %p1931 = scmp.lt.s32.totalorder %s22, 0
      %s1932 = scalar_select %p1931, %s22, 0
      %s1933 = smul.addr %s1930, 32
      %s1934 = sadd.s32 %s1932, %s1933
      %s1935 = smul.addr %s1934, 8
      %s1936 = scalar_lea.vmem %s6, %s1935
      // Predicated region
      $region49: #{resblock2d_forward.7} parent=43 // pred_check
        %p1937 = pneg %p197
      $region50: #{resblock2d_forward.7} parent=43 // pred_check_branch
        %1939 = sbr.rel (%p1937) target = $region52
      $region51: #{resblock2d_forward.7} parent=43 // pred_region
        _
      $region52: #{resblock2d_forward.7} parent=43 // pred_fallthru
        _
    $region44: #{resblock2d_forward.7} parent=5 // pred_fallthru
      _
    %p1940 = scmp.le.s32.totalorder 2, %s12
    // Predicated region
    $region53: #{resblock2d_forward.7} parent=5 // pred_check
      %p1941 = pneg %p1940
    $region54: #{resblock2d_forward.7} parent=5 // pred_check_branch
      %1943 = sbr.rel (%p1941) target = $region56
    $region55: #{resblock2d_forward.7} parent=5 // pred_region
      %s1944 = ssub.s32 %s12, 2
      // Predicated region
      $region57: #{resblock2d_forward.7} parent=55 // pred_check
        %p1945 = pneg %p203
      $region58: #{resblock2d_forward.7} parent=55 // pred_check_branch
        %1947 = sbr.rel (%p1945) target = $region60
      $region59: #{resblock2d_forward.7} parent=55 // pred_region
        %p1948 = scmp.lt.s32.totalorder %s23, 1
        %s1949 = scalar_select %p1948, %s23, 1
        %p1950 = scmp.lt.s32.totalorder %s24, 0
        %s1951 = scalar_select %p1950, %s24, 0
        %s1952 = smul.addr %s1949, 32
        %s1953 = sadd.s32 %s1951, %s1952
        %s1954 = smul.addr %s1953, 8
        %s1955 = scalar_lea.vmem %s6, %s1954
      $region60: #{resblock2d_forward.7} parent=55 // pred_fallthru
        _
    $region56: #{resblock2d_forward.7} parent=5 // pred_fallthru
      _
  $region6: #{resblock2d_forward.7} parent=0 // loop_footer
    %s16 = sadd.s32 1, %s12
  $region7: #{resblock2d_forward.7} parent=0 // loop_footer_branch
    %11 = sbr.rel target = $region3
  $region8: #{resblock2d_forward.7} parent=0 // loop_exit
    _

</llo_original>
